<compile_context>
chip_gen: v7x
topology: tpu7x:2x2x1
jax: 0.10.0
libtpu: 0.0.40
codegen_flags: <defaults>
</compile_context>

<pallas_src>
import functools

import jax
import jax.numpy as jnp
from jax import lax
from jax.experimental import pallas as pl
from jax.experimental.pallas import tpu as pltpu


MH_KEYS = ("ln", "w_q", "w_kv", "b_q", "b_kv", "w_o", "b_o", "w_ffn", "b_ffn")


# ---------------------------------------------------------------------------
# In-kernel helpers
# ---------------------------------------------------------------------------
def _layer_norm(x, g, b, eps=1e-5):
    mu = jnp.mean(x, axis=-1, keepdims=True)
    var = jnp.mean((x - mu) ** 2, axis=-1, keepdims=True)
    return (x - mu) * lax.rsqrt(var + eps) * g + b


def _onehot_gather(ids_col, tbl_ref):
    """Exact embedding-row gather as a one-hot matmul (MXU, no dynamic index).

    ids_col: (S, 1) int32;  tbl_ref: (N, D) f32 VMEM ref  ->  (S, D) f32."""
    s = ids_col.shape[0]
    n = tbl_ref.shape[0]
    iota = lax.broadcasted_iota(jnp.int32, (s, n), 1)
    onehot = (iota == ids_col).astype(jnp.float32)
    return jnp.dot(onehot, tbl_ref[...], preferred_element_type=jnp.float32)


def _mh_ffn(x_q, x_kv, mask, refs, *, n_heads):
    """MultiHeadWithFFN on one batch element's (S, D) activations (f32 I/O,
    bf16 MXU operands, f32 accumulate / statistics)."""
    (ln_ref, wq_ref, wkv_ref, bq_ref, bkv_ref,
     wo_ref, bo_ref, wffn_ref, bffn_ref) = refs
    s, d = x_q.shape
    hd = d // n_heads
    scale = 1.0 / float(hd) ** 0.5
    bf16 = jnp.bfloat16

    ln = ln_ref[...]                                   # (4, 1, D) f32
    qn = _layer_norm(x_q, ln[0], ln[1])                # pre-LN (shared params)
    kvn = _layer_norm(x_kv, ln[0], ln[1])

    # Fused projections: one (S,D)@(D,D) for Q, one (S,D)@(D,2D) for K|V.
    q = jnp.dot(qn.astype(bf16), wq_ref[...],
                preferred_element_type=jnp.float32) + bq_ref[...]
    kv = jnp.dot(kvn.astype(bf16), wkv_ref[...],
                 preferred_element_type=jnp.float32) + bkv_ref[...]

    # Head split done once per tensor (static lane slices + leading-dim stack).
    qh = jnp.stack([q[:, h * hd:(h + 1) * hd] for h in range(n_heads)], axis=0)
    kh = jnp.stack([kv[:, h * hd:(h + 1) * hd] for h in range(n_heads)], axis=0)
    vh = jnp.stack([kv[:, d + h * hd: d + (h + 1) * hd]
                    for h in range(n_heads)], axis=0)           # (H, S, hd)

    # Batched attention over heads (single instruction stream, no per-head
    # MXU fill/drain round-trips).
    sc = jnp.einsum("hqe,hke->hqk", qh.astype(bf16), kh.astype(bf16),
                    preferred_element_type=jnp.float32)
    sc = sc * scale + mask[None]                       # f32 mask add
    sc = sc - jnp.max(sc, axis=-1, keepdims=True)      # f32 softmax stats
    p = jnp.exp(sc)
    p = p * pl.reciprocal(jnp.sum(p, axis=-1, keepdims=True), approx=True)
    ctx = jnp.einsum("hqk,hke->hqe", p.astype(bf16), vh.astype(bf16),
                     preferred_element_type=jnp.float32)        # (H, S, hd)

    # Output projection folded per head:  concat(ctx) @ Wo == sum_h ctx_h@Wo_h.
    attn = jnp.einsum("hqe,hed->hqd", ctx.astype(bf16), wo_ref[...],
                      preferred_element_type=jnp.float32)       # (H, S, D)
    attn = jnp.sum(attn, axis=0) + bo_ref[...]

    x2 = attn + qn                                     # residual on normed query
    on = _layer_norm(x2, ln[2], ln[3])
    h1 = jnp.maximum(
        jnp.dot(on.astype(bf16), wffn_ref[0],
                preferred_element_type=jnp.float32) + bffn_ref[0], 0.0)
    ffn = jnp.dot(h1.astype(bf16), wffn_ref[1],
                  preferred_element_type=jnp.float32) + bffn_ref[1]
    return ffn + on


# ---------------------------------------------------------------------------
# Fused kernel: embeddings + encoder + decoder stack + FC + sigmoid
# (one grid step == one batch element)
# ---------------------------------------------------------------------------
def ltmti_kernel(ids_ex_ref, ids_cat_ref, ids_resp_ref, ids_et_ref,
                 e_ex_ref, e_cat_ref, e_et_ref, e_resp_ref, e_pos_ref,
                 d_ex_ref, d_cat_ref, d_pos_ref,
                 e_ln, e_wq, e_wkv, e_bq, e_bkv, e_wo, e_bo, e_wffn, e_bffn,
                 d_ln, d_wq, d_wkv, d_bq, d_bkv, d_wo, d_bo, d_wffn, d_bffn,
                 fc_w_ref, fc_b_ref,
                 o_ref, *, enc_heads, dec_heads, n_decoder):
    S = e_pos_ref.shape[0]

    # Both (S,S) masks derived from one shared iota pair (built in-kernel).
    r = lax.broadcasted_iota(jnp.int32, (S, S), 0)
    c = lax.broadcasted_iota(jnp.int32, (S, S), 1)
    neg = jnp.float32(-1e9)
    enc_mask = jnp.where(c >= r, jnp.float32(0.0), neg)   # 'lt': mask the past
    dec_mask = jnp.where(c <= r, jnp.float32(0.0), neg)   # 'ut': mask the future

    ids_ex = ids_ex_ref[0]                 # (S, 1) int32
    ids_cat = ids_cat_ref[0]
    ids_resp = ids_resp_ref[0]
    ids_et = ids_et_ref[0]

    # In-kernel embedding gathers + sums (encoder / decoder inputs).
    enc_in = (_onehot_gather(ids_cat, e_cat_ref)
              + _onehot_gather(ids_ex, e_ex_ref)
              + _onehot_gather(ids_et, e_et_ref)
              + _onehot_gather(ids_resp, e_resp_ref)
              + e_pos_ref[...])                            # (S, D) f32
    dec_in = (_onehot_gather(ids_ex, d_ex_ref)
              + _onehot_gather(ids_cat, d_cat_ref)
              + d_pos_ref[...])

    enc_refs = (e_ln, e_wq, e_wkv, e_bq, e_bkv, e_wo, e_bo, e_wffn, e_bffn)
    dec_refs = (d_ln, d_wq, d_wkv, d_bq, d_bkv, d_wo, d_bo, d_wffn, d_bffn)

    # Encoder (the reference loop breaks after the first block).
    enc_out = _mh_ffn(enc_in, enc_in, enc_mask, enc_refs, n_heads=enc_heads)

    # Decoder stack; all clones share the (deep-copied) parameter set.
    if n_decoder <= 4:
        dec = dec_in
        for _ in range(n_decoder):         # static unroll: fine for shallow stacks
            dec = _mh_ffn(dec, enc_out, dec_mask, dec_refs, n_heads=dec_heads)
    else:
        # bound live ranges / code size for deep stacks (trivial carry)
        dec = lax.fori_loop(
            0, n_decoder,
            lambda _, dd: _mh_ffn(dd, enc_out, dec_mask, dec_refs,
                                  n_heads=dec_heads),
            dec_in)

    # Fused Linear(D, 1) + sigmoid epilogue, written lane-dense as (1, S).
    logits = lax.dot_general(fc_w_ref[...], dec, (((1,), (1,)), ((), ())),
                             preferred_element_type=jnp.float32)   # (1, S)
    o_ref[0] = jax.nn.sigmoid(logits + fc_b_ref[0, 0]).astype(o_ref.dtype)


# ---------------------------------------------------------------------------
# Wrapper: specs / grid / cost estimate
# ---------------------------------------------------------------------------
def _resident_spec(arr):
    """Whole-array VMEM block, same block index every grid step (no re-DMA)."""
    zeros = (0,) * arr.ndim
    return pl.BlockSpec(arr.shape, lambda b: zeros,
                        memory_space=pltpu.MemorySpace.VMEM)


def ltmti_fused(ids_ex, ids_cat, ids_resp, ids_et,
                enc_tables, dec_tables, enc_mh, dec_mh, fc_w, fc_b,
                *, enc_heads, dec_heads, n_decoder):
    B, S, _ = ids_ex.shape
    D = fc_w.shape[1]
    assert D % enc_heads == 0 and D % dec_heads == 0

    ids_spec = pl.BlockSpec((1, S, 1), lambda b: (b, 0, 0),
                            memory_space=pltpu.MemorySpace.VMEM)
    out_spec = pl.BlockSpec((1, 1, S), lambda b: (b, 0, 0),
                            memory_space=pltpu.MemorySpace.VMEM)

    operands = [ids_ex, ids_cat, ids_resp, ids_et,
                *enc_tables, *dec_tables,
                *[enc_mh[k] for k in MH_KEYS],
                *[dec_mh[k] for k in MH_KEYS],
                fc_w, fc_b]

    in_specs = ([ids_spec] * 4
                + [_resident_spec(a) for a in operands[4:-1]]
                + [pl.BlockSpec(memory_space=pltpu.MemorySpace.SMEM)])  # fc_b

    n_blocks = 1 + n_decoder
    gathered_rows = sum(int(t.shape[0]) for t in (*enc_tables, *dec_tables))
    flops = B * (n_blocks * (12 * S * D * D + 4 * S * S * D)
                 + 2 * S * D * gathered_rows + 2 * S * D)
    transc = B * (n_blocks * max(enc_heads, dec_heads) * S * S + S)
    bytes_acc = sum(int(x.size) * x.dtype.itemsize for x in operands) + B * S * 4

    kernel = functools.partial(ltmti_kernel, enc_heads=enc_heads,
                               dec_heads=dec_heads, n_decoder=n_decoder)

    out = pl.pallas_call(
        kernel,
        grid=(B,),
        in_specs=in_specs,
        out_specs=out_spec,
        out_shape=jax.ShapeDtypeStruct((B, 1, S), jnp.float32),
        compiler_params=pltpu.CompilerParams(
            dimension_semantics=("parallel",)),
        cost_estimate=pl.CostEstimate(flops=int(flops),
                                      transcendentals=int(transc),
                                      bytes_accessed=int(bytes_acc)),
    )(*operands)
    return out.reshape(B, S, 1)


# ---------------------------------------------------------------------------
# Parameter init (deterministic, synthetic). Weights stored (D_in, D_out) so
# the kernel computes x @ W; MXU weights are stored bf16, everything used on
# the VPU/EUP path (LN params, biases, embeddings, head) stays f32.
# ---------------------------------------------------------------------------
def _dense(key, d_in, d_out, scale=0.05):
    return scale * jax.random.normal(key, (d_in, d_out), jnp.float32)


def init_mh_ffn_params(key, d):
    ks = jax.random.split(key, 6)
    ln = jnp.stack([jnp.ones((1, d), jnp.float32),    # g1
                    jnp.zeros((1, d), jnp.float32),   # b1
                    jnp.ones((1, d), jnp.float32),    # g2
                    jnp.zeros((1, d), jnp.float32)])  # b2  -> (4, 1, d)
    w_q = _dense(ks[0], d, d).astype(jnp.bfloat16)
    w_kv = jnp.concatenate([_dense(ks[1], d, d), _dense(ks[2], d, d)],
                           axis=1).astype(jnp.bfloat16)          # (d, 2d)
    w_o = _dense(ks[3], d, d).astype(jnp.bfloat16)               # (d, d)
    w_ffn = jnp.stack([_dense(ks[4], d, d),
                       _dense(ks[5], d, d)]).astype(jnp.bfloat16)  # (2, d, d)
    return dict(ln=ln, w_q=w_q, w_kv=w_kv,
                b_q=jnp.zeros((1, d), jnp.float32),
                b_kv=jnp.zeros((1, 2 * d), jnp.float32),
                w_o=w_o, b_o=jnp.zeros((1, d), jnp.float32),
                w_ffn=w_ffn, b_ffn=jnp.zeros((2, 1, d), jnp.float32))


def init_params(key, *, n_dims, total_ex, total_cat, total_responses,
                seq_len, max_time):
    ks = jax.random.split(key, 12)
    S = seq_len - 1
    enc = dict(
        ex_emb=jax.random.normal(ks[0], (total_ex, n_dims), jnp.float32),
        cat_emb=jax.random.normal(ks[1], (total_cat, n_dims), jnp.float32),
        pos_emb=jax.random.normal(ks[2], (seq_len, n_dims), jnp.float32),
        resp_emb=jax.random.normal(ks[3], (total_ex, n_dims), jnp.float32),
        etime_emb=jax.random.normal(ks[4], (max_time, n_dims), jnp.float32),
        mh=init_mh_ffn_params(ks[5], n_dims),
    )
    dec = dict(
        ex_emb=jax.random.normal(ks[6], (total_responses, n_dims), jnp.float32),
        cat_emb=jax.random.normal(ks[7], (total_cat, n_dims), jnp.float32),
        pos_emb=jax.random.normal(ks[8], (seq_len, n_dims), jnp.float32),
        mh=init_mh_ffn_params(ks[9], n_dims),
    )
    fc_w = _dense(ks[10], 1, n_dims)     # PyTorch Linear(n_dims, 1).weight is (1, n_dims)
    fc_b = jnp.zeros((1, 1), jnp.float32)
    return dict(enc=enc, dec=dec, fc_w=fc_w, fc_b=fc_b), S


# ---------------------------------------------------------------------------
# LTMTI forward — everything (gathers, transformer stack, head) runs inside
# the single fused Pallas kernel; only id reshapes / weight views stay outside.
# ---------------------------------------------------------------------------
def ltmti_forward(params, in_exercise, in_category, in_response, in_etime,
                  *, enc_heads, dec_heads, n_decoder):
    B, S = in_exercise.shape
    enc_p, dec_p = params["enc"], params["dec"]
    D = params["fc_w"].shape[1]

    def to_ids(a):
        return a.astype(jnp.int32).reshape(B, S, 1)

    enc_tables = (enc_p["ex_emb"], enc_p["cat_emb"], enc_p["etime_emb"],
                  enc_p["resp_emb"], enc_p["pos_emb"][:S])
    dec_tables = (dec_p["ex_emb"], dec_p["cat_emb"], dec_p["pos_emb"][:S])

    def head_major(mh, n_heads):
        hd = D // n_heads
        return {**mh, "w_o": mh["w_o"].reshape(n_heads, hd, D)}

    return ltmti_fused(to_ids(in_exercise), to_ids(in_category),
                       to_ids(in_response), to_ids(in_etime),
                       enc_tables, dec_tables,
                       head_major(enc_p["mh"], enc_heads),
                       head_major(dec_p["mh"], dec_heads),
                       params["fc_w"], params["fc_b"],
                       enc_heads=enc_heads, dec_heads=dec_heads,
                       n_decoder=n_decoder)


# ---------------------------------------------------------------------------
if __name__ == "__main__":
    # Small, self-consistent configuration.
    n_encoder, n_decoder = 2, 2
    enc_heads = dec_heads = 4
    n_dims = 32
    seq_len = 9                      # model sequences are seq_len - 1 = 8 long
    total_ex = 50
    total_cat = 10
    total_responses = 50             # decoder exercise_embed indexed by exercise ids
    max_time = 301
    B = 2

    key = jax.random.PRNGKey(0)
    k_par, k_ex, k_cat, k_resp, k_et = jax.random.split(key, 5)

    params, S = init_params(
        k_par, n_dims=n_dims, total_ex=total_ex, total_cat=total_cat,
        total_responses=total_responses, seq_len=seq_len, max_time=max_time)

    in_exercise = jax.random.randint(k_ex, (B, S), 0, total_ex, dtype=jnp.int32)
    in_category = jax.random.randint(k_cat, (B, S), 0, total_cat, dtype=jnp.int32)
    in_response = jax.random.randint(k_resp, (B, S), 0, 2, dtype=jnp.int32)
    in_etime = jax.random.randint(k_et, (B, S), 0, max_time, dtype=jnp.int32)

    fwd = jax.jit(functools.partial(
        ltmti_forward, enc_heads=enc_heads, dec_heads=dec_heads,
        n_decoder=n_decoder))

    out = fwd(params, in_exercise, in_category, in_response, in_etime)
    out = jax.block_until_ready(out)

    assert out.shape == (B, S, 1), out.shape
    assert bool(jnp.all(jnp.isfinite(out)))
    assert bool(jnp.all((out >= 0.0) & (out <= 1.0)))
    print("KERNEL_OK")
</pallas_src>

<mosaic_0001>
module attributes {stable_mosaic.version = 11 : i64} {
  func.func @ltmti_kernel(%arg0: i32, %arg1: memref<1x8x1xi32, #tpu.memory_space<vmem>>, %arg2: memref<1x8x1xi32, #tpu.memory_space<vmem>>, %arg3: memref<1x8x1xi32, #tpu.memory_space<vmem>>, %arg4: memref<1x8x1xi32, #tpu.memory_space<vmem>>, %arg5: memref<50x32xf32, #tpu.memory_space<vmem>>, %arg6: memref<10x32xf32, #tpu.memory_space<vmem>>, %arg7: memref<301x32xf32, #tpu.memory_space<vmem>>, %arg8: memref<50x32xf32, #tpu.memory_space<vmem>>, %arg9: memref<8x32xf32, #tpu.memory_space<vmem>>, %arg10: memref<50x32xf32, #tpu.memory_space<vmem>>, %arg11: memref<10x32xf32, #tpu.memory_space<vmem>>, %arg12: memref<8x32xf32, #tpu.memory_space<vmem>>, %arg13: memref<4x1x32xf32, #tpu.memory_space<vmem>>, %arg14: memref<32x32xbf16, #tpu.memory_space<vmem>>, %arg15: memref<32x64xbf16, #tpu.memory_space<vmem>>, %arg16: memref<1x32xf32, #tpu.memory_space<vmem>>, %arg17: memref<1x64xf32, #tpu.memory_space<vmem>>, %arg18: memref<4x8x32xbf16, #tpu.memory_space<vmem>>, %arg19: memref<1x32xf32, #tpu.memory_space<vmem>>, %arg20: memref<2x32x32xbf16, #tpu.memory_space<vmem>>, %arg21: memref<2x1x32xf32, #tpu.memory_space<vmem>>, %arg22: memref<4x1x32xf32, #tpu.memory_space<vmem>>, %arg23: memref<32x32xbf16, #tpu.memory_space<vmem>>, %arg24: memref<32x64xbf16, #tpu.memory_space<vmem>>, %arg25: memref<1x32xf32, #tpu.memory_space<vmem>>, %arg26: memref<1x64xf32, #tpu.memory_space<vmem>>, %arg27: memref<4x8x32xbf16, #tpu.memory_space<vmem>>, %arg28: memref<1x32xf32, #tpu.memory_space<vmem>>, %arg29: memref<2x32x32xbf16, #tpu.memory_space<vmem>>, %arg30: memref<2x1x32xf32, #tpu.memory_space<vmem>>, %arg31: memref<1x32xf32, #tpu.memory_space<vmem>>, %arg32: memref<1x1xf32, #tpu.memory_space<smem>>, %arg33: memref<1x1x8xf32, #tpu.memory_space<vmem>>) attributes {dimension_semantics = [#tpu.dimension_semantics<parallel>], iteration_bounds = array<i64: 2>, scalar_prefetch = 0 : i64, scratch_operands = 0 : i64, tpu.core_type = #tpu.core_type<tc>, window_params = [{transform_indices = @transform_0, window_bounds = array<i64: 1, 8, 1>}, {transform_indices = @transform_1, window_bounds = array<i64: 1, 8, 1>}, {transform_indices = @transform_2, window_bounds = array<i64: 1, 8, 1>}, {transform_indices = @transform_3, window_bounds = array<i64: 1, 8, 1>}, {pipeline_mode = #tpu.pipeline_mode<synchronous>, transform_indices = @transform_4, window_bounds = array<i64: 50, 32>}, {pipeline_mode = #tpu.pipeline_mode<synchronous>, transform_indices = @transform_5, window_bounds = array<i64: 10, 32>}, {pipeline_mode = #tpu.pipeline_mode<synchronous>, transform_indices = @transform_6, window_bounds = array<i64: 301, 32>}, {pipeline_mode = #tpu.pipeline_mode<synchronous>, transform_indices = @transform_7, window_bounds = array<i64: 50, 32>}, {pipeline_mode = #tpu.pipeline_mode<synchronous>, transform_indices = @transform_8, window_bounds = array<i64: 8, 32>}, {pipeline_mode = #tpu.pipeline_mode<synchronous>, transform_indices = @transform_9, window_bounds = array<i64: 50, 32>}, {pipeline_mode = #tpu.pipeline_mode<synchronous>, transform_indices = @transform_10, window_bounds = array<i64: 10, 32>}, {pipeline_mode = #tpu.pipeline_mode<synchronous>, transform_indices = @transform_11, window_bounds = array<i64: 8, 32>}, {pipeline_mode = #tpu.pipeline_mode<synchronous>, transform_indices = @transform_12, window_bounds = array<i64: 4, 1, 32>}, {pipeline_mode = #tpu.pipeline_mode<synchronous>, transform_indices = @transform_13, window_bounds = array<i64: 32, 32>}, {pipeline_mode = #tpu.pipeline_mode<synchronous>, transform_indices = @transform_14, window_bounds = array<i64: 32, 64>}, {pipeline_mode = #tpu.pipeline_mode<synchronous>, transform_indices = @transform_15, window_bounds = array<i64: 1, 32>}, {pipeline_mode = #tpu.pipeline_mode<synchronous>, transform_indices = @transform_16, window_bounds = array<i64: 1, 64>}, {pipeline_mode = #tpu.pipeline_mode<synchronous>, transform_indices = @transform_17, window_bounds = array<i64: 4, 8, 32>}, {pipeline_mode = #tpu.pipeline_mode<synchronous>, transform_indices = @transform_18, window_bounds = array<i64: 1, 32>}, {pipeline_mode = #tpu.pipeline_mode<synchronous>, transform_indices = @transform_19, window_bounds = array<i64: 2, 32, 32>}, {pipeline_mode = #tpu.pipeline_mode<synchronous>, transform_indices = @transform_20, window_bounds = array<i64: 2, 1, 32>}, {pipeline_mode = #tpu.pipeline_mode<synchronous>, transform_indices = @transform_21, window_bounds = array<i64: 4, 1, 32>}, {pipeline_mode = #tpu.pipeline_mode<synchronous>, transform_indices = @transform_22, window_bounds = array<i64: 32, 32>}, {pipeline_mode = #tpu.pipeline_mode<synchronous>, transform_indices = @transform_23, window_bounds = array<i64: 32, 64>}, {pipeline_mode = #tpu.pipeline_mode<synchronous>, transform_indices = @transform_24, window_bounds = array<i64: 1, 32>}, {pipeline_mode = #tpu.pipeline_mode<synchronous>, transform_indices = @transform_25, window_bounds = array<i64: 1, 64>}, {pipeline_mode = #tpu.pipeline_mode<synchronous>, transform_indices = @transform_26, window_bounds = array<i64: 4, 8, 32>}, {pipeline_mode = #tpu.pipeline_mode<synchronous>, transform_indices = @transform_27, window_bounds = array<i64: 1, 32>}, {pipeline_mode = #tpu.pipeline_mode<synchronous>, transform_indices = @transform_28, window_bounds = array<i64: 2, 32, 32>}, {pipeline_mode = #tpu.pipeline_mode<synchronous>, transform_indices = @transform_29, window_bounds = array<i64: 2, 1, 32>}, {pipeline_mode = #tpu.pipeline_mode<synchronous>, transform_indices = @transform_30, window_bounds = array<i64: 1, 32>}, {transform_indices = @transform_31, window_bounds = array<i64: 1, 1>}, {transform_indices = @transform_32, window_bounds = array<i64: 1, 1, 8>}]} {
    %0 = tpu.iota {dimensions = array<i32: 0>} : vector<8x8xi32>
    %1 = tpu.iota {dimensions = array<i32: 1>} : vector<8x8xi32>
    %2 = arith.cmpi sge, %1, %0 : vector<8x8xi32>
    %cst = arith.constant 0.000000e+00 : f32
    %cst_0 = arith.constant -1.000000e+09 : f32
    %3 = vector.broadcast %cst : f32 to vector<8x8xf32>
    %4 = vector.broadcast %cst_0 : f32 to vector<8x8xf32>
    %5 = arith.select %2, %3, %4 : vector<8x8xi1>, vector<8x8xf32>
    %6 = arith.cmpi sle, %1, %0 : vector<8x8xi32>
    %cst_1 = arith.constant 0.000000e+00 : f32
    %cst_2 = arith.constant -1.000000e+09 : f32
    %7 = vector.broadcast %cst_1 : f32 to vector<8x8xf32>
    %8 = vector.broadcast %cst_2 : f32 to vector<8x8xf32>
    %9 = arith.select %6, %7, %8 : vector<8x8xi1>, vector<8x8xf32>
    %c0 = arith.constant 0 : index
    %c0_3 = arith.constant 0 : index
    %c0_4 = arith.constant 0 : index
    %10 = vector.load %arg1[%c0, %c0_3, %c0_4] : memref<1x8x1xi32, #tpu.memory_space<vmem>>, vector<1x8x1xi32>
    %11 = vector.shape_cast %10 : vector<1x8x1xi32> to vector<8x1xi32>
    %c0_5 = arith.constant 0 : index
    %c0_6 = arith.constant 0 : index
    %c0_7 = arith.constant 0 : index
    %12 = vector.load %arg2[%c0_5, %c0_6, %c0_7] : memref<1x8x1xi32, #tpu.memory_space<vmem>>, vector<1x8x1xi32>
    %13 = vector.shape_cast %12 : vector<1x8x1xi32> to vector<8x1xi32>
    %c0_8 = arith.constant 0 : index
    %c0_9 = arith.constant 0 : index
    %c0_10 = arith.constant 0 : index
    %14 = vector.load %arg3[%c0_8, %c0_9, %c0_10] : memref<1x8x1xi32, #tpu.memory_space<vmem>>, vector<1x8x1xi32>
    %15 = vector.shape_cast %14 : vector<1x8x1xi32> to vector<8x1xi32>
    %c0_11 = arith.constant 0 : index
    %c0_12 = arith.constant 0 : index
    %c0_13 = arith.constant 0 : index
    %16 = vector.load %arg4[%c0_11, %c0_12, %c0_13] : memref<1x8x1xi32, #tpu.memory_space<vmem>>, vector<1x8x1xi32>
    %17 = vector.shape_cast %16 : vector<1x8x1xi32> to vector<8x1xi32>
    %18 = tpu.iota {dimensions = array<i32: 1>} : vector<8x10xi32>
    %19 = vector.broadcast %13 : vector<8x1xi32> to vector<8x10xi32>
    %20 = arith.cmpi eq, %18, %19 : vector<8x10xi32>
    %21 = arith.extui %20 : vector<8x10xi1> to vector<8x10xi32>
    %22 = arith.sitofp %21 : vector<8x10xi32> to vector<8x10xf32>
    %c0_14 = arith.constant 0 : index
    %c0_15 = arith.constant 0 : index
    %23 = vector.load %arg6[%c0_14, %c0_15] : memref<10x32xf32, #tpu.memory_space<vmem>>, vector<10x32xf32>
    %cst_16 = arith.constant dense<0.000000e+00> : vector<8x32xf32>
    %24 = tpu.matmul %22, %23, %cst_16 {dimension_numbers = #tpu.dot_dimension_numbers<[1], [0], [0], [1], [0, 0, 1, 1], [], []>} : vector<8x10xf32>, vector<10x32xf32>, vector<8x32xf32> -> vector<8x32xf32>
    %25 = tpu.iota {dimensions = array<i32: 1>} : vector<8x50xi32>
    %26 = vector.broadcast %11 : vector<8x1xi32> to vector<8x50xi32>
    %27 = arith.cmpi eq, %25, %26 : vector<8x50xi32>
    %28 = arith.extui %27 : vector<8x50xi1> to vector<8x50xi32>
    %29 = arith.sitofp %28 : vector<8x50xi32> to vector<8x50xf32>
    %c0_17 = arith.constant 0 : index
    %c0_18 = arith.constant 0 : index
    %30 = vector.load %arg5[%c0_17, %c0_18] : memref<50x32xf32, #tpu.memory_space<vmem>>, vector<50x32xf32>
    %cst_19 = arith.constant dense<0.000000e+00> : vector<8x32xf32>
    %31 = tpu.matmul %29, %30, %cst_19 {dimension_numbers = #tpu.dot_dimension_numbers<[1], [0], [0], [1], [0, 0, 1, 1], [], []>} : vector<8x50xf32>, vector<50x32xf32>, vector<8x32xf32> -> vector<8x32xf32>
    %32 = arith.addf %24, %31 : vector<8x32xf32>
    %33 = tpu.iota {dimensions = array<i32: 1>} : vector<8x301xi32>
    %34 = vector.broadcast %17 : vector<8x1xi32> to vector<8x301xi32>
    %35 = arith.cmpi eq, %33, %34 : vector<8x301xi32>
    %36 = arith.extui %35 : vector<8x301xi1> to vector<8x301xi32>
    %37 = arith.sitofp %36 : vector<8x301xi32> to vector<8x301xf32>
    %c0_20 = arith.constant 0 : index
    %c0_21 = arith.constant 0 : index
    %38 = vector.load %arg7[%c0_20, %c0_21] : memref<301x32xf32, #tpu.memory_space<vmem>>, vector<301x32xf32>
    %cst_22 = arith.constant dense<0.000000e+00> : vector<8x32xf32>
    %39 = tpu.matmul %37, %38, %cst_22 {dimension_numbers = #tpu.dot_dimension_numbers<[1], [0], [0], [1], [0, 0, 1, 1], [], []>} : vector<8x301xf32>, vector<301x32xf32>, vector<8x32xf32> -> vector<8x32xf32>
    %40 = arith.addf %32, %39 : vector<8x32xf32>
    %41 = tpu.iota {dimensions = array<i32: 1>} : vector<8x50xi32>
    %42 = vector.broadcast %15 : vector<8x1xi32> to vector<8x50xi32>
    %43 = arith.cmpi eq, %41, %42 : vector<8x50xi32>
    %44 = arith.extui %43 : vector<8x50xi1> to vector<8x50xi32>
    %45 = arith.sitofp %44 : vector<8x50xi32> to vector<8x50xf32>
    %c0_23 = arith.constant 0 : index
    %c0_24 = arith.constant 0 : index
    %46 = vector.load %arg8[%c0_23, %c0_24] : memref<50x32xf32, #tpu.memory_space<vmem>>, vector<50x32xf32>
    %cst_25 = arith.constant dense<0.000000e+00> : vector<8x32xf32>
    %47 = tpu.matmul %45, %46, %cst_25 {dimension_numbers = #tpu.dot_dimension_numbers<[1], [0], [0], [1], [0, 0, 1, 1], [], []>} : vector<8x50xf32>, vector<50x32xf32>, vector<8x32xf32> -> vector<8x32xf32>
    %48 = arith.addf %40, %47 : vector<8x32xf32>
    %c0_26 = arith.constant 0 : index
    %c0_27 = arith.constant 0 : index
    %49 = vector.load %arg9[%c0_26, %c0_27] : memref<8x32xf32, #tpu.memory_space<vmem>>, vector<8x32xf32>
    %50 = arith.addf %48, %49 : vector<8x32xf32>
    %51 = tpu.iota {dimensions = array<i32: 1>} : vector<8x50xi32>
    %52 = vector.broadcast %11 : vector<8x1xi32> to vector<8x50xi32>
    %53 = arith.cmpi eq, %51, %52 : vector<8x50xi32>
    %54 = arith.extui %53 : vector<8x50xi1> to vector<8x50xi32>
    %55 = arith.sitofp %54 : vector<8x50xi32> to vector<8x50xf32>
    %c0_28 = arith.constant 0 : index
    %c0_29 = arith.constant 0 : index
    %56 = vector.load %arg10[%c0_28, %c0_29] : memref<50x32xf32, #tpu.memory_space<vmem>>, vector<50x32xf32>
    %cst_30 = arith.constant dense<0.000000e+00> : vector<8x32xf32>
    %57 = tpu.matmul %55, %56, %cst_30 {dimension_numbers = #tpu.dot_dimension_numbers<[1], [0], [0], [1], [0, 0, 1, 1], [], []>} : vector<8x50xf32>, vector<50x32xf32>, vector<8x32xf32> -> vector<8x32xf32>
    %58 = tpu.iota {dimensions = array<i32: 1>} : vector<8x10xi32>
    %59 = vector.broadcast %13 : vector<8x1xi32> to vector<8x10xi32>
    %60 = arith.cmpi eq, %58, %59 : vector<8x10xi32>
    %61 = arith.extui %60 : vector<8x10xi1> to vector<8x10xi32>
    %62 = arith.sitofp %61 : vector<8x10xi32> to vector<8x10xf32>
    %c0_31 = arith.constant 0 : index
    %c0_32 = arith.constant 0 : index
    %63 = vector.load %arg11[%c0_31, %c0_32] : memref<10x32xf32, #tpu.memory_space<vmem>>, vector<10x32xf32>
    %cst_33 = arith.constant dense<0.000000e+00> : vector<8x32xf32>
    %64 = tpu.matmul %62, %63, %cst_33 {dimension_numbers = #tpu.dot_dimension_numbers<[1], [0], [0], [1], [0, 0, 1, 1], [], []>} : vector<8x10xf32>, vector<10x32xf32>, vector<8x32xf32> -> vector<8x32xf32>
    %65 = arith.addf %57, %64 : vector<8x32xf32>
    %c0_34 = arith.constant 0 : index
    %c0_35 = arith.constant 0 : index
    %66 = vector.load %arg12[%c0_34, %c0_35] : memref<8x32xf32, #tpu.memory_space<vmem>>, vector<8x32xf32>
    %67 = arith.addf %65, %66 : vector<8x32xf32>
    %c0_36 = arith.constant 0 : index
    %c0_37 = arith.constant 0 : index
    %c0_38 = arith.constant 0 : index
    %68 = vector.load %arg13[%c0_36, %c0_37, %c0_38] : memref<4x1x32xf32, #tpu.memory_space<vmem>>, vector<4x1x32xf32>
    %69 = vector.extract_strided_slice %68 {offsets = [0, 0, 0], sizes = [1, 1, 32], strides = [1, 1, 1]} : vector<4x1x32xf32> to vector<1x1x32xf32>
    %70 = vector.shape_cast %69 : vector<1x1x32xf32> to vector<1x32xf32>
    %71 = vector.extract_strided_slice %68 {offsets = [1, 0, 0], sizes = [1, 1, 32], strides = [1, 1, 1]} : vector<4x1x32xf32> to vector<1x1x32xf32>
    %72 = vector.shape_cast %71 : vector<1x1x32xf32> to vector<1x32xf32>
    %cst_39 = arith.constant dense<0.000000e+00> : vector<8xf32>
    %73 = vector.multi_reduction <add>, %50, %cst_39 [1] : vector<8x32xf32> to vector<8xf32>
    %74 = vector.shape_cast %73 : vector<8xf32> to vector<8x1xf32>
    %cst_40 = arith.constant 3.200000e+01 : f32
    %75 = vector.broadcast %cst_40 : f32 to vector<8x1xf32>
    %76 = arith.divf %74, %75 : vector<8x1xf32>
    %77 = vector.broadcast %76 : vector<8x1xf32> to vector<8x32xf32>
    %78 = arith.subf %50, %77 : vector<8x32xf32>
    %79 = arith.mulf %78, %78 : vector<8x32xf32>
    %cst_41 = arith.constant dense<0.000000e+00> : vector<8xf32>
    %80 = vector.multi_reduction <add>, %79, %cst_41 [1] : vector<8x32xf32> to vector<8xf32>
    %81 = vector.shape_cast %80 : vector<8xf32> to vector<8x1xf32>
    %cst_42 = arith.constant 3.200000e+01 : f32
    %82 = vector.broadcast %cst_42 : f32 to vector<8x1xf32>
    %83 = arith.divf %81, %82 : vector<8x1xf32>
    %84 = vector.broadcast %76 : vector<8x1xf32> to vector<8x32xf32>
    %85 = arith.subf %50, %84 : vector<8x32xf32>
    %cst_43 = arith.constant 9.99999974E-6 : f32
    %86 = vector.broadcast %cst_43 : f32 to vector<8x1xf32>
    %87 = arith.addf %83, %86 : vector<8x1xf32>
    %88 = math.rsqrt %87 : vector<8x1xf32>
    %89 = vector.broadcast %88 : vector<8x1xf32> to vector<8x32xf32>
    %90 = arith.mulf %85, %89 : vector<8x32xf32>
    %91 = vector.broadcast %70 : vector<1x32xf32> to vector<8x32xf32>
    %92 = arith.mulf %90, %91 : vector<8x32xf32>
    %93 = vector.broadcast %72 : vector<1x32xf32> to vector<8x32xf32>
    %94 = arith.addf %92, %93 : vector<8x32xf32>
    %95 = vector.extract_strided_slice %68 {offsets = [0, 0, 0], sizes = [1, 1, 32], strides = [1, 1, 1]} : vector<4x1x32xf32> to vector<1x1x32xf32>
    %96 = vector.shape_cast %95 : vector<1x1x32xf32> to vector<1x32xf32>
    %97 = vector.extract_strided_slice %68 {offsets = [1, 0, 0], sizes = [1, 1, 32], strides = [1, 1, 1]} : vector<4x1x32xf32> to vector<1x1x32xf32>
    %98 = vector.shape_cast %97 : vector<1x1x32xf32> to vector<1x32xf32>
    %cst_44 = arith.constant dense<0.000000e+00> : vector<8xf32>
    %99 = vector.multi_reduction <add>, %50, %cst_44 [1] : vector<8x32xf32> to vector<8xf32>
    %100 = vector.shape_cast %99 : vector<8xf32> to vector<8x1xf32>
    %cst_45 = arith.constant 3.200000e+01 : f32
    %101 = vector.broadcast %cst_45 : f32 to vector<8x1xf32>
    %102 = arith.divf %100, %101 : vector<8x1xf32>
    %103 = vector.broadcast %102 : vector<8x1xf32> to vector<8x32xf32>
    %104 = arith.subf %50, %103 : vector<8x32xf32>
    %105 = arith.mulf %104, %104 : vector<8x32xf32>
    %cst_46 = arith.constant dense<0.000000e+00> : vector<8xf32>
    %106 = vector.multi_reduction <add>, %105, %cst_46 [1] : vector<8x32xf32> to vector<8xf32>
    %107 = vector.shape_cast %106 : vector<8xf32> to vector<8x1xf32>
    %cst_47 = arith.constant 3.200000e+01 : f32
    %108 = vector.broadcast %cst_47 : f32 to vector<8x1xf32>
    %109 = arith.divf %107, %108 : vector<8x1xf32>
    %110 = vector.broadcast %102 : vector<8x1xf32> to vector<8x32xf32>
    %111 = arith.subf %50, %110 : vector<8x32xf32>
    %cst_48 = arith.constant 9.99999974E-6 : f32
    %112 = vector.broadcast %cst_48 : f32 to vector<8x1xf32>
    %113 = arith.addf %109, %112 : vector<8x1xf32>
    %114 = math.rsqrt %113 : vector<8x1xf32>
    %115 = vector.broadcast %114 : vector<8x1xf32> to vector<8x32xf32>
    %116 = arith.mulf %111, %115 : vector<8x32xf32>
    %117 = vector.broadcast %96 : vector<1x32xf32> to vector<8x32xf32>
    %118 = arith.mulf %116, %117 : vector<8x32xf32>
    %119 = vector.broadcast %98 : vector<1x32xf32> to vector<8x32xf32>
    %120 = arith.addf %118, %119 : vector<8x32xf32>
    %121 = arith.truncf %94 : vector<8x32xf32> to vector<8x32xbf16>
    %c0_49 = arith.constant 0 : index
    %c0_50 = arith.constant 0 : index
    %122 = vector.load %arg14[%c0_49, %c0_50] : memref<32x32xbf16, #tpu.memory_space<vmem>>, vector<32x32xbf16>
    %cst_51 = arith.constant dense<0.000000e+00> : vector<8x32xf32>
    %123 = tpu.matmul %121, %122, %cst_51 {dimension_numbers = #tpu.dot_dimension_numbers<[1], [0], [0], [1], [0, 0, 1, 1], [], []>} : vector<8x32xbf16>, vector<32x32xbf16>, vector<8x32xf32> -> vector<8x32xf32>
    %c0_52 = arith.constant 0 : index
    %c0_53 = arith.constant 0 : index
    %124 = vector.load %arg16[%c0_52, %c0_53] : memref<1x32xf32, #tpu.memory_space<vmem>>, vector<1x32xf32>
    %125 = vector.broadcast %124 : vector<1x32xf32> to vector<8x32xf32>
    %126 = arith.addf %123, %125 : vector<8x32xf32>
    %127 = arith.truncf %120 : vector<8x32xf32> to vector<8x32xbf16>
    %c0_54 = arith.constant 0 : index
    %c0_55 = arith.constant 0 : index
    %128 = vector.load %arg15[%c0_54, %c0_55] : memref<32x64xbf16, #tpu.memory_space<vmem>>, vector<32x64xbf16>
    %cst_56 = arith.constant dense<0.000000e+00> : vector<8x64xf32>
    %129 = tpu.matmul %127, %128, %cst_56 {dimension_numbers = #tpu.dot_dimension_numbers<[1], [0], [0], [1], [0, 0, 1, 1], [], []>} : vector<8x32xbf16>, vector<32x64xbf16>, vector<8x64xf32> -> vector<8x64xf32>
    %c0_57 = arith.constant 0 : index
    %c0_58 = arith.constant 0 : index
    %130 = vector.load %arg17[%c0_57, %c0_58] : memref<1x64xf32, #tpu.memory_space<vmem>>, vector<1x64xf32>
    %131 = vector.broadcast %130 : vector<1x64xf32> to vector<8x64xf32>
    %132 = arith.addf %129, %131 : vector<8x64xf32>
    %133 = vector.extract_strided_slice %126 {offsets = [0, 0], sizes = [8, 8], strides = [1, 1]} : vector<8x32xf32> to vector<8x8xf32>
    %134 = vector.extract_strided_slice %126 {offsets = [0, 8], sizes = [8, 8], strides = [1, 1]} : vector<8x32xf32> to vector<8x8xf32>
    %135 = vector.extract_strided_slice %126 {offsets = [0, 16], sizes = [8, 8], strides = [1, 1]} : vector<8x32xf32> to vector<8x8xf32>
    %136 = vector.extract_strided_slice %126 {offsets = [0, 24], sizes = [8, 8], strides = [1, 1]} : vector<8x32xf32> to vector<8x8xf32>
    %137 = vector.shape_cast %133 : vector<8x8xf32> to vector<1x8x8xf32>
    %138 = vector.shape_cast %134 : vector<8x8xf32> to vector<1x8x8xf32>
    %139 = vector.shape_cast %135 : vector<8x8xf32> to vector<1x8x8xf32>
    %140 = vector.shape_cast %136 : vector<8x8xf32> to vector<1x8x8xf32>
    %141 = tpu.concatenate %137, %138, %139, %140 in 0 : vector<1x8x8xf32>, vector<1x8x8xf32>, vector<1x8x8xf32>, vector<1x8x8xf32> -> vector<4x8x8xf32>
    %142 = vector.extract_strided_slice %132 {offsets = [0, 0], sizes = [8, 8], strides = [1, 1]} : vector<8x64xf32> to vector<8x8xf32>
    %143 = vector.extract_strided_slice %132 {offsets = [0, 8], sizes = [8, 8], strides = [1, 1]} : vector<8x64xf32> to vector<8x8xf32>
    %144 = vector.extract_strided_slice %132 {offsets = [0, 16], sizes = [8, 8], strides = [1, 1]} : vector<8x64xf32> to vector<8x8xf32>
    %145 = vector.extract_strided_slice %132 {offsets = [0, 24], sizes = [8, 8], strides = [1, 1]} : vector<8x64xf32> to vector<8x8xf32>
    %146 = vector.shape_cast %142 : vector<8x8xf32> to vector<1x8x8xf32>
    %147 = vector.shape_cast %143 : vector<8x8xf32> to vector<1x8x8xf32>
    %148 = vector.shape_cast %144 : vector<8x8xf32> to vector<1x8x8xf32>
    %149 = vector.shape_cast %145 : vector<8x8xf32> to vector<1x8x8xf32>
    %150 = tpu.concatenate %146, %147, %148, %149 in 0 : vector<1x8x8xf32>, vector<1x8x8xf32>, vector<1x8x8xf32>, vector<1x8x8xf32> -> vector<4x8x8xf32>
    %151 = vector.extract_strided_slice %132 {offsets = [0, 32], sizes = [8, 8], strides = [1, 1]} : vector<8x64xf32> to vector<8x8xf32>
    %152 = vector.extract_strided_slice %132 {offsets = [0, 40], sizes = [8, 8], strides = [1, 1]} : vector<8x64xf32> to vector<8x8xf32>
    %153 = vector.extract_strided_slice %132 {offsets = [0, 48], sizes = [8, 8], strides = [1, 1]} : vector<8x64xf32> to vector<8x8xf32>
    %154 = vector.extract_strided_slice %132 {offsets = [0, 56], sizes = [8, 8], strides = [1, 1]} : vector<8x64xf32> to vector<8x8xf32>
    %155 = vector.shape_cast %151 : vector<8x8xf32> to vector<1x8x8xf32>
    %156 = vector.shape_cast %152 : vector<8x8xf32> to vector<1x8x8xf32>
    %157 = vector.shape_cast %153 : vector<8x8xf32> to vector<1x8x8xf32>
    %158 = vector.shape_cast %154 : vector<8x8xf32> to vector<1x8x8xf32>
    %159 = tpu.concatenate %155, %156, %157, %158 in 0 : vector<1x8x8xf32>, vector<1x8x8xf32>, vector<1x8x8xf32>, vector<1x8x8xf32> -> vector<4x8x8xf32>
    %160 = arith.truncf %141 : vector<4x8x8xf32> to vector<4x8x8xbf16>
    %161 = arith.truncf %150 : vector<4x8x8xf32> to vector<4x8x8xbf16>
    "tpu.trace_start"() <{level = 10 : i32, message = "hqe,hke->hqk"}> : () -> ()
    %cst_59 = arith.constant dense<0.000000e+00> : vector<4x8x8xf32>
    %162 = tpu.matmul %160, %161, %cst_59 {dimension_numbers = #tpu.dot_dimension_numbers<[2], [2], [1], [1], [0, 0, 0, 1, 1, 1], [0], [0]>} : vector<4x8x8xbf16>, vector<4x8x8xbf16>, vector<4x8x8xf32> -> vector<4x8x8xf32>
    "tpu.trace_stop"() : () -> ()
    %cst_60 = arith.constant 0.353553385 : f32
    %163 = vector.broadcast %cst_60 : f32 to vector<4x8x8xf32>
    %164 = arith.mulf %162, %163 : vector<4x8x8xf32>
    %165 = vector.shape_cast %5 : vector<8x8xf32> to vector<1x8x8xf32>
    %166 = vector.broadcast %165 : vector<1x8x8xf32> to vector<4x8x8xf32>
    %167 = arith.addf %164, %166 : vector<4x8x8xf32>
    %cst_61 = arith.constant dense<0xFF800000> : vector<4x8xf32>
    %168 = vector.multi_reduction <maximumf>, %167, %cst_61 [2] : vector<4x8x8xf32> to vector<4x8xf32>
    %169 = vector.shape_cast %168 : vector<4x8xf32> to vector<4x8x1xf32>
    %170 = vector.broadcast %169 : vector<4x8x1xf32> to vector<4x8x8xf32>
    %171 = arith.subf %167, %170 : vector<4x8x8xf32>
    %172 = math.exp %171 : vector<4x8x8xf32>
    %cst_62 = arith.constant dense<0.000000e+00> : vector<4x8xf32>
    %173 = vector.multi_reduction <add>, %172, %cst_62 [2] : vector<4x8x8xf32> to vector<4x8xf32>
    %174 = vector.shape_cast %173 : vector<4x8xf32> to vector<4x8x1xf32>
    %175 = tpu.reciprocal %174 {approx = true} : vector<4x8x1xf32> -> vector<4x8x1xf32>
    %176 = vector.broadcast %175 : vector<4x8x1xf32> to vector<4x8x8xf32>
    %177 = arith.mulf %172, %176 : vector<4x8x8xf32>
    %178 = arith.truncf %177 : vector<4x8x8xf32> to vector<4x8x8xbf16>
    %179 = arith.truncf %159 : vector<4x8x8xf32> to vector<4x8x8xbf16>
    "tpu.trace_start"() <{level = 10 : i32, message = "hqk,hke->hqe"}> : () -> ()
    %cst_63 = arith.constant dense<0.000000e+00> : vector<4x8x8xf32>
    %180 = tpu.matmul %178, %179, %cst_63 {dimension_numbers = #tpu.dot_dimension_numbers<[2], [1], [1], [2], [0, 0, 0, 1, 1, 2], [0], [0]>} : vector<4x8x8xbf16>, vector<4x8x8xbf16>, vector<4x8x8xf32> -> vector<4x8x8xf32>
    "tpu.trace_stop"() : () -> ()
    %181 = arith.truncf %180 : vector<4x8x8xf32> to vector<4x8x8xbf16>
    %c0_64 = arith.constant 0 : index
    %c0_65 = arith.constant 0 : index
    %c0_66 = arith.constant 0 : index
    %182 = vector.load %arg18[%c0_64, %c0_65, %c0_66] : memref<4x8x32xbf16, #tpu.memory_space<vmem>>, vector<4x8x32xbf16>
    "tpu.trace_start"() <{level = 10 : i32, message = "hqe,hed->hqd"}> : () -> ()
    %cst_67 = arith.constant dense<0.000000e+00> : vector<4x8x32xf32>
    %183 = tpu.matmul %181, %182, %cst_67 {dimension_numbers = #tpu.dot_dimension_numbers<[2], [1], [1], [2], [0, 0, 0, 1, 1, 2], [0], [0]>} : vector<4x8x8xbf16>, vector<4x8x32xbf16>, vector<4x8x32xf32> -> vector<4x8x32xf32>
    "tpu.trace_stop"() : () -> ()
    %cst_68 = arith.constant dense<0.000000e+00> : vector<8x32xf32>
    %184 = vector.multi_reduction <add>, %183, %cst_68 [0] : vector<4x8x32xf32> to vector<8x32xf32>
    %c0_69 = arith.constant 0 : index
    %c0_70 = arith.constant 0 : index
    %185 = vector.load %arg19[%c0_69, %c0_70] : memref<1x32xf32, #tpu.memory_space<vmem>>, vector<1x32xf32>
    %186 = vector.broadcast %185 : vector<1x32xf32> to vector<8x32xf32>
    %187 = arith.addf %184, %186 : vector<8x32xf32>
    %188 = arith.addf %187, %94 : vector<8x32xf32>
    %189 = vector.extract_strided_slice %68 {offsets = [2, 0, 0], sizes = [1, 1, 32], strides = [1, 1, 1]} : vector<4x1x32xf32> to vector<1x1x32xf32>
    %190 = vector.shape_cast %189 : vector<1x1x32xf32> to vector<1x32xf32>
    %191 = vector.extract_strided_slice %68 {offsets = [3, 0, 0], sizes = [1, 1, 32], strides = [1, 1, 1]} : vector<4x1x32xf32> to vector<1x1x32xf32>
    %192 = vector.shape_cast %191 : vector<1x1x32xf32> to vector<1x32xf32>
    %cst_71 = arith.constant dense<0.000000e+00> : vector<8xf32>
    %193 = vector.multi_reduction <add>, %188, %cst_71 [1] : vector<8x32xf32> to vector<8xf32>
    %194 = vector.shape_cast %193 : vector<8xf32> to vector<8x1xf32>
    %cst_72 = arith.constant 3.200000e+01 : f32
    %195 = vector.broadcast %cst_72 : f32 to vector<8x1xf32>
    %196 = arith.divf %194, %195 : vector<8x1xf32>
    %197 = vector.broadcast %196 : vector<8x1xf32> to vector<8x32xf32>
    %198 = arith.subf %188, %197 : vector<8x32xf32>
    %199 = arith.mulf %198, %198 : vector<8x32xf32>
    %cst_73 = arith.constant dense<0.000000e+00> : vector<8xf32>
    %200 = vector.multi_reduction <add>, %199, %cst_73 [1] : vector<8x32xf32> to vector<8xf32>
    %201 = vector.shape_cast %200 : vector<8xf32> to vector<8x1xf32>
    %cst_74 = arith.constant 3.200000e+01 : f32
    %202 = vector.broadcast %cst_74 : f32 to vector<8x1xf32>
    %203 = arith.divf %201, %202 : vector<8x1xf32>
    %204 = vector.broadcast %196 : vector<8x1xf32> to vector<8x32xf32>
    %205 = arith.subf %188, %204 : vector<8x32xf32>
    %cst_75 = arith.constant 9.99999974E-6 : f32
    %206 = vector.broadcast %cst_75 : f32 to vector<8x1xf32>
    %207 = arith.addf %203, %206 : vector<8x1xf32>
    %208 = math.rsqrt %207 : vector<8x1xf32>
    %209 = vector.broadcast %208 : vector<8x1xf32> to vector<8x32xf32>
    %210 = arith.mulf %205, %209 : vector<8x32xf32>
    %211 = vector.broadcast %190 : vector<1x32xf32> to vector<8x32xf32>
    %212 = arith.mulf %210, %211 : vector<8x32xf32>
    %213 = vector.broadcast %192 : vector<1x32xf32> to vector<8x32xf32>
    %214 = arith.addf %212, %213 : vector<8x32xf32>
    %215 = arith.truncf %214 : vector<8x32xf32> to vector<8x32xbf16>
    %c0_76 = arith.constant 0 : index
    %c0_77 = arith.constant 0 : index
    %c0_78 = arith.constant 0 : index
    %216 = vector.load %arg20[%c0_76, %c0_77, %c0_78] : memref<2x32x32xbf16, #tpu.memory_space<vmem>>, vector<1x32x32xbf16>
    %217 = vector.shape_cast %216 : vector<1x32x32xbf16> to vector<32x32xbf16>
    %cst_79 = arith.constant dense<0.000000e+00> : vector<8x32xf32>
    %218 = tpu.matmul %215, %217, %cst_79 {dimension_numbers = #tpu.dot_dimension_numbers<[1], [0], [0], [1], [0, 0, 1, 1], [], []>} : vector<8x32xbf16>, vector<32x32xbf16>, vector<8x32xf32> -> vector<8x32xf32>
    %c0_80 = arith.constant 0 : index
    %c0_81 = arith.constant 0 : index
    %c0_82 = arith.constant 0 : index
    %219 = vector.load %arg21[%c0_80, %c0_81, %c0_82] : memref<2x1x32xf32, #tpu.memory_space<vmem>>, vector<1x1x32xf32>
    %220 = vector.shape_cast %219 : vector<1x1x32xf32> to vector<1x32xf32>
    %221 = vector.broadcast %220 : vector<1x32xf32> to vector<8x32xf32>
    %222 = arith.addf %218, %221 : vector<8x32xf32>
    %cst_83 = arith.constant 0.000000e+00 : f32
    %223 = vector.broadcast %cst_83 : f32 to vector<8x32xf32>
    %224 = arith.maximumf %222, %223 : vector<8x32xf32>
    %225 = arith.truncf %224 : vector<8x32xf32> to vector<8x32xbf16>
    %c1 = arith.constant 1 : index
    %c0_84 = arith.constant 0 : index
    %c0_85 = arith.constant 0 : index
    %226 = vector.load %arg20[%c1, %c0_84, %c0_85] : memref<2x32x32xbf16, #tpu.memory_space<vmem>>, vector<1x32x32xbf16>
    %227 = vector.shape_cast %226 : vector<1x32x32xbf16> to vector<32x32xbf16>
    %cst_86 = arith.constant dense<0.000000e+00> : vector<8x32xf32>
    %228 = tpu.matmul %225, %227, %cst_86 {dimension_numbers = #tpu.dot_dimension_numbers<[1], [0], [0], [1], [0, 0, 1, 1], [], []>} : vector<8x32xbf16>, vector<32x32xbf16>, vector<8x32xf32> -> vector<8x32xf32>
    %c1_87 = arith.constant 1 : index
    %c0_88 = arith.constant 0 : index
    %c0_89 = arith.constant 0 : index
    %229 = vector.load %arg21[%c1_87, %c0_88, %c0_89] : memref<2x1x32xf32, #tpu.memory_space<vmem>>, vector<1x1x32xf32>
    %230 = vector.shape_cast %229 : vector<1x1x32xf32> to vector<1x32xf32>
    %231 = vector.broadcast %230 : vector<1x32xf32> to vector<8x32xf32>
    %232 = arith.addf %228, %231 : vector<8x32xf32>
    %233 = arith.addf %232, %214 : vector<8x32xf32>
    %c0_90 = arith.constant 0 : index
    %c0_91 = arith.constant 0 : index
    %c0_92 = arith.constant 0 : index
    %234 = vector.load %arg22[%c0_90, %c0_91, %c0_92] : memref<4x1x32xf32, #tpu.memory_space<vmem>>, vector<4x1x32xf32>
    %235 = vector.extract_strided_slice %234 {offsets = [0, 0, 0], sizes = [1, 1, 32], strides = [1, 1, 1]} : vector<4x1x32xf32> to vector<1x1x32xf32>
    %236 = vector.shape_cast %235 : vector<1x1x32xf32> to vector<1x32xf32>
    %237 = vector.extract_strided_slice %234 {offsets = [1, 0, 0], sizes = [1, 1, 32], strides = [1, 1, 1]} : vector<4x1x32xf32> to vector<1x1x32xf32>
    %238 = vector.shape_cast %237 : vector<1x1x32xf32> to vector<1x32xf32>
    %cst_93 = arith.constant dense<0.000000e+00> : vector<8xf32>
    %239 = vector.multi_reduction <add>, %67, %cst_93 [1] : vector<8x32xf32> to vector<8xf32>
    %240 = vector.shape_cast %239 : vector<8xf32> to vector<8x1xf32>
    %cst_94 = arith.constant 3.200000e+01 : f32
    %241 = vector.broadcast %cst_94 : f32 to vector<8x1xf32>
    %242 = arith.divf %240, %241 : vector<8x1xf32>
    %243 = vector.broadcast %242 : vector<8x1xf32> to vector<8x32xf32>
    %244 = arith.subf %67, %243 : vector<8x32xf32>
    %245 = arith.mulf %244, %244 : vector<8x32xf32>
    %cst_95 = arith.constant dense<0.000000e+00> : vector<8xf32>
    %246 = vector.multi_reduction <add>, %245, %cst_95 [1] : vector<8x32xf32> to vector<8xf32>
    %247 = vector.shape_cast %246 : vector<8xf32> to vector<8x1xf32>
    %cst_96 = arith.constant 3.200000e+01 : f32
    %248 = vector.broadcast %cst_96 : f32 to vector<8x1xf32>
    %249 = arith.divf %247, %248 : vector<8x1xf32>
    %250 = vector.broadcast %242 : vector<8x1xf32> to vector<8x32xf32>
    %251 = arith.subf %67, %250 : vector<8x32xf32>
    %cst_97 = arith.constant 9.99999974E-6 : f32
    %252 = vector.broadcast %cst_97 : f32 to vector<8x1xf32>
    %253 = arith.addf %249, %252 : vector<8x1xf32>
    %254 = math.rsqrt %253 : vector<8x1xf32>
    %255 = vector.broadcast %254 : vector<8x1xf32> to vector<8x32xf32>
    %256 = arith.mulf %251, %255 : vector<8x32xf32>
    %257 = vector.broadcast %236 : vector<1x32xf32> to vector<8x32xf32>
    %258 = arith.mulf %256, %257 : vector<8x32xf32>
    %259 = vector.broadcast %238 : vector<1x32xf32> to vector<8x32xf32>
    %260 = arith.addf %258, %259 : vector<8x32xf32>
    %261 = vector.extract_strided_slice %234 {offsets = [0, 0, 0], sizes = [1, 1, 32], strides = [1, 1, 1]} : vector<4x1x32xf32> to vector<1x1x32xf32>
    %262 = vector.shape_cast %261 : vector<1x1x32xf32> to vector<1x32xf32>
    %263 = vector.extract_strided_slice %234 {offsets = [1, 0, 0], sizes = [1, 1, 32], strides = [1, 1, 1]} : vector<4x1x32xf32> to vector<1x1x32xf32>
    %264 = vector.shape_cast %263 : vector<1x1x32xf32> to vector<1x32xf32>
    %cst_98 = arith.constant dense<0.000000e+00> : vector<8xf32>
    %265 = vector.multi_reduction <add>, %233, %cst_98 [1] : vector<8x32xf32> to vector<8xf32>
    %266 = vector.shape_cast %265 : vector<8xf32> to vector<8x1xf32>
    %cst_99 = arith.constant 3.200000e+01 : f32
    %267 = vector.broadcast %cst_99 : f32 to vector<8x1xf32>
    %268 = arith.divf %266, %267 : vector<8x1xf32>
    %269 = vector.broadcast %268 : vector<8x1xf32> to vector<8x32xf32>
    %270 = arith.subf %233, %269 : vector<8x32xf32>
    %271 = arith.mulf %270, %270 : vector<8x32xf32>
    %cst_100 = arith.constant dense<0.000000e+00> : vector<8xf32>
    %272 = vector.multi_reduction <add>, %271, %cst_100 [1] : vector<8x32xf32> to vector<8xf32>
    %273 = vector.shape_cast %272 : vector<8xf32> to vector<8x1xf32>
    %cst_101 = arith.constant 3.200000e+01 : f32
    %274 = vector.broadcast %cst_101 : f32 to vector<8x1xf32>
    %275 = arith.divf %273, %274 : vector<8x1xf32>
    %276 = vector.broadcast %268 : vector<8x1xf32> to vector<8x32xf32>
    %277 = arith.subf %233, %276 : vector<8x32xf32>
    %cst_102 = arith.constant 9.99999974E-6 : f32
    %278 = vector.broadcast %cst_102 : f32 to vector<8x1xf32>
    %279 = arith.addf %275, %278 : vector<8x1xf32>
    %280 = math.rsqrt %279 : vector<8x1xf32>
    %281 = vector.broadcast %280 : vector<8x1xf32> to vector<8x32xf32>
    %282 = arith.mulf %277, %281 : vector<8x32xf32>
    %283 = vector.broadcast %262 : vector<1x32xf32> to vector<8x32xf32>
    %284 = arith.mulf %282, %283 : vector<8x32xf32>
    %285 = vector.broadcast %264 : vector<1x32xf32> to vector<8x32xf32>
    %286 = arith.addf %284, %285 : vector<8x32xf32>
    %287 = arith.truncf %260 : vector<8x32xf32> to vector<8x32xbf16>
    %c0_103 = arith.constant 0 : index
    %c0_104 = arith.constant 0 : index
    %288 = vector.load %arg23[%c0_103, %c0_104] : memref<32x32xbf16, #tpu.memory_space<vmem>>, vector<32x32xbf16>
    %cst_105 = arith.constant dense<0.000000e+00> : vector<8x32xf32>
    %289 = tpu.matmul %287, %288, %cst_105 {dimension_numbers = #tpu.dot_dimension_numbers<[1], [0], [0], [1], [0, 0, 1, 1], [], []>} : vector<8x32xbf16>, vector<32x32xbf16>, vector<8x32xf32> -> vector<8x32xf32>
    %c0_106 = arith.constant 0 : index
    %c0_107 = arith.constant 0 : index
    %290 = vector.load %arg25[%c0_106, %c0_107] : memref<1x32xf32, #tpu.memory_space<vmem>>, vector<1x32xf32>
    %291 = vector.broadcast %290 : vector<1x32xf32> to vector<8x32xf32>
    %292 = arith.addf %289, %291 : vector<8x32xf32>
    %293 = arith.truncf %286 : vector<8x32xf32> to vector<8x32xbf16>
    %c0_108 = arith.constant 0 : index
    %c0_109 = arith.constant 0 : index
    %294 = vector.load %arg24[%c0_108, %c0_109] : memref<32x64xbf16, #tpu.memory_space<vmem>>, vector<32x64xbf16>
    %cst_110 = arith.constant dense<0.000000e+00> : vector<8x64xf32>
    %295 = tpu.matmul %293, %294, %cst_110 {dimension_numbers = #tpu.dot_dimension_numbers<[1], [0], [0], [1], [0, 0, 1, 1], [], []>} : vector<8x32xbf16>, vector<32x64xbf16>, vector<8x64xf32> -> vector<8x64xf32>
    %c0_111 = arith.constant 0 : index
    %c0_112 = arith.constant 0 : index
    %296 = vector.load %arg26[%c0_111, %c0_112] : memref<1x64xf32, #tpu.memory_space<vmem>>, vector<1x64xf32>
    %297 = vector.broadcast %296 : vector<1x64xf32> to vector<8x64xf32>
    %298 = arith.addf %295, %297 : vector<8x64xf32>
    %299 = vector.extract_strided_slice %292 {offsets = [0, 0], sizes = [8, 8], strides = [1, 1]} : vector<8x32xf32> to vector<8x8xf32>
    %300 = vector.extract_strided_slice %292 {offsets = [0, 8], sizes = [8, 8], strides = [1, 1]} : vector<8x32xf32> to vector<8x8xf32>
    %301 = vector.extract_strided_slice %292 {offsets = [0, 16], sizes = [8, 8], strides = [1, 1]} : vector<8x32xf32> to vector<8x8xf32>
    %302 = vector.extract_strided_slice %292 {offsets = [0, 24], sizes = [8, 8], strides = [1, 1]} : vector<8x32xf32> to vector<8x8xf32>
    %303 = vector.shape_cast %299 : vector<8x8xf32> to vector<1x8x8xf32>
    %304 = vector.shape_cast %300 : vector<8x8xf32> to vector<1x8x8xf32>
    %305 = vector.shape_cast %301 : vector<8x8xf32> to vector<1x8x8xf32>
    %306 = vector.shape_cast %302 : vector<8x8xf32> to vector<1x8x8xf32>
    %307 = tpu.concatenate %303, %304, %305, %306 in 0 : vector<1x8x8xf32>, vector<1x8x8xf32>, vector<1x8x8xf32>, vector<1x8x8xf32> -> vector<4x8x8xf32>
    %308 = vector.extract_strided_slice %298 {offsets = [0, 0], sizes = [8, 8], strides = [1, 1]} : vector<8x64xf32> to vector<8x8xf32>
    %309 = vector.extract_strided_slice %298 {offsets = [0, 8], sizes = [8, 8], strides = [1, 1]} : vector<8x64xf32> to vector<8x8xf32>
    %310 = vector.extract_strided_slice %298 {offsets = [0, 16], sizes = [8, 8], strides = [1, 1]} : vector<8x64xf32> to vector<8x8xf32>
    %311 = vector.extract_strided_slice %298 {offsets = [0, 24], sizes = [8, 8], strides = [1, 1]} : vector<8x64xf32> to vector<8x8xf32>
    %312 = vector.shape_cast %308 : vector<8x8xf32> to vector<1x8x8xf32>
    %313 = vector.shape_cast %309 : vector<8x8xf32> to vector<1x8x8xf32>
    %314 = vector.shape_cast %310 : vector<8x8xf32> to vector<1x8x8xf32>
    %315 = vector.shape_cast %311 : vector<8x8xf32> to vector<1x8x8xf32>
    %316 = tpu.concatenate %312, %313, %314, %315 in 0 : vector<1x8x8xf32>, vector<1x8x8xf32>, vector<1x8x8xf32>, vector<1x8x8xf32> -> vector<4x8x8xf32>
    %317 = vector.extract_strided_slice %298 {offsets = [0, 32], sizes = [8, 8], strides = [1, 1]} : vector<8x64xf32> to vector<8x8xf32>
    %318 = vector.extract_strided_slice %298 {offsets = [0, 40], sizes = [8, 8], strides = [1, 1]} : vector<8x64xf32> to vector<8x8xf32>
    %319 = vector.extract_strided_slice %298 {offsets = [0, 48], sizes = [8, 8], strides = [1, 1]} : vector<8x64xf32> to vector<8x8xf32>
    %320 = vector.extract_strided_slice %298 {offsets = [0, 56], sizes = [8, 8], strides = [1, 1]} : vector<8x64xf32> to vector<8x8xf32>
    %321 = vector.shape_cast %317 : vector<8x8xf32> to vector<1x8x8xf32>
    %322 = vector.shape_cast %318 : vector<8x8xf32> to vector<1x8x8xf32>
    %323 = vector.shape_cast %319 : vector<8x8xf32> to vector<1x8x8xf32>
    %324 = vector.shape_cast %320 : vector<8x8xf32> to vector<1x8x8xf32>
    %325 = tpu.concatenate %321, %322, %323, %324 in 0 : vector<1x8x8xf32>, vector<1x8x8xf32>, vector<1x8x8xf32>, vector<1x8x8xf32> -> vector<4x8x8xf32>
    %326 = arith.truncf %307 : vector<4x8x8xf32> to vector<4x8x8xbf16>
    %327 = arith.truncf %316 : vector<4x8x8xf32> to vector<4x8x8xbf16>
    "tpu.trace_start"() <{level = 10 : i32, message = "hqe,hke->hqk"}> : () -> ()
    %cst_113 = arith.constant dense<0.000000e+00> : vector<4x8x8xf32>
    %328 = tpu.matmul %326, %327, %cst_113 {dimension_numbers = #tpu.dot_dimension_numbers<[2], [2], [1], [1], [0, 0, 0, 1, 1, 1], [0], [0]>} : vector<4x8x8xbf16>, vector<4x8x8xbf16>, vector<4x8x8xf32> -> vector<4x8x8xf32>
    "tpu.trace_stop"() : () -> ()
    %cst_114 = arith.constant 0.353553385 : f32
    %329 = vector.broadcast %cst_114 : f32 to vector<4x8x8xf32>
    %330 = arith.mulf %328, %329 : vector<4x8x8xf32>
    %331 = vector.shape_cast %9 : vector<8x8xf32> to vector<1x8x8xf32>
    %332 = vector.broadcast %331 : vector<1x8x8xf32> to vector<4x8x8xf32>
    %333 = arith.addf %330, %332 : vector<4x8x8xf32>
    %cst_115 = arith.constant dense<0xFF800000> : vector<4x8xf32>
    %334 = vector.multi_reduction <maximumf>, %333, %cst_115 [2] : vector<4x8x8xf32> to vector<4x8xf32>
    %335 = vector.shape_cast %334 : vector<4x8xf32> to vector<4x8x1xf32>
    %336 = vector.broadcast %335 : vector<4x8x1xf32> to vector<4x8x8xf32>
    %337 = arith.subf %333, %336 : vector<4x8x8xf32>
    %338 = math.exp %337 : vector<4x8x8xf32>
    %cst_116 = arith.constant dense<0.000000e+00> : vector<4x8xf32>
    %339 = vector.multi_reduction <add>, %338, %cst_116 [2] : vector<4x8x8xf32> to vector<4x8xf32>
    %340 = vector.shape_cast %339 : vector<4x8xf32> to vector<4x8x1xf32>
    %341 = tpu.reciprocal %340 {approx = true} : vector<4x8x1xf32> -> vector<4x8x1xf32>
    %342 = vector.broadcast %341 : vector<4x8x1xf32> to vector<4x8x8xf32>
    %343 = arith.mulf %338, %342 : vector<4x8x8xf32>
    %344 = arith.truncf %343 : vector<4x8x8xf32> to vector<4x8x8xbf16>
    %345 = arith.truncf %325 : vector<4x8x8xf32> to vector<4x8x8xbf16>
    "tpu.trace_start"() <{level = 10 : i32, message = "hqk,hke->hqe"}> : () -> ()
    %cst_117 = arith.constant dense<0.000000e+00> : vector<4x8x8xf32>
    %346 = tpu.matmul %344, %345, %cst_117 {dimension_numbers = #tpu.dot_dimension_numbers<[2], [1], [1], [2], [0, 0, 0, 1, 1, 2], [0], [0]>} : vector<4x8x8xbf16>, vector<4x8x8xbf16>, vector<4x8x8xf32> -> vector<4x8x8xf32>
    "tpu.trace_stop"() : () -> ()
    %347 = arith.truncf %346 : vector<4x8x8xf32> to vector<4x8x8xbf16>
    %c0_118 = arith.constant 0 : index
    %c0_119 = arith.constant 0 : index
    %c0_120 = arith.constant 0 : index
    %348 = vector.load %arg27[%c0_118, %c0_119, %c0_120] : memref<4x8x32xbf16, #tpu.memory_space<vmem>>, vector<4x8x32xbf16>
    "tpu.trace_start"() <{level = 10 : i32, message = "hqe,hed->hqd"}> : () -> ()
    %cst_121 = arith.constant dense<0.000000e+00> : vector<4x8x32xf32>
    %349 = tpu.matmul %347, %348, %cst_121 {dimension_numbers = #tpu.dot_dimension_numbers<[2], [1], [1], [2], [0, 0, 0, 1, 1, 2], [0], [0]>} : vector<4x8x8xbf16>, vector<4x8x32xbf16>, vector<4x8x32xf32> -> vector<4x8x32xf32>
    "tpu.trace_stop"() : () -> ()
    %cst_122 = arith.constant dense<0.000000e+00> : vector<8x32xf32>
    %350 = vector.multi_reduction <add>, %349, %cst_122 [0] : vector<4x8x32xf32> to vector<8x32xf32>
    %c0_123 = arith.constant 0 : index
    %c0_124 = arith.constant 0 : index
    %351 = vector.load %arg28[%c0_123, %c0_124] : memref<1x32xf32, #tpu.memory_space<vmem>>, vector<1x32xf32>
    %352 = vector.broadcast %351 : vector<1x32xf32> to vector<8x32xf32>
    %353 = arith.addf %350, %352 : vector<8x32xf32>
    %354 = arith.addf %353, %260 : vector<8x32xf32>
    %355 = vector.extract_strided_slice %234 {offsets = [2, 0, 0], sizes = [1, 1, 32], strides = [1, 1, 1]} : vector<4x1x32xf32> to vector<1x1x32xf32>
    %356 = vector.shape_cast %355 : vector<1x1x32xf32> to vector<1x32xf32>
    %357 = vector.extract_strided_slice %234 {offsets = [3, 0, 0], sizes = [1, 1, 32], strides = [1, 1, 1]} : vector<4x1x32xf32> to vector<1x1x32xf32>
    %358 = vector.shape_cast %357 : vector<1x1x32xf32> to vector<1x32xf32>
    %cst_125 = arith.constant dense<0.000000e+00> : vector<8xf32>
    %359 = vector.multi_reduction <add>, %354, %cst_125 [1] : vector<8x32xf32> to vector<8xf32>
    %360 = vector.shape_cast %359 : vector<8xf32> to vector<8x1xf32>
    %cst_126 = arith.constant 3.200000e+01 : f32
    %361 = vector.broadcast %cst_126 : f32 to vector<8x1xf32>
    %362 = arith.divf %360, %361 : vector<8x1xf32>
    %363 = vector.broadcast %362 : vector<8x1xf32> to vector<8x32xf32>
    %364 = arith.subf %354, %363 : vector<8x32xf32>
    %365 = arith.mulf %364, %364 : vector<8x32xf32>
    %cst_127 = arith.constant dense<0.000000e+00> : vector<8xf32>
    %366 = vector.multi_reduction <add>, %365, %cst_127 [1] : vector<8x32xf32> to vector<8xf32>
    %367 = vector.shape_cast %366 : vector<8xf32> to vector<8x1xf32>
    %cst_128 = arith.constant 3.200000e+01 : f32
    %368 = vector.broadcast %cst_128 : f32 to vector<8x1xf32>
    %369 = arith.divf %367, %368 : vector<8x1xf32>
    %370 = vector.broadcast %362 : vector<8x1xf32> to vector<8x32xf32>
    %371 = arith.subf %354, %370 : vector<8x32xf32>
    %cst_129 = arith.constant 9.99999974E-6 : f32
    %372 = vector.broadcast %cst_129 : f32 to vector<8x1xf32>
    %373 = arith.addf %369, %372 : vector<8x1xf32>
    %374 = math.rsqrt %373 : vector<8x1xf32>
    %375 = vector.broadcast %374 : vector<8x1xf32> to vector<8x32xf32>
    %376 = arith.mulf %371, %375 : vector<8x32xf32>
    %377 = vector.broadcast %356 : vector<1x32xf32> to vector<8x32xf32>
    %378 = arith.mulf %376, %377 : vector<8x32xf32>
    %379 = vector.broadcast %358 : vector<1x32xf32> to vector<8x32xf32>
    %380 = arith.addf %378, %379 : vector<8x32xf32>
    %381 = arith.truncf %380 : vector<8x32xf32> to vector<8x32xbf16>
    %c0_130 = arith.constant 0 : index
    %c0_131 = arith.constant 0 : index
    %c0_132 = arith.constant 0 : index
    %382 = vector.load %arg29[%c0_130, %c0_131, %c0_132] : memref<2x32x32xbf16, #tpu.memory_space<vmem>>, vector<1x32x32xbf16>
    %383 = vector.shape_cast %382 : vector<1x32x32xbf16> to vector<32x32xbf16>
    %cst_133 = arith.constant dense<0.000000e+00> : vector<8x32xf32>
    %384 = tpu.matmul %381, %383, %cst_133 {dimension_numbers = #tpu.dot_dimension_numbers<[1], [0], [0], [1], [0, 0, 1, 1], [], []>} : vector<8x32xbf16>, vector<32x32xbf16>, vector<8x32xf32> -> vector<8x32xf32>
    %c0_134 = arith.constant 0 : index
    %c0_135 = arith.constant 0 : index
    %c0_136 = arith.constant 0 : index
    %385 = vector.load %arg30[%c0_134, %c0_135, %c0_136] : memref<2x1x32xf32, #tpu.memory_space<vmem>>, vector<1x1x32xf32>
    %386 = vector.shape_cast %385 : vector<1x1x32xf32> to vector<1x32xf32>
    %387 = vector.broadcast %386 : vector<1x32xf32> to vector<8x32xf32>
    %388 = arith.addf %384, %387 : vector<8x32xf32>
    %cst_137 = arith.constant 0.000000e+00 : f32
    %389 = vector.broadcast %cst_137 : f32 to vector<8x32xf32>
    %390 = arith.maximumf %388, %389 : vector<8x32xf32>
    %391 = arith.truncf %390 : vector<8x32xf32> to vector<8x32xbf16>
    %c1_138 = arith.constant 1 : index
    %c0_139 = arith.constant 0 : index
    %c0_140 = arith.constant 0 : index
    %392 = vector.load %arg29[%c1_138, %c0_139, %c0_140] : memref<2x32x32xbf16, #tpu.memory_space<vmem>>, vector<1x32x32xbf16>
    %393 = vector.shape_cast %392 : vector<1x32x32xbf16> to vector<32x32xbf16>
    %cst_141 = arith.constant dense<0.000000e+00> : vector<8x32xf32>
    %394 = tpu.matmul %391, %393, %cst_141 {dimension_numbers = #tpu.dot_dimension_numbers<[1], [0], [0], [1], [0, 0, 1, 1], [], []>} : vector<8x32xbf16>, vector<32x32xbf16>, vector<8x32xf32> -> vector<8x32xf32>
    %c1_142 = arith.constant 1 : index
    %c0_143 = arith.constant 0 : index
    %c0_144 = arith.constant 0 : index
    %395 = vector.load %arg30[%c1_142, %c0_143, %c0_144] : memref<2x1x32xf32, #tpu.memory_space<vmem>>, vector<1x1x32xf32>
    %396 = vector.shape_cast %395 : vector<1x1x32xf32> to vector<1x32xf32>
    %397 = vector.broadcast %396 : vector<1x32xf32> to vector<8x32xf32>
    %398 = arith.addf %394, %397 : vector<8x32xf32>
    %399 = arith.addf %398, %380 : vector<8x32xf32>
    %c0_145 = arith.constant 0 : index
    %c0_146 = arith.constant 0 : index
    %c0_147 = arith.constant 0 : index
    %400 = vector.load %arg22[%c0_145, %c0_146, %c0_147] : memref<4x1x32xf32, #tpu.memory_space<vmem>>, vector<4x1x32xf32>
    %401 = vector.extract_strided_slice %400 {offsets = [0, 0, 0], sizes = [1, 1, 32], strides = [1, 1, 1]} : vector<4x1x32xf32> to vector<1x1x32xf32>
    %402 = vector.shape_cast %401 : vector<1x1x32xf32> to vector<1x32xf32>
    %403 = vector.extract_strided_slice %400 {offsets = [1, 0, 0], sizes = [1, 1, 32], strides = [1, 1, 1]} : vector<4x1x32xf32> to vector<1x1x32xf32>
    %404 = vector.shape_cast %403 : vector<1x1x32xf32> to vector<1x32xf32>
    %cst_148 = arith.constant dense<0.000000e+00> : vector<8xf32>
    %405 = vector.multi_reduction <add>, %399, %cst_148 [1] : vector<8x32xf32> to vector<8xf32>
    %406 = vector.shape_cast %405 : vector<8xf32> to vector<8x1xf32>
    %cst_149 = arith.constant 3.200000e+01 : f32
    %407 = vector.broadcast %cst_149 : f32 to vector<8x1xf32>
    %408 = arith.divf %406, %407 : vector<8x1xf32>
    %409 = vector.broadcast %408 : vector<8x1xf32> to vector<8x32xf32>
    %410 = arith.subf %399, %409 : vector<8x32xf32>
    %411 = arith.mulf %410, %410 : vector<8x32xf32>
    %cst_150 = arith.constant dense<0.000000e+00> : vector<8xf32>
    %412 = vector.multi_reduction <add>, %411, %cst_150 [1] : vector<8x32xf32> to vector<8xf32>
    %413 = vector.shape_cast %412 : vector<8xf32> to vector<8x1xf32>
    %cst_151 = arith.constant 3.200000e+01 : f32
    %414 = vector.broadcast %cst_151 : f32 to vector<8x1xf32>
    %415 = arith.divf %413, %414 : vector<8x1xf32>
    %416 = vector.broadcast %408 : vector<8x1xf32> to vector<8x32xf32>
    %417 = arith.subf %399, %416 : vector<8x32xf32>
    %cst_152 = arith.constant 9.99999974E-6 : f32
    %418 = vector.broadcast %cst_152 : f32 to vector<8x1xf32>
    %419 = arith.addf %415, %418 : vector<8x1xf32>
    %420 = math.rsqrt %419 : vector<8x1xf32>
    %421 = vector.broadcast %420 : vector<8x1xf32> to vector<8x32xf32>
    %422 = arith.mulf %417, %421 : vector<8x32xf32>
    %423 = vector.broadcast %402 : vector<1x32xf32> to vector<8x32xf32>
    %424 = arith.mulf %422, %423 : vector<8x32xf32>
    %425 = vector.broadcast %404 : vector<1x32xf32> to vector<8x32xf32>
    %426 = arith.addf %424, %425 : vector<8x32xf32>
    %427 = vector.extract_strided_slice %400 {offsets = [0, 0, 0], sizes = [1, 1, 32], strides = [1, 1, 1]} : vector<4x1x32xf32> to vector<1x1x32xf32>
    %428 = vector.shape_cast %427 : vector<1x1x32xf32> to vector<1x32xf32>
    %429 = vector.extract_strided_slice %400 {offsets = [1, 0, 0], sizes = [1, 1, 32], strides = [1, 1, 1]} : vector<4x1x32xf32> to vector<1x1x32xf32>
    %430 = vector.shape_cast %429 : vector<1x1x32xf32> to vector<1x32xf32>
    %cst_153 = arith.constant dense<0.000000e+00> : vector<8xf32>
    %431 = vector.multi_reduction <add>, %233, %cst_153 [1] : vector<8x32xf32> to vector<8xf32>
    %432 = vector.shape_cast %431 : vector<8xf32> to vector<8x1xf32>
    %cst_154 = arith.constant 3.200000e+01 : f32
    %433 = vector.broadcast %cst_154 : f32 to vector<8x1xf32>
    %434 = arith.divf %432, %433 : vector<8x1xf32>
    %435 = vector.broadcast %434 : vector<8x1xf32> to vector<8x32xf32>
    %436 = arith.subf %233, %435 : vector<8x32xf32>
    %437 = arith.mulf %436, %436 : vector<8x32xf32>
    %cst_155 = arith.constant dense<0.000000e+00> : vector<8xf32>
    %438 = vector.multi_reduction <add>, %437, %cst_155 [1] : vector<8x32xf32> to vector<8xf32>
    %439 = vector.shape_cast %438 : vector<8xf32> to vector<8x1xf32>
    %cst_156 = arith.constant 3.200000e+01 : f32
    %440 = vector.broadcast %cst_156 : f32 to vector<8x1xf32>
    %441 = arith.divf %439, %440 : vector<8x1xf32>
    %442 = vector.broadcast %434 : vector<8x1xf32> to vector<8x32xf32>
    %443 = arith.subf %233, %442 : vector<8x32xf32>
    %cst_157 = arith.constant 9.99999974E-6 : f32
    %444 = vector.broadcast %cst_157 : f32 to vector<8x1xf32>
    %445 = arith.addf %441, %444 : vector<8x1xf32>
    %446 = math.rsqrt %445 : vector<8x1xf32>
    %447 = vector.broadcast %446 : vector<8x1xf32> to vector<8x32xf32>
    %448 = arith.mulf %443, %447 : vector<8x32xf32>
    %449 = vector.broadcast %428 : vector<1x32xf32> to vector<8x32xf32>
    %450 = arith.mulf %448, %449 : vector<8x32xf32>
    %451 = vector.broadcast %430 : vector<1x32xf32> to vector<8x32xf32>
    %452 = arith.addf %450, %451 : vector<8x32xf32>
    %453 = arith.truncf %426 : vector<8x32xf32> to vector<8x32xbf16>
    %c0_158 = arith.constant 0 : index
    %c0_159 = arith.constant 0 : index
    %454 = vector.load %arg23[%c0_158, %c0_159] : memref<32x32xbf16, #tpu.memory_space<vmem>>, vector<32x32xbf16>
    %cst_160 = arith.constant dense<0.000000e+00> : vector<8x32xf32>
    %455 = tpu.matmul %453, %454, %cst_160 {dimension_numbers = #tpu.dot_dimension_numbers<[1], [0], [0], [1], [0, 0, 1, 1], [], []>} : vector<8x32xbf16>, vector<32x32xbf16>, vector<8x32xf32> -> vector<8x32xf32>
    %c0_161 = arith.constant 0 : index
    %c0_162 = arith.constant 0 : index
    %456 = vector.load %arg25[%c0_161, %c0_162] : memref<1x32xf32, #tpu.memory_space<vmem>>, vector<1x32xf32>
    %457 = vector.broadcast %456 : vector<1x32xf32> to vector<8x32xf32>
    %458 = arith.addf %455, %457 : vector<8x32xf32>
    %459 = arith.truncf %452 : vector<8x32xf32> to vector<8x32xbf16>
    %c0_163 = arith.constant 0 : index
    %c0_164 = arith.constant 0 : index
    %460 = vector.load %arg24[%c0_163, %c0_164] : memref<32x64xbf16, #tpu.memory_space<vmem>>, vector<32x64xbf16>
    %cst_165 = arith.constant dense<0.000000e+00> : vector<8x64xf32>
    %461 = tpu.matmul %459, %460, %cst_165 {dimension_numbers = #tpu.dot_dimension_numbers<[1], [0], [0], [1], [0, 0, 1, 1], [], []>} : vector<8x32xbf16>, vector<32x64xbf16>, vector<8x64xf32> -> vector<8x64xf32>
    %c0_166 = arith.constant 0 : index
    %c0_167 = arith.constant 0 : index
    %462 = vector.load %arg26[%c0_166, %c0_167] : memref<1x64xf32, #tpu.memory_space<vmem>>, vector<1x64xf32>
    %463 = vector.broadcast %462 : vector<1x64xf32> to vector<8x64xf32>
    %464 = arith.addf %461, %463 : vector<8x64xf32>
    %465 = vector.extract_strided_slice %458 {offsets = [0, 0], sizes = [8, 8], strides = [1, 1]} : vector<8x32xf32> to vector<8x8xf32>
    %466 = vector.extract_strided_slice %458 {offsets = [0, 8], sizes = [8, 8], strides = [1, 1]} : vector<8x32xf32> to vector<8x8xf32>
    %467 = vector.extract_strided_slice %458 {offsets = [0, 16], sizes = [8, 8], strides = [1, 1]} : vector<8x32xf32> to vector<8x8xf32>
    %468 = vector.extract_strided_slice %458 {offsets = [0, 24], sizes = [8, 8], strides = [1, 1]} : vector<8x32xf32> to vector<8x8xf32>
    %469 = vector.shape_cast %465 : vector<8x8xf32> to vector<1x8x8xf32>
    %470 = vector.shape_cast %466 : vector<8x8xf32> to vector<1x8x8xf32>
    %471 = vector.shape_cast %467 : vector<8x8xf32> to vector<1x8x8xf32>
    %472 = vector.shape_cast %468 : vector<8x8xf32> to vector<1x8x8xf32>
    %473 = tpu.concatenate %469, %470, %471, %472 in 0 : vector<1x8x8xf32>, vector<1x8x8xf32>, vector<1x8x8xf32>, vector<1x8x8xf32> -> vector<4x8x8xf32>
    %474 = vector.extract_strided_slice %464 {offsets = [0, 0], sizes = [8, 8], strides = [1, 1]} : vector<8x64xf32> to vector<8x8xf32>
    %475 = vector.extract_strided_slice %464 {offsets = [0, 8], sizes = [8, 8], strides = [1, 1]} : vector<8x64xf32> to vector<8x8xf32>
    %476 = vector.extract_strided_slice %464 {offsets = [0, 16], sizes = [8, 8], strides = [1, 1]} : vector<8x64xf32> to vector<8x8xf32>
    %477 = vector.extract_strided_slice %464 {offsets = [0, 24], sizes = [8, 8], strides = [1, 1]} : vector<8x64xf32> to vector<8x8xf32>
    %478 = vector.shape_cast %474 : vector<8x8xf32> to vector<1x8x8xf32>
    %479 = vector.shape_cast %475 : vector<8x8xf32> to vector<1x8x8xf32>
    %480 = vector.shape_cast %476 : vector<8x8xf32> to vector<1x8x8xf32>
    %481 = vector.shape_cast %477 : vector<8x8xf32> to vector<1x8x8xf32>
    %482 = tpu.concatenate %478, %479, %480, %481 in 0 : vector<1x8x8xf32>, vector<1x8x8xf32>, vector<1x8x8xf32>, vector<1x8x8xf32> -> vector<4x8x8xf32>
    %483 = vector.extract_strided_slice %464 {offsets = [0, 32], sizes = [8, 8], strides = [1, 1]} : vector<8x64xf32> to vector<8x8xf32>
    %484 = vector.extract_strided_slice %464 {offsets = [0, 40], sizes = [8, 8], strides = [1, 1]} : vector<8x64xf32> to vector<8x8xf32>
    %485 = vector.extract_strided_slice %464 {offsets = [0, 48], sizes = [8, 8], strides = [1, 1]} : vector<8x64xf32> to vector<8x8xf32>
    %486 = vector.extract_strided_slice %464 {offsets = [0, 56], sizes = [8, 8], strides = [1, 1]} : vector<8x64xf32> to vector<8x8xf32>
    %487 = vector.shape_cast %483 : vector<8x8xf32> to vector<1x8x8xf32>
    %488 = vector.shape_cast %484 : vector<8x8xf32> to vector<1x8x8xf32>
    %489 = vector.shape_cast %485 : vector<8x8xf32> to vector<1x8x8xf32>
    %490 = vector.shape_cast %486 : vector<8x8xf32> to vector<1x8x8xf32>
    %491 = tpu.concatenate %487, %488, %489, %490 in 0 : vector<1x8x8xf32>, vector<1x8x8xf32>, vector<1x8x8xf32>, vector<1x8x8xf32> -> vector<4x8x8xf32>
    %492 = arith.truncf %473 : vector<4x8x8xf32> to vector<4x8x8xbf16>
    %493 = arith.truncf %482 : vector<4x8x8xf32> to vector<4x8x8xbf16>
    "tpu.trace_start"() <{level = 10 : i32, message = "hqe,hke->hqk"}> : () -> ()
    %cst_168 = arith.constant dense<0.000000e+00> : vector<4x8x8xf32>
    %494 = tpu.matmul %492, %493, %cst_168 {dimension_numbers = #tpu.dot_dimension_numbers<[2], [2], [1], [1], [0, 0, 0, 1, 1, 1], [0], [0]>} : vector<4x8x8xbf16>, vector<4x8x8xbf16>, vector<4x8x8xf32> -> vector<4x8x8xf32>
    "tpu.trace_stop"() : () -> ()
    %cst_169 = arith.constant 0.353553385 : f32
    %495 = vector.broadcast %cst_169 : f32 to vector<4x8x8xf32>
    %496 = arith.mulf %494, %495 : vector<4x8x8xf32>
    %497 = vector.shape_cast %9 : vector<8x8xf32> to vector<1x8x8xf32>
    %498 = vector.broadcast %497 : vector<1x8x8xf32> to vector<4x8x8xf32>
    %499 = arith.addf %496, %498 : vector<4x8x8xf32>
    %cst_170 = arith.constant dense<0xFF800000> : vector<4x8xf32>
    %500 = vector.multi_reduction <maximumf>, %499, %cst_170 [2] : vector<4x8x8xf32> to vector<4x8xf32>
    %501 = vector.shape_cast %500 : vector<4x8xf32> to vector<4x8x1xf32>
    %502 = vector.broadcast %501 : vector<4x8x1xf32> to vector<4x8x8xf32>
    %503 = arith.subf %499, %502 : vector<4x8x8xf32>
    %504 = math.exp %503 : vector<4x8x8xf32>
    %cst_171 = arith.constant dense<0.000000e+00> : vector<4x8xf32>
    %505 = vector.multi_reduction <add>, %504, %cst_171 [2] : vector<4x8x8xf32> to vector<4x8xf32>
    %506 = vector.shape_cast %505 : vector<4x8xf32> to vector<4x8x1xf32>
    %507 = tpu.reciprocal %506 {approx = true} : vector<4x8x1xf32> -> vector<4x8x1xf32>
    %508 = vector.broadcast %507 : vector<4x8x1xf32> to vector<4x8x8xf32>
    %509 = arith.mulf %504, %508 : vector<4x8x8xf32>
    %510 = arith.truncf %509 : vector<4x8x8xf32> to vector<4x8x8xbf16>
    %511 = arith.truncf %491 : vector<4x8x8xf32> to vector<4x8x8xbf16>
    "tpu.trace_start"() <{level = 10 : i32, message = "hqk,hke->hqe"}> : () -> ()
    %cst_172 = arith.constant dense<0.000000e+00> : vector<4x8x8xf32>
    %512 = tpu.matmul %510, %511, %cst_172 {dimension_numbers = #tpu.dot_dimension_numbers<[2], [1], [1], [2], [0, 0, 0, 1, 1, 2], [0], [0]>} : vector<4x8x8xbf16>, vector<4x8x8xbf16>, vector<4x8x8xf32> -> vector<4x8x8xf32>
    "tpu.trace_stop"() : () -> ()
    %513 = arith.truncf %512 : vector<4x8x8xf32> to vector<4x8x8xbf16>
    %c0_173 = arith.constant 0 : index
    %c0_174 = arith.constant 0 : index
    %c0_175 = arith.constant 0 : index
    %514 = vector.load %arg27[%c0_173, %c0_174, %c0_175] : memref<4x8x32xbf16, #tpu.memory_space<vmem>>, vector<4x8x32xbf16>
    "tpu.trace_start"() <{level = 10 : i32, message = "hqe,hed->hqd"}> : () -> ()
    %cst_176 = arith.constant dense<0.000000e+00> : vector<4x8x32xf32>
    %515 = tpu.matmul %513, %514, %cst_176 {dimension_numbers = #tpu.dot_dimension_numbers<[2], [1], [1], [2], [0, 0, 0, 1, 1, 2], [0], [0]>} : vector<4x8x8xbf16>, vector<4x8x32xbf16>, vector<4x8x32xf32> -> vector<4x8x32xf32>
    "tpu.trace_stop"() : () -> ()
    %cst_177 = arith.constant dense<0.000000e+00> : vector<8x32xf32>
    %516 = vector.multi_reduction <add>, %515, %cst_177 [0] : vector<4x8x32xf32> to vector<8x32xf32>
    %c0_178 = arith.constant 0 : index
    %c0_179 = arith.constant 0 : index
    %517 = vector.load %arg28[%c0_178, %c0_179] : memref<1x32xf32, #tpu.memory_space<vmem>>, vector<1x32xf32>
    %518 = vector.broadcast %517 : vector<1x32xf32> to vector<8x32xf32>
    %519 = arith.addf %516, %518 : vector<8x32xf32>
    %520 = arith.addf %519, %426 : vector<8x32xf32>
    %521 = vector.extract_strided_slice %400 {offsets = [2, 0, 0], sizes = [1, 1, 32], strides = [1, 1, 1]} : vector<4x1x32xf32> to vector<1x1x32xf32>
    %522 = vector.shape_cast %521 : vector<1x1x32xf32> to vector<1x32xf32>
    %523 = vector.extract_strided_slice %400 {offsets = [3, 0, 0], sizes = [1, 1, 32], strides = [1, 1, 1]} : vector<4x1x32xf32> to vector<1x1x32xf32>
    %524 = vector.shape_cast %523 : vector<1x1x32xf32> to vector<1x32xf32>
    %cst_180 = arith.constant dense<0.000000e+00> : vector<8xf32>
    %525 = vector.multi_reduction <add>, %520, %cst_180 [1] : vector<8x32xf32> to vector<8xf32>
    %526 = vector.shape_cast %525 : vector<8xf32> to vector<8x1xf32>
    %cst_181 = arith.constant 3.200000e+01 : f32
    %527 = vector.broadcast %cst_181 : f32 to vector<8x1xf32>
    %528 = arith.divf %526, %527 : vector<8x1xf32>
    %529 = vector.broadcast %528 : vector<8x1xf32> to vector<8x32xf32>
    %530 = arith.subf %520, %529 : vector<8x32xf32>
    %531 = arith.mulf %530, %530 : vector<8x32xf32>
    %cst_182 = arith.constant dense<0.000000e+00> : vector<8xf32>
    %532 = vector.multi_reduction <add>, %531, %cst_182 [1] : vector<8x32xf32> to vector<8xf32>
    %533 = vector.shape_cast %532 : vector<8xf32> to vector<8x1xf32>
    %cst_183 = arith.constant 3.200000e+01 : f32
    %534 = vector.broadcast %cst_183 : f32 to vector<8x1xf32>
    %535 = arith.divf %533, %534 : vector<8x1xf32>
    %536 = vector.broadcast %528 : vector<8x1xf32> to vector<8x32xf32>
    %537 = arith.subf %520, %536 : vector<8x32xf32>
    %cst_184 = arith.constant 9.99999974E-6 : f32
    %538 = vector.broadcast %cst_184 : f32 to vector<8x1xf32>
    %539 = arith.addf %535, %538 : vector<8x1xf32>
    %540 = math.rsqrt %539 : vector<8x1xf32>
    %541 = vector.broadcast %540 : vector<8x1xf32> to vector<8x32xf32>
    %542 = arith.mulf %537, %541 : vector<8x32xf32>
    %543 = vector.broadcast %522 : vector<1x32xf32> to vector<8x32xf32>
    %544 = arith.mulf %542, %543 : vector<8x32xf32>
    %545 = vector.broadcast %524 : vector<1x32xf32> to vector<8x32xf32>
    %546 = arith.addf %544, %545 : vector<8x32xf32>
    %547 = arith.truncf %546 : vector<8x32xf32> to vector<8x32xbf16>
    %c0_185 = arith.constant 0 : index
    %c0_186 = arith.constant 0 : index
    %c0_187 = arith.constant 0 : index
    %548 = vector.load %arg29[%c0_185, %c0_186, %c0_187] : memref<2x32x32xbf16, #tpu.memory_space<vmem>>, vector<1x32x32xbf16>
    %549 = vector.shape_cast %548 : vector<1x32x32xbf16> to vector<32x32xbf16>
    %cst_188 = arith.constant dense<0.000000e+00> : vector<8x32xf32>
    %550 = tpu.matmul %547, %549, %cst_188 {dimension_numbers = #tpu.dot_dimension_numbers<[1], [0], [0], [1], [0, 0, 1, 1], [], []>} : vector<8x32xbf16>, vector<32x32xbf16>, vector<8x32xf32> -> vector<8x32xf32>
    %c0_189 = arith.constant 0 : index
    %c0_190 = arith.constant 0 : index
    %c0_191 = arith.constant 0 : index
    %551 = vector.load %arg30[%c0_189, %c0_190, %c0_191] : memref<2x1x32xf32, #tpu.memory_space<vmem>>, vector<1x1x32xf32>
    %552 = vector.shape_cast %551 : vector<1x1x32xf32> to vector<1x32xf32>
    %553 = vector.broadcast %552 : vector<1x32xf32> to vector<8x32xf32>
    %554 = arith.addf %550, %553 : vector<8x32xf32>
    %cst_192 = arith.constant 0.000000e+00 : f32
    %555 = vector.broadcast %cst_192 : f32 to vector<8x32xf32>
    %556 = arith.maximumf %554, %555 : vector<8x32xf32>
    %557 = arith.truncf %556 : vector<8x32xf32> to vector<8x32xbf16>
    %c1_193 = arith.constant 1 : index
    %c0_194 = arith.constant 0 : index
    %c0_195 = arith.constant 0 : index
    %558 = vector.load %arg29[%c1_193, %c0_194, %c0_195] : memref<2x32x32xbf16, #tpu.memory_space<vmem>>, vector<1x32x32xbf16>
    %559 = vector.shape_cast %558 : vector<1x32x32xbf16> to vector<32x32xbf16>
    %cst_196 = arith.constant dense<0.000000e+00> : vector<8x32xf32>
    %560 = tpu.matmul %557, %559, %cst_196 {dimension_numbers = #tpu.dot_dimension_numbers<[1], [0], [0], [1], [0, 0, 1, 1], [], []>} : vector<8x32xbf16>, vector<32x32xbf16>, vector<8x32xf32> -> vector<8x32xf32>
    %c1_197 = arith.constant 1 : index
    %c0_198 = arith.constant 0 : index
    %c0_199 = arith.constant 0 : index
    %561 = vector.load %arg30[%c1_197, %c0_198, %c0_199] : memref<2x1x32xf32, #tpu.memory_space<vmem>>, vector<1x1x32xf32>
    %562 = vector.shape_cast %561 : vector<1x1x32xf32> to vector<1x32xf32>
    %563 = vector.broadcast %562 : vector<1x32xf32> to vector<8x32xf32>
    %564 = arith.addf %560, %563 : vector<8x32xf32>
    %565 = arith.addf %564, %546 : vector<8x32xf32>
    %c0_200 = arith.constant 0 : index
    %c0_201 = arith.constant 0 : index
    %566 = vector.load %arg31[%c0_200, %c0_201] : memref<1x32xf32, #tpu.memory_space<vmem>>, vector<1x32xf32>
    %cst_202 = arith.constant dense<0.000000e+00> : vector<1x8xf32>
    %567 = tpu.matmul %566, %565, %cst_202 {dimension_numbers = #tpu.dot_dimension_numbers<[1], [1], [0], [0], [0, 0, 1, 0], [], []>} : vector<1x32xf32>, vector<8x32xf32>, vector<1x8xf32> -> vector<1x8xf32>
    %c0_203 = arith.constant 0 : index
    %c0_204 = arith.constant 0 : index
    %568 = memref.load %arg32[%c0_203, %c0_204] : memref<1x1xf32, #tpu.memory_space<smem>>
    %569 = vector.broadcast %568 : f32 to vector<1x8xf32>
    %570 = arith.addf %567, %569 : vector<1x8xf32>
    %571 = arith.negf %570 : vector<1x8xf32>
    %572 = math.exp %571 : vector<1x8xf32>
    %cst_205 = arith.constant 1.000000e+00 : f32
    %573 = vector.broadcast %cst_205 : f32 to vector<1x8xf32>
    %574 = arith.addf %573, %572 : vector<1x8xf32>
    %575 = arith.divf %573, %574 : vector<1x8xf32>
    %c0_206 = arith.constant 0 : index
    %c0_207 = arith.constant 0 : index
    %c0_208 = arith.constant 0 : index
    %576 = vector.load %arg33[%c0_206, %c0_207, %c0_208] : memref<1x1x8xf32, #tpu.memory_space<vmem>>, vector<1x1x8xf32>
    %577 = vector.shape_cast %576 : vector<1x1x8xf32> to vector<1x8xf32>
    %578 = vector.shape_cast %575 : vector<1x8xf32> to vector<1x1x8xf32>
    tpu.vector_store %arg33[%c0_206, %c0_207, %c0_208], %578 {strides = array<i32>} : memref<1x1x8xf32, #tpu.memory_space<vmem>>, vector<1x1x8xf32>,
    return
  }
  func.func @transform_0(%arg0: i32) -> (i32, i32, i32) {
    %c0_i32 = arith.constant 0 : i32
    %c0_i32_0 = arith.constant 0 : i32
    %c0_i32_1 = arith.constant 0 : i32
    return %arg0, %c0_i32, %c0_i32_0 : i32, i32, i32
  }
  func.func @transform_1(%arg0: i32) -> (i32, i32, i32) {
    %c0_i32 = arith.constant 0 : i32
    %c0_i32_0 = arith.constant 0 : i32
    %c0_i32_1 = arith.constant 0 : i32
    return %arg0, %c0_i32, %c0_i32_0 : i32, i32, i32
  }
  func.func @transform_2(%arg0: i32) -> (i32, i32, i32) {
    %c0_i32 = arith.constant 0 : i32
    %c0_i32_0 = arith.constant 0 : i32
    %c0_i32_1 = arith.constant 0 : i32
    return %arg0, %c0_i32, %c0_i32_0 : i32, i32, i32
  }
  func.func @transform_3(%arg0: i32) -> (i32, i32, i32) {
    %c0_i32 = arith.constant 0 : i32
    %c0_i32_0 = arith.constant 0 : i32
    %c0_i32_1 = arith.constant 0 : i32
    return %arg0, %c0_i32, %c0_i32_0 : i32, i32, i32
  }
  func.func @transform_4(%arg0: i32) -> (i32, i32) {
    %c0_i32 = arith.constant 0 : i32
    %c0_i32_0 = arith.constant 0 : i32
    %c0_i32_1 = arith.constant 0 : i32
    return %c0_i32, %c0_i32_0 : i32, i32
  }
  func.func @transform_5(%arg0: i32) -> (i32, i32) {
    %c0_i32 = arith.constant 0 : i32
    %c0_i32_0 = arith.constant 0 : i32
    %c0_i32_1 = arith.constant 0 : i32
    return %c0_i32, %c0_i32_0 : i32, i32
  }
  func.func @transform_6(%arg0: i32) -> (i32, i32) {
    %c0_i32 = arith.constant 0 : i32
    %c0_i32_0 = arith.constant 0 : i32
    %c0_i32_1 = arith.constant 0 : i32
    return %c0_i32, %c0_i32_0 : i32, i32
  }
  func.func @transform_7(%arg0: i32) -> (i32, i32) {
    %c0_i32 = arith.constant 0 : i32
    %c0_i32_0 = arith.constant 0 : i32
    %c0_i32_1 = arith.constant 0 : i32
    return %c0_i32, %c0_i32_0 : i32, i32
  }
  func.func @transform_8(%arg0: i32) -> (i32, i32) {
    %c0_i32 = arith.constant 0 : i32
    %c0_i32_0 = arith.constant 0 : i32
    %c0_i32_1 = arith.constant 0 : i32
    return %c0_i32, %c0_i32_0 : i32, i32
  }
  func.func @transform_9(%arg0: i32) -> (i32, i32) {
    %c0_i32 = arith.constant 0 : i32
    %c0_i32_0 = arith.constant 0 : i32
    %c0_i32_1 = arith.constant 0 : i32
    return %c0_i32, %c0_i32_0 : i32, i32
  }
  func.func @transform_10(%arg0: i32) -> (i32, i32) {
    %c0_i32 = arith.constant 0 : i32
    %c0_i32_0 = arith.constant 0 : i32
    %c0_i32_1 = arith.constant 0 : i32
    return %c0_i32, %c0_i32_0 : i32, i32
  }
  func.func @transform_11(%arg0: i32) -> (i32, i32) {
    %c0_i32 = arith.constant 0 : i32
    %c0_i32_0 = arith.constant 0 : i32
    %c0_i32_1 = arith.constant 0 : i32
    return %c0_i32, %c0_i32_0 : i32, i32
  }
  func.func @transform_12(%arg0: i32) -> (i32, i32, i32) {
    %c0_i32 = arith.constant 0 : i32
    %c0_i32_0 = arith.constant 0 : i32
    %c0_i32_1 = arith.constant 0 : i32
    %c0_i32_2 = arith.constant 0 : i32
    return %c0_i32, %c0_i32_0, %c0_i32_1 : i32, i32, i32
  }
  func.func @transform_13(%arg0: i32) -> (i32, i32) {
    %c0_i32 = arith.constant 0 : i32
    %c0_i32_0 = arith.constant 0 : i32
    %c0_i32_1 = arith.constant 0 : i32
    return %c0_i32, %c0_i32_0 : i32, i32
  }
  func.func @transform_14(%arg0: i32) -> (i32, i32) {
    %c0_i32 = arith.constant 0 : i32
    %c0_i32_0 = arith.constant 0 : i32
    %c0_i32_1 = arith.constant 0 : i32
    return %c0_i32, %c0_i32_0 : i32, i32
  }
  func.func @transform_15(%arg0: i32) -> (i32, i32) {
    %c0_i32 = arith.constant 0 : i32
    %c0_i32_0 = arith.constant 0 : i32
    %c0_i32_1 = arith.constant 0 : i32
    return %c0_i32, %c0_i32_0 : i32, i32
  }
  func.func @transform_16(%arg0: i32) -> (i32, i32) {
    %c0_i32 = arith.constant 0 : i32
    %c0_i32_0 = arith.constant 0 : i32
    %c0_i32_1 = arith.constant 0 : i32
    return %c0_i32, %c0_i32_0 : i32, i32
  }
  func.func @transform_17(%arg0: i32) -> (i32, i32, i32) {
    %c0_i32 = arith.constant 0 : i32
    %c0_i32_0 = arith.constant 0 : i32
    %c0_i32_1 = arith.constant 0 : i32
    %c0_i32_2 = arith.constant 0 : i32
    return %c0_i32, %c0_i32_0, %c0_i32_1 : i32, i32, i32
  }
  func.func @transform_18(%arg0: i32) -> (i32, i32) {
    %c0_i32 = arith.constant 0 : i32
    %c0_i32_0 = arith.constant 0 : i32
    %c0_i32_1 = arith.constant 0 : i32
    return %c0_i32, %c0_i32_0 : i32, i32
  }
  func.func @transform_19(%arg0: i32) -> (i32, i32, i32) {
    %c0_i32 = arith.constant 0 : i32
    %c0_i32_0 = arith.constant 0 : i32
    %c0_i32_1 = arith.constant 0 : i32
    %c0_i32_2 = arith.constant 0 : i32
    return %c0_i32, %c0_i32_0, %c0_i32_1 : i32, i32, i32
  }
  func.func @transform_20(%arg0: i32) -> (i32, i32, i32) {
    %c0_i32 = arith.constant 0 : i32
    %c0_i32_0 = arith.constant 0 : i32
    %c0_i32_1 = arith.constant 0 : i32
    %c0_i32_2 = arith.constant 0 : i32
    return %c0_i32, %c0_i32_0, %c0_i32_1 : i32, i32, i32
  }
  func.func @transform_21(%arg0: i32) -> (i32, i32, i32) {
    %c0_i32 = arith.constant 0 : i32
    %c0_i32_0 = arith.constant 0 : i32
    %c0_i32_1 = arith.constant 0 : i32
    %c0_i32_2 = arith.constant 0 : i32
    return %c0_i32, %c0_i32_0, %c0_i32_1 : i32, i32, i32
  }
  func.func @transform_22(%arg0: i32) -> (i32, i32) {
    %c0_i32 = arith.constant 0 : i32
    %c0_i32_0 = arith.constant 0 : i32
    %c0_i32_1 = arith.constant 0 : i32
    return %c0_i32, %c0_i32_0 : i32, i32
  }
  func.func @transform_23(%arg0: i32) -> (i32, i32) {
    %c0_i32 = arith.constant 0 : i32
    %c0_i32_0 = arith.constant 0 : i32
    %c0_i32_1 = arith.constant 0 : i32
    return %c0_i32, %c0_i32_0 : i32, i32
  }
  func.func @transform_24(%arg0: i32) -> (i32, i32) {
    %c0_i32 = arith.constant 0 : i32
    %c0_i32_0 = arith.constant 0 : i32
    %c0_i32_1 = arith.constant 0 : i32
    return %c0_i32, %c0_i32_0 : i32, i32
  }
  func.func @transform_25(%arg0: i32) -> (i32, i32) {
    %c0_i32 = arith.constant 0 : i32
    %c0_i32_0 = arith.constant 0 : i32
    %c0_i32_1 = arith.constant 0 : i32
    return %c0_i32, %c0_i32_0 : i32, i32
  }
  func.func @transform_26(%arg0: i32) -> (i32, i32, i32) {
    %c0_i32 = arith.constant 0 : i32
    %c0_i32_0 = arith.constant 0 : i32
    %c0_i32_1 = arith.constant 0 : i32
    %c0_i32_2 = arith.constant 0 : i32
    return %c0_i32, %c0_i32_0, %c0_i32_1 : i32, i32, i32
  }
  func.func @transform_27(%arg0: i32) -> (i32, i32) {
    %c0_i32 = arith.constant 0 : i32
    %c0_i32_0 = arith.constant 0 : i32
    %c0_i32_1 = arith.constant 0 : i32
    return %c0_i32, %c0_i32_0 : i32, i32
  }
  func.func @transform_28(%arg0: i32) -> (i32, i32, i32) {
    %c0_i32 = arith.constant 0 : i32
    %c0_i32_0 = arith.constant 0 : i32
    %c0_i32_1 = arith.constant 0 : i32
    %c0_i32_2 = arith.constant 0 : i32
    return %c0_i32, %c0_i32_0, %c0_i32_1 : i32, i32, i32
  }
  func.func @transform_29(%arg0: i32) -> (i32, i32, i32) {
    %c0_i32 = arith.constant 0 : i32
    %c0_i32_0 = arith.constant 0 : i32
    %c0_i32_1 = arith.constant 0 : i32
    %c0_i32_2 = arith.constant 0 : i32
    return %c0_i32, %c0_i32_0, %c0_i32_1 : i32, i32, i32
  }
  func.func @transform_30(%arg0: i32) -> (i32, i32) {
    %c0_i32 = arith.constant 0 : i32
    %c0_i32_0 = arith.constant 0 : i32
    %c0_i32_1 = arith.constant 0 : i32
    return %c0_i32, %c0_i32_0 : i32, i32
  }
  func.func @transform_31(%arg0: i32) -> (i32, i32) {
    %c0_i32 = arith.constant 0 : i32
    %c0_i32_0 = arith.constant 0 : i32
    %c0_i32_1 = arith.constant 0 : i32
    return %c0_i32, %c0_i32_0 : i32, i32
  }
  func.func @transform_32(%arg0: i32) -> (i32, i32, i32) {
    %c0_i32 = arith.constant 0 : i32
    %c0_i32_0 = arith.constant 0 : i32
    %c0_i32_1 = arith.constant 0 : i32
    return %arg0, %c0_i32, %c0_i32_0 : i32, i32, i32
  }
}

</mosaic_0001>

<llo_original>
// kernel: ltmti_forward.1
$region0: #{ltmti_forward.1}
  #allocation0 [shape = 'u32[]', space=smem, size = 0x4, offset = 0x4, fixed_abs, tag = 'smem constant byte address 0x4 - core index']
  #allocation1 [shape = 'u32[144,128]{1,0:T(1,128)}', space=vmem, size = 0x12000, scoped, tag = 'internal scratch']
  #allocation2 [shape = 'f32[1,1]{1,0:T(1,128)S(6)}', space=smem, size = 0x200, scoped, tag = 'scoped memory for ltmti_forward.1']
  %s0 = inlined_call_operand.smem [shape: u32[33], index: -1, kind: input, shape index: {}]
  %s1 = sld [smem:[%s0]]
  %s2 = scalar_lea.smem %s0, 1
  %s3 = sld [smem:[%s2]]
  %s4 = scalar_lea.smem %s0, 2
  %s5 = sld [smem:[%s4]]
  %s6 = scalar_lea.smem %s0, 3
  %s7 = sld [smem:[%s6]]
  %s8 = scalar_lea.smem %s0, 4
  %s9 = sld [smem:[%s8]]
  %s10 = scalar_lea.smem %s0, 5
  %s11 = sld [smem:[%s10]]
  %s12 = scalar_lea.smem %s0, 6
  %s13 = sld [smem:[%s12]]
  %s14 = scalar_lea.smem %s0, 7
  %s15 = sld [smem:[%s14]]
  %s16 = scalar_lea.smem %s0, 8
  %s17 = sld [smem:[%s16]]
  %s18 = scalar_lea.smem %s0, 9
  %s19 = sld [smem:[%s18]]
  %s20 = scalar_lea.smem %s0, 10
  %s21 = sld [smem:[%s20]]
  %s22 = scalar_lea.smem %s0, 11
  %s23 = sld [smem:[%s22]]
  %s24 = scalar_lea.smem %s0, 12
  %s25 = sld [smem:[%s24]]
  %s26 = scalar_lea.smem %s0, 13
  %s27 = sld [smem:[%s26]]
  %s28 = scalar_lea.smem %s0, 14
  %s29 = sld [smem:[%s28]]
  %s30 = scalar_lea.smem %s0, 15
  %s31 = sld [smem:[%s30]]
  %s32 = scalar_lea.smem %s0, 16
  %s33 = sld [smem:[%s32]]
  %s34 = scalar_lea.smem %s0, 17
  %s35 = sld [smem:[%s34]]
  %s36 = scalar_lea.smem %s0, 18
  %s37 = sld [smem:[%s36]]
  %s38 = scalar_lea.smem %s0, 19
  %s39 = sld [smem:[%s38]]
  %s40 = scalar_lea.smem %s0, 20
  %s41 = sld [smem:[%s40]]
  %s42 = scalar_lea.smem %s0, 21
  %s43 = sld [smem:[%s42]]
  %s44 = scalar_lea.smem %s0, 22
  %s45 = sld [smem:[%s44]]
  %s46 = scalar_lea.smem %s0, 23
  %s47 = sld [smem:[%s46]]
  %s48 = scalar_lea.smem %s0, 24
  %s49 = sld [smem:[%s48]]
  %s50 = scalar_lea.smem %s0, 25
  %s51 = sld [smem:[%s50]]
  %s52 = scalar_lea.smem %s0, 26
  %s53 = sld [smem:[%s52]]
  %s54 = scalar_lea.smem %s0, 27
  %s55 = sld [smem:[%s54]]
  %s56 = scalar_lea.smem %s0, 28
  %s57 = sld [smem:[%s56]]
  %s58 = scalar_lea.smem %s0, 29
  %s59 = sld [smem:[%s58]]
  %s60 = scalar_lea.smem %s0, 30
  %s61 = sld [smem:[%s60]]
  %s62 = scalar_lea.smem %s0, 31
  %s63 = sld [smem:[%s62]]
  %s64 = scalar_lea.smem %s0, 32
  %s65 = sld [smem:[%s64]]
  %s66 = sld [smem:[#allocation0]]
  $region161: #{ltmti_forward.1} parent=0
    _
  %s68 = ssub.s32 1, %s66
  %s69 = scalar_select 0, %s68, %s66
  %70 = sst [smem:[#allocation2]] %s63
  $region1: #{ltmti_forward.1} parent=0
    #allocation3 [shape = 'u8[1024]{0}', space=vmem, size = 0x400, scoped, tag = 'output window, operand 0']
    #allocation4 [shape = 's32[2]{0}', space=sflag, size = 0x8, scoped, tag = 'scoped memory for ltmti_forward.1']
    %71 = vsyncpa [#allocation4], 0
    %s72 = scalar_lea.sflag [#allocation4], 1
    %73 = vsyncpa %s72, 0
    loop: start=0, step=1, limit=4
    $region2: #{ltmti_forward.1} parent=1 // loop_pre_header
      _
    $region3: #{ltmti_forward.1} parent=1 // loop_header
      %s75 = sphi 0, %s79
      %p76 = scmp.ge.s32.totalorder %s75, 4
      %s85 = sphi 0, %s87
      %s88 = sphi 0, %s85
      %s89 = sphi 0, %s88
      %s105 = sphi 0, %s89
      %s111 = sphi 0, %s113
      %s114 = sphi 0, %s111
      %s115 = sphi 0, %s114
      %s131 = sphi 0, %s115
      %s137 = sphi 0, %s139
      %s140 = sphi 0, %s137
      %s141 = sphi 0, %s140
      %s157 = sphi 0, %s141
      %s163 = sphi 0, %s165
      %s166 = sphi 0, %s163
      %s167 = sphi 0, %s166
      %s183 = sphi 0, %s167
      %s187 = sphi 0, %s187
      %s189 = sphi 0, %s187
      %s190 = sphi 0, %s189
      %s204 = sphi 0, %s190
      %s208 = sphi 0, %s208
      %s210 = sphi 0, %s208
      %s211 = sphi 0, %s210
      %s225 = sphi 0, %s211
      %s229 = sphi 0, %s229
      %s231 = sphi 0, %s229
      %s232 = sphi 0, %s231
      %s246 = sphi 0, %s232
      %s250 = sphi 0, %s250
      %s252 = sphi 0, %s250
      %s253 = sphi 0, %s252
      %s267 = sphi 0, %s253
      %s271 = sphi 0, %s271
      %s273 = sphi 0, %s271
      %s274 = sphi 0, %s273
      %s288 = sphi 0, %s274
      %s292 = sphi 0, %s292
      %s294 = sphi 0, %s292
      %s295 = sphi 0, %s294
      %s309 = sphi 0, %s295
      %s313 = sphi 0, %s313
      %s315 = sphi 0, %s313
      %s316 = sphi 0, %s315
      %s330 = sphi 0, %s316
      %s334 = sphi 0, %s334
      %s336 = sphi 0, %s334
      %s337 = sphi 0, %s336
      %s351 = sphi 0, %s337
      %s355 = sphi 0, %s355
      %s357 = sphi 0, %s355
      %s358 = sphi 0, %s357
      %s372 = sphi 0, %s358
      %s376 = sphi 0, %s376
      %s378 = sphi 0, %s376
      %s379 = sphi 0, %s378
      %s393 = sphi 0, %s379
      %s397 = sphi 0, %s397
      %s399 = sphi 0, %s397
      %s400 = sphi 0, %s399
      %s414 = sphi 0, %s400
      %s418 = sphi 0, %s418
      %s420 = sphi 0, %s418
      %s421 = sphi 0, %s420
      %s435 = sphi 0, %s421
      %s439 = sphi 0, %s439
      %s441 = sphi 0, %s439
      %s442 = sphi 0, %s441
      %s456 = sphi 0, %s442
      %s460 = sphi 0, %s460
      %s462 = sphi 0, %s460
      %s463 = sphi 0, %s462
      %s477 = sphi 0, %s463
      %s481 = sphi 0, %s481
      %s483 = sphi 0, %s481
      %s484 = sphi 0, %s483
      %s498 = sphi 0, %s484
      %s502 = sphi 0, %s502
      %s504 = sphi 0, %s502
      %s505 = sphi 0, %s504
      %s519 = sphi 0, %s505
      %s523 = sphi 0, %s523
      %s525 = sphi 0, %s523
      %s526 = sphi 0, %s525
      %s540 = sphi 0, %s526
      %s544 = sphi 0, %s544
      %s546 = sphi 0, %s544
      %s547 = sphi 0, %s546
      %s561 = sphi 0, %s547
      %s565 = sphi 0, %s565
      %s567 = sphi 0, %s565
      %s568 = sphi 0, %s567
      %s582 = sphi 0, %s568
      %s586 = sphi 0, %s586
      %s588 = sphi 0, %s586
      %s589 = sphi 0, %s588
      %s603 = sphi 0, %s589
      %s607 = sphi 0, %s607
      %s609 = sphi 0, %s607
      %s610 = sphi 0, %s609
      %s624 = sphi 0, %s610
      %s628 = sphi 0, %s628
      %s630 = sphi 0, %s628
      %s631 = sphi 0, %s630
      %s645 = sphi 0, %s631
      %s649 = sphi 0, %s649
      %s651 = sphi 0, %s649
      %s652 = sphi 0, %s651
      %s666 = sphi 0, %s652
      %s670 = sphi 0, %s670
      %s672 = sphi 0, %s670
      %s673 = sphi 0, %s672
      %s687 = sphi 0, %s673
      %s691 = sphi 0, %s691
      %s693 = sphi 0, %s691
      %s694 = sphi 0, %s693
      %s708 = sphi 0, %s694
      %s712 = sphi 0, %s712
      %s714 = sphi 0, %s712
      %s715 = sphi 0, %s714
      %s729 = sphi 0, %s715
      %s733 = sphi 0, %s733
      %s735 = sphi 0, %s733
      %s736 = sphi 0, %s735
      %s750 = sphi 0, %s736
      %s754 = sphi 0, %s754
      %s756 = sphi 0, %s754
      %s757 = sphi 0, %s756
      %s771 = sphi 0, %s757
      %s777 = sphi 0, %s779
      %s780 = sphi 0, %s777
      %s781 = sphi 0, %s780
      %s797 = sphi 0, %s781
    $region4: #{ltmti_forward.1} parent=1 // loop_header_branch
      %78 = sbr.rel (%p76) target = $region8
    $region5: #{ltmti_forward.1} parent=1 // loop_body
      %s80 = ssub.s32 %s75, 1
      %s81 = ssub.s32 %s75, 2
      %s82 = sadd.s32 %s75, 1
      %s83 = ssub.s32 %s75, %s82
      %p84 = scmp.eq.s32.totalorder %s83, 0
      %s86 = sadd.s32 %s85, 1
      %s87 = scalar_select %p84, %s85, %s86
      %p90 = pneg %p84
      %p91 = scmp.eq.s32.totalorder %s75, 1
      %p92 = por %p90, %p91
      %p93 = scmp.ne.s32.totalorder %s85, %s88
      %p94 = scmp.eq.s32.totalorder %s75, 0
      %p95 = por %p93, %p94
      %p96 = scmp.ne.s32.totalorder %s85, %s88
      %p97 = scmp.eq.s32.totalorder %s80, 1
      %p98 = por %p96, %p97
      %p99 = scmp.ne.s32.totalorder %s88, %s89
      %p100 = scmp.eq.s32.totalorder %s80, 0
      %p101 = por %p99, %p100
      %p102 = scmp.ne.s32.totalorder %s88, %s89
      %p103 = scmp.eq.s32.totalorder %s81, 1
      %p104 = por %p102, %p103
      %p106 = scmp.ne.s32.totalorder %s89, %s105
      %p107 = scmp.eq.s32.totalorder %s81, 0
      %p108 = por %p106, %p107
      %s109 = ssub.s32 %s75, %s82
      %p110 = scmp.eq.s32.totalorder %s109, 0
      %s112 = sadd.s32 %s111, 1
      %s113 = scalar_select %p110, %s111, %s112
      %p116 = pneg %p110
      %p117 = scmp.eq.s32.totalorder %s75, 1
      %p118 = por %p116, %p117
      %p119 = scmp.ne.s32.totalorder %s111, %s114
      %p120 = scmp.eq.s32.totalorder %s75, 0
      %p121 = por %p119, %p120
      %p122 = scmp.ne.s32.totalorder %s111, %s114
      %p123 = scmp.eq.s32.totalorder %s80, 1
      %p124 = por %p122, %p123
      %p125 = scmp.ne.s32.totalorder %s114, %s115
      %p126 = scmp.eq.s32.totalorder %s80, 0
      %p127 = por %p125, %p126
      %p128 = scmp.ne.s32.totalorder %s114, %s115
      %p129 = scmp.eq.s32.totalorder %s81, 1
      %p130 = por %p128, %p129
      %p132 = scmp.ne.s32.totalorder %s115, %s131
      %p133 = scmp.eq.s32.totalorder %s81, 0
      %p134 = por %p132, %p133
      %s135 = ssub.s32 %s75, %s82
      %p136 = scmp.eq.s32.totalorder %s135, 0
      %s138 = sadd.s32 %s137, 1
      %s139 = scalar_select %p136, %s137, %s138
      %p142 = pneg %p136
      %p143 = scmp.eq.s32.totalorder %s75, 1
      %p144 = por %p142, %p143
      %p145 = scmp.ne.s32.totalorder %s137, %s140
      %p146 = scmp.eq.s32.totalorder %s75, 0
      %p147 = por %p145, %p146
      %p148 = scmp.ne.s32.totalorder %s137, %s140
      %p149 = scmp.eq.s32.totalorder %s80, 1
      %p150 = por %p148, %p149
      %p151 = scmp.ne.s32.totalorder %s140, %s141
      %p152 = scmp.eq.s32.totalorder %s80, 0
      %p153 = por %p151, %p152
      %p154 = scmp.ne.s32.totalorder %s140, %s141
      %p155 = scmp.eq.s32.totalorder %s81, 1
      %p156 = por %p154, %p155
      %p158 = scmp.ne.s32.totalorder %s141, %s157
      %p159 = scmp.eq.s32.totalorder %s81, 0
      %p160 = por %p158, %p159
      %s161 = ssub.s32 %s75, %s82
      %p162 = scmp.eq.s32.totalorder %s161, 0
      %s164 = sadd.s32 %s163, 1
      %s165 = scalar_select %p162, %s163, %s164
      %p168 = pneg %p162
      %p169 = scmp.eq.s32.totalorder %s75, 1
      %p170 = por %p168, %p169
      %p171 = scmp.ne.s32.totalorder %s163, %s166
      %p172 = scmp.eq.s32.totalorder %s75, 0
      %p173 = por %p171, %p172
      %p174 = scmp.ne.s32.totalorder %s163, %s166
      %p175 = scmp.eq.s32.totalorder %s80, 1
      %p176 = por %p174, %p175
      %p177 = scmp.ne.s32.totalorder %s166, %s167
      %p178 = scmp.eq.s32.totalorder %s80, 0
      %p179 = por %p177, %p178
      %p180 = scmp.ne.s32.totalorder %s166, %s167
      %p181 = scmp.eq.s32.totalorder %s81, 1
      %p182 = por %p180, %p181
      %p184 = scmp.ne.s32.totalorder %s167, %s183
      %p185 = scmp.eq.s32.totalorder %s81, 0
      %p186 = por %p184, %p185
      %s188 = sadd.s32 %s187, 1
      %p191 = scmp.eq.s32.totalorder %s75, 1
      %p192 = scmp.ne.s32.totalorder %s187, %s189
      %p193 = scmp.eq.s32.totalorder %s75, 0
      %p194 = por %p192, %p193
      %p195 = scmp.ne.s32.totalorder %s187, %s189
      %p196 = scmp.eq.s32.totalorder %s80, 1
      %p197 = por %p195, %p196
      %p198 = scmp.ne.s32.totalorder %s189, %s190
      %p199 = scmp.eq.s32.totalorder %s80, 0
      %p200 = por %p198, %p199
      %p201 = scmp.ne.s32.totalorder %s189, %s190
      %p202 = scmp.eq.s32.totalorder %s81, 1
      %p203 = por %p201, %p202
      %p205 = scmp.ne.s32.totalorder %s190, %s204
      %p206 = scmp.eq.s32.totalorder %s81, 0
      %p207 = por %p205, %p206
      %s209 = sadd.s32 %s208, 1
      %p212 = scmp.eq.s32.totalorder %s75, 1
      %p213 = scmp.ne.s32.totalorder %s208, %s210
      %p214 = scmp.eq.s32.totalorder %s75, 0
      %p215 = por %p213, %p214
      %p216 = scmp.ne.s32.totalorder %s208, %s210
      %p217 = scmp.eq.s32.totalorder %s80, 1
      %p218 = por %p216, %p217
      %p219 = scmp.ne.s32.totalorder %s210, %s211
      %p220 = scmp.eq.s32.totalorder %s80, 0
      %p221 = por %p219, %p220
      %p222 = scmp.ne.s32.totalorder %s210, %s211
      %p223 = scmp.eq.s32.totalorder %s81, 1
      %p224 = por %p222, %p223
      %p226 = scmp.ne.s32.totalorder %s211, %s225
      %p227 = scmp.eq.s32.totalorder %s81, 0
      %p228 = por %p226, %p227
      %s230 = sadd.s32 %s229, 1
      %p233 = scmp.eq.s32.totalorder %s75, 1
      %p234 = scmp.ne.s32.totalorder %s229, %s231
      %p235 = scmp.eq.s32.totalorder %s75, 0
      %p236 = por %p234, %p235
      %p237 = scmp.ne.s32.totalorder %s229, %s231
      %p238 = scmp.eq.s32.totalorder %s80, 1
      %p239 = por %p237, %p238
      %p240 = scmp.ne.s32.totalorder %s231, %s232
      %p241 = scmp.eq.s32.totalorder %s80, 0
      %p242 = por %p240, %p241
      %p243 = scmp.ne.s32.totalorder %s231, %s232
      %p244 = scmp.eq.s32.totalorder %s81, 1
      %p245 = por %p243, %p244
      %p247 = scmp.ne.s32.totalorder %s232, %s246
      %p248 = scmp.eq.s32.totalorder %s81, 0
      %p249 = por %p247, %p248
      %s251 = sadd.s32 %s250, 1
      %p254 = scmp.eq.s32.totalorder %s75, 1
      %p255 = scmp.ne.s32.totalorder %s250, %s252
      %p256 = scmp.eq.s32.totalorder %s75, 0
      %p257 = por %p255, %p256
      %p258 = scmp.ne.s32.totalorder %s250, %s252
      %p259 = scmp.eq.s32.totalorder %s80, 1
      %p260 = por %p258, %p259
      %p261 = scmp.ne.s32.totalorder %s252, %s253
      %p262 = scmp.eq.s32.totalorder %s80, 0
      %p263 = por %p261, %p262
      %p264 = scmp.ne.s32.totalorder %s252, %s253
      %p265 = scmp.eq.s32.totalorder %s81, 1
      %p266 = por %p264, %p265
      %p268 = scmp.ne.s32.totalorder %s253, %s267
      %p269 = scmp.eq.s32.totalorder %s81, 0
      %p270 = por %p268, %p269
      %s272 = sadd.s32 %s271, 1
      %p275 = scmp.eq.s32.totalorder %s75, 1
      %p276 = scmp.ne.s32.totalorder %s271, %s273
      %p277 = scmp.eq.s32.totalorder %s75, 0
      %p278 = por %p276, %p277
      %p279 = scmp.ne.s32.totalorder %s271, %s273
      %p280 = scmp.eq.s32.totalorder %s80, 1
      %p281 = por %p279, %p280
      %p282 = scmp.ne.s32.totalorder %s273, %s274
      %p283 = scmp.eq.s32.totalorder %s80, 0
      %p284 = por %p282, %p283
      %p285 = scmp.ne.s32.totalorder %s273, %s274
      %p286 = scmp.eq.s32.totalorder %s81, 1
      %p287 = por %p285, %p286
      %p289 = scmp.ne.s32.totalorder %s274, %s288
      %p290 = scmp.eq.s32.totalorder %s81, 0
      %p291 = por %p289, %p290
      %s293 = sadd.s32 %s292, 1
      %p296 = scmp.eq.s32.totalorder %s75, 1
      %p297 = scmp.ne.s32.totalorder %s292, %s294
      %p298 = scmp.eq.s32.totalorder %s75, 0
      %p299 = por %p297, %p298
      %p300 = scmp.ne.s32.totalorder %s292, %s294
      %p301 = scmp.eq.s32.totalorder %s80, 1
      %p302 = por %p300, %p301
      %p303 = scmp.ne.s32.totalorder %s294, %s295
      %p304 = scmp.eq.s32.totalorder %s80, 0
      %p305 = por %p303, %p304
      %p306 = scmp.ne.s32.totalorder %s294, %s295
      %p307 = scmp.eq.s32.totalorder %s81, 1
      %p308 = por %p306, %p307
      %p310 = scmp.ne.s32.totalorder %s295, %s309
      %p311 = scmp.eq.s32.totalorder %s81, 0
      %p312 = por %p310, %p311
      %s314 = sadd.s32 %s313, 1
      %p317 = scmp.eq.s32.totalorder %s75, 1
      %p318 = scmp.ne.s32.totalorder %s313, %s315
      %p319 = scmp.eq.s32.totalorder %s75, 0
      %p320 = por %p318, %p319
      %p321 = scmp.ne.s32.totalorder %s313, %s315
      %p322 = scmp.eq.s32.totalorder %s80, 1
      %p323 = por %p321, %p322
      %p324 = scmp.ne.s32.totalorder %s315, %s316
      %p325 = scmp.eq.s32.totalorder %s80, 0
      %p326 = por %p324, %p325
      %p327 = scmp.ne.s32.totalorder %s315, %s316
      %p328 = scmp.eq.s32.totalorder %s81, 1
      %p329 = por %p327, %p328
      %p331 = scmp.ne.s32.totalorder %s316, %s330
      %p332 = scmp.eq.s32.totalorder %s81, 0
      %p333 = por %p331, %p332
      %s335 = sadd.s32 %s334, 1
      %p338 = scmp.eq.s32.totalorder %s75, 1
      %p339 = scmp.ne.s32.totalorder %s334, %s336
      %p340 = scmp.eq.s32.totalorder %s75, 0
      %p341 = por %p339, %p340
      %p342 = scmp.ne.s32.totalorder %s334, %s336
      %p343 = scmp.eq.s32.totalorder %s80, 1
      %p344 = por %p342, %p343
      %p345 = scmp.ne.s32.totalorder %s336, %s337
      %p346 = scmp.eq.s32.totalorder %s80, 0
      %p347 = por %p345, %p346
      %p348 = scmp.ne.s32.totalorder %s336, %s337
      %p349 = scmp.eq.s32.totalorder %s81, 1
      %p350 = por %p348, %p349
      %p352 = scmp.ne.s32.totalorder %s337, %s351
      %p353 = scmp.eq.s32.totalorder %s81, 0
      %p354 = por %p352, %p353
      %s356 = sadd.s32 %s355, 1
      %p359 = scmp.eq.s32.totalorder %s75, 1
      %p360 = scmp.ne.s32.totalorder %s355, %s357
      %p361 = scmp.eq.s32.totalorder %s75, 0
      %p362 = por %p360, %p361
      %p363 = scmp.ne.s32.totalorder %s355, %s357
      %p364 = scmp.eq.s32.totalorder %s80, 1
      %p365 = por %p363, %p364
      %p366 = scmp.ne.s32.totalorder %s357, %s358
      %p367 = scmp.eq.s32.totalorder %s80, 0
      %p368 = por %p366, %p367
      %p369 = scmp.ne.s32.totalorder %s357, %s358
      %p370 = scmp.eq.s32.totalorder %s81, 1
      %p371 = por %p369, %p370
      %p373 = scmp.ne.s32.totalorder %s358, %s372
      %p374 = scmp.eq.s32.totalorder %s81, 0
      %p375 = por %p373, %p374
      %s377 = sadd.s32 %s376, 1
      %p380 = scmp.eq.s32.totalorder %s75, 1
      %p381 = scmp.ne.s32.totalorder %s376, %s378
      %p382 = scmp.eq.s32.totalorder %s75, 0
      %p383 = por %p381, %p382
      %p384 = scmp.ne.s32.totalorder %s376, %s378
      %p385 = scmp.eq.s32.totalorder %s80, 1
      %p386 = por %p384, %p385
      %p387 = scmp.ne.s32.totalorder %s378, %s379
      %p388 = scmp.eq.s32.totalorder %s80, 0
      %p389 = por %p387, %p388
      %p390 = scmp.ne.s32.totalorder %s378, %s379
      %p391 = scmp.eq.s32.totalorder %s81, 1
      %p392 = por %p390, %p391
      %p394 = scmp.ne.s32.totalorder %s379, %s393
      %p395 = scmp.eq.s32.totalorder %s81, 0
      %p396 = por %p394, %p395
      %s398 = sadd.s32 %s397, 1
      %p401 = scmp.eq.s32.totalorder %s75, 1
      %p402 = scmp.ne.s32.totalorder %s397, %s399
      %p403 = scmp.eq.s32.totalorder %s75, 0
      %p404 = por %p402, %p403
      %p405 = scmp.ne.s32.totalorder %s397, %s399
      %p406 = scmp.eq.s32.totalorder %s80, 1
      %p407 = por %p405, %p406
      %p408 = scmp.ne.s32.totalorder %s399, %s400
      %p409 = scmp.eq.s32.totalorder %s80, 0
      %p410 = por %p408, %p409
      %p411 = scmp.ne.s32.totalorder %s399, %s400
      %p412 = scmp.eq.s32.totalorder %s81, 1
      %p413 = por %p411, %p412
      %p415 = scmp.ne.s32.totalorder %s400, %s414
      %p416 = scmp.eq.s32.totalorder %s81, 0
      %p417 = por %p415, %p416
      %s419 = sadd.s32 %s418, 1
      %p422 = scmp.eq.s32.totalorder %s75, 1
      %p423 = scmp.ne.s32.totalorder %s418, %s420
      %p424 = scmp.eq.s32.totalorder %s75, 0
      %p425 = por %p423, %p424
      %p426 = scmp.ne.s32.totalorder %s418, %s420
      %p427 = scmp.eq.s32.totalorder %s80, 1
      %p428 = por %p426, %p427
      %p429 = scmp.ne.s32.totalorder %s420, %s421
      %p430 = scmp.eq.s32.totalorder %s80, 0
      %p431 = por %p429, %p430
      %p432 = scmp.ne.s32.totalorder %s420, %s421
      %p433 = scmp.eq.s32.totalorder %s81, 1
      %p434 = por %p432, %p433
      %p436 = scmp.ne.s32.totalorder %s421, %s435
      %p437 = scmp.eq.s32.totalorder %s81, 0
      %p438 = por %p436, %p437
      %s440 = sadd.s32 %s439, 1
      %p443 = scmp.eq.s32.totalorder %s75, 1
      %p444 = scmp.ne.s32.totalorder %s439, %s441
      %p445 = scmp.eq.s32.totalorder %s75, 0
      %p446 = por %p444, %p445
      %p447 = scmp.ne.s32.totalorder %s439, %s441
      %p448 = scmp.eq.s32.totalorder %s80, 1
      %p449 = por %p447, %p448
      %p450 = scmp.ne.s32.totalorder %s441, %s442
      %p451 = scmp.eq.s32.totalorder %s80, 0
      %p452 = por %p450, %p451
      %p453 = scmp.ne.s32.totalorder %s441, %s442
      %p454 = scmp.eq.s32.totalorder %s81, 1
      %p455 = por %p453, %p454
      %p457 = scmp.ne.s32.totalorder %s442, %s456
      %p458 = scmp.eq.s32.totalorder %s81, 0
      %p459 = por %p457, %p458
      %s461 = sadd.s32 %s460, 1
      %p464 = scmp.eq.s32.totalorder %s75, 1
      %p465 = scmp.ne.s32.totalorder %s460, %s462
      %p466 = scmp.eq.s32.totalorder %s75, 0
      %p467 = por %p465, %p466
      %p468 = scmp.ne.s32.totalorder %s460, %s462
      %p469 = scmp.eq.s32.totalorder %s80, 1
      %p470 = por %p468, %p469
      %p471 = scmp.ne.s32.totalorder %s462, %s463
      %p472 = scmp.eq.s32.totalorder %s80, 0
      %p473 = por %p471, %p472
      %p474 = scmp.ne.s32.totalorder %s462, %s463
      %p475 = scmp.eq.s32.totalorder %s81, 1
      %p476 = por %p474, %p475
      %p478 = scmp.ne.s32.totalorder %s463, %s477
      %p479 = scmp.eq.s32.totalorder %s81, 0
      %p480 = por %p478, %p479
      %s482 = sadd.s32 %s481, 1
      %p485 = scmp.eq.s32.totalorder %s75, 1
      %p486 = scmp.ne.s32.totalorder %s481, %s483
      %p487 = scmp.eq.s32.totalorder %s75, 0
      %p488 = por %p486, %p487
      %p489 = scmp.ne.s32.totalorder %s481, %s483
      %p490 = scmp.eq.s32.totalorder %s80, 1
      %p491 = por %p489, %p490
      %p492 = scmp.ne.s32.totalorder %s483, %s484
      %p493 = scmp.eq.s32.totalorder %s80, 0
      %p494 = por %p492, %p493
      %p495 = scmp.ne.s32.totalorder %s483, %s484
      %p496 = scmp.eq.s32.totalorder %s81, 1
      %p497 = por %p495, %p496
      %p499 = scmp.ne.s32.totalorder %s484, %s498
      %p500 = scmp.eq.s32.totalorder %s81, 0
      %p501 = por %p499, %p500
      %s503 = sadd.s32 %s502, 1
      %p506 = scmp.eq.s32.totalorder %s75, 1
      %p507 = scmp.ne.s32.totalorder %s502, %s504
      %p508 = scmp.eq.s32.totalorder %s75, 0
      %p509 = por %p507, %p508
      %p510 = scmp.ne.s32.totalorder %s502, %s504
      %p511 = scmp.eq.s32.totalorder %s80, 1
      %p512 = por %p510, %p511
      %p513 = scmp.ne.s32.totalorder %s504, %s505
      %p514 = scmp.eq.s32.totalorder %s80, 0
      %p515 = por %p513, %p514
      %p516 = scmp.ne.s32.totalorder %s504, %s505
      %p517 = scmp.eq.s32.totalorder %s81, 1
      %p518 = por %p516, %p517
      %p520 = scmp.ne.s32.totalorder %s505, %s519
      %p521 = scmp.eq.s32.totalorder %s81, 0
      %p522 = por %p520, %p521
      %s524 = sadd.s32 %s523, 1
      %p527 = scmp.eq.s32.totalorder %s75, 1
      %p528 = scmp.ne.s32.totalorder %s523, %s525
      %p529 = scmp.eq.s32.totalorder %s75, 0
      %p530 = por %p528, %p529
      %p531 = scmp.ne.s32.totalorder %s523, %s525
      %p532 = scmp.eq.s32.totalorder %s80, 1
      %p533 = por %p531, %p532
      %p534 = scmp.ne.s32.totalorder %s525, %s526
      %p535 = scmp.eq.s32.totalorder %s80, 0
      %p536 = por %p534, %p535
      %p537 = scmp.ne.s32.totalorder %s525, %s526
      %p538 = scmp.eq.s32.totalorder %s81, 1
      %p539 = por %p537, %p538
      %p541 = scmp.ne.s32.totalorder %s526, %s540
      %p542 = scmp.eq.s32.totalorder %s81, 0
      %p543 = por %p541, %p542
      %s545 = sadd.s32 %s544, 1
      %p548 = scmp.eq.s32.totalorder %s75, 1
      %p549 = scmp.ne.s32.totalorder %s544, %s546
      %p550 = scmp.eq.s32.totalorder %s75, 0
      %p551 = por %p549, %p550
      %p552 = scmp.ne.s32.totalorder %s544, %s546
      %p553 = scmp.eq.s32.totalorder %s80, 1
      %p554 = por %p552, %p553
      %p555 = scmp.ne.s32.totalorder %s546, %s547
      %p556 = scmp.eq.s32.totalorder %s80, 0
      %p557 = por %p555, %p556
      %p558 = scmp.ne.s32.totalorder %s546, %s547
      %p559 = scmp.eq.s32.totalorder %s81, 1
      %p560 = por %p558, %p559
      %p562 = scmp.ne.s32.totalorder %s547, %s561
      %p563 = scmp.eq.s32.totalorder %s81, 0
      %p564 = por %p562, %p563
      %s566 = sadd.s32 %s565, 1
      %p569 = scmp.eq.s32.totalorder %s75, 1
      %p570 = scmp.ne.s32.totalorder %s565, %s567
      %p571 = scmp.eq.s32.totalorder %s75, 0
      %p572 = por %p570, %p571
      %p573 = scmp.ne.s32.totalorder %s565, %s567
      %p574 = scmp.eq.s32.totalorder %s80, 1
      %p575 = por %p573, %p574
      %p576 = scmp.ne.s32.totalorder %s567, %s568
      %p577 = scmp.eq.s32.totalorder %s80, 0
      %p578 = por %p576, %p577
      %p579 = scmp.ne.s32.totalorder %s567, %s568
      %p580 = scmp.eq.s32.totalorder %s81, 1
      %p581 = por %p579, %p580
      %p583 = scmp.ne.s32.totalorder %s568, %s582
      %p584 = scmp.eq.s32.totalorder %s81, 0
      %p585 = por %p583, %p584
      %s587 = sadd.s32 %s586, 1
      %p590 = scmp.eq.s32.totalorder %s75, 1
      %p591 = scmp.ne.s32.totalorder %s586, %s588
      %p592 = scmp.eq.s32.totalorder %s75, 0
      %p593 = por %p591, %p592
      %p594 = scmp.ne.s32.totalorder %s586, %s588
      %p595 = scmp.eq.s32.totalorder %s80, 1
      %p596 = por %p594, %p595
      %p597 = scmp.ne.s32.totalorder %s588, %s589
      %p598 = scmp.eq.s32.totalorder %s80, 0
      %p599 = por %p597, %p598
      %p600 = scmp.ne.s32.totalorder %s588, %s589
      %p601 = scmp.eq.s32.totalorder %s81, 1
      %p602 = por %p600, %p601
      %p604 = scmp.ne.s32.totalorder %s589, %s603
      %p605 = scmp.eq.s32.totalorder %s81, 0
      %p606 = por %p604, %p605
      %s608 = sadd.s32 %s607, 1
      %p611 = scmp.eq.s32.totalorder %s75, 1
      %p612 = scmp.ne.s32.totalorder %s607, %s609
      %p613 = scmp.eq.s32.totalorder %s75, 0
      %p614 = por %p612, %p613
      %p615 = scmp.ne.s32.totalorder %s607, %s609
      %p616 = scmp.eq.s32.totalorder %s80, 1
      %p617 = por %p615, %p616
      %p618 = scmp.ne.s32.totalorder %s609, %s610
      %p619 = scmp.eq.s32.totalorder %s80, 0
      %p620 = por %p618, %p619
      %p621 = scmp.ne.s32.totalorder %s609, %s610
      %p622 = scmp.eq.s32.totalorder %s81, 1
      %p623 = por %p621, %p622
      %p625 = scmp.ne.s32.totalorder %s610, %s624
      %p626 = scmp.eq.s32.totalorder %s81, 0
      %p627 = por %p625, %p626
      %s629 = sadd.s32 %s628, 1
      %p632 = scmp.eq.s32.totalorder %s75, 1
      %p633 = scmp.ne.s32.totalorder %s628, %s630
      %p634 = scmp.eq.s32.totalorder %s75, 0
      %p635 = por %p633, %p634
      %p636 = scmp.ne.s32.totalorder %s628, %s630
      %p637 = scmp.eq.s32.totalorder %s80, 1
      %p638 = por %p636, %p637
      %p639 = scmp.ne.s32.totalorder %s630, %s631
      %p640 = scmp.eq.s32.totalorder %s80, 0
      %p641 = por %p639, %p640
      %p642 = scmp.ne.s32.totalorder %s630, %s631
      %p643 = scmp.eq.s32.totalorder %s81, 1
      %p644 = por %p642, %p643
      %p646 = scmp.ne.s32.totalorder %s631, %s645
      %p647 = scmp.eq.s32.totalorder %s81, 0
      %p648 = por %p646, %p647
      %s650 = sadd.s32 %s649, 1
      %p653 = scmp.eq.s32.totalorder %s75, 1
      %p654 = scmp.ne.s32.totalorder %s649, %s651
      %p655 = scmp.eq.s32.totalorder %s75, 0
      %p656 = por %p654, %p655
      %p657 = scmp.ne.s32.totalorder %s649, %s651
      %p658 = scmp.eq.s32.totalorder %s80, 1
      %p659 = por %p657, %p658
      %p660 = scmp.ne.s32.totalorder %s651, %s652
      %p661 = scmp.eq.s32.totalorder %s80, 0
      %p662 = por %p660, %p661
      %p663 = scmp.ne.s32.totalorder %s651, %s652
      %p664 = scmp.eq.s32.totalorder %s81, 1
      %p665 = por %p663, %p664
      %p667 = scmp.ne.s32.totalorder %s652, %s666
      %p668 = scmp.eq.s32.totalorder %s81, 0
      %p669 = por %p667, %p668
      %s671 = sadd.s32 %s670, 1
      %p674 = scmp.eq.s32.totalorder %s75, 1
      %p675 = scmp.ne.s32.totalorder %s670, %s672
      %p676 = scmp.eq.s32.totalorder %s75, 0
      %p677 = por %p675, %p676
      %p678 = scmp.ne.s32.totalorder %s670, %s672
      %p679 = scmp.eq.s32.totalorder %s80, 1
      %p680 = por %p678, %p679
      %p681 = scmp.ne.s32.totalorder %s672, %s673
      %p682 = scmp.eq.s32.totalorder %s80, 0
      %p683 = por %p681, %p682
      %p684 = scmp.ne.s32.totalorder %s672, %s673
      %p685 = scmp.eq.s32.totalorder %s81, 1
      %p686 = por %p684, %p685
      %p688 = scmp.ne.s32.totalorder %s673, %s687
      %p689 = scmp.eq.s32.totalorder %s81, 0
      %p690 = por %p688, %p689
      %s692 = sadd.s32 %s691, 1
      %p695 = scmp.eq.s32.totalorder %s75, 1
      %p696 = scmp.ne.s32.totalorder %s691, %s693
      %p697 = scmp.eq.s32.totalorder %s75, 0
      %p698 = por %p696, %p697
      %p699 = scmp.ne.s32.totalorder %s691, %s693
      %p700 = scmp.eq.s32.totalorder %s80, 1
      %p701 = por %p699, %p700
      %p702 = scmp.ne.s32.totalorder %s693, %s694
      %p703 = scmp.eq.s32.totalorder %s80, 0
      %p704 = por %p702, %p703
      %p705 = scmp.ne.s32.totalorder %s693, %s694
      %p706 = scmp.eq.s32.totalorder %s81, 1
      %p707 = por %p705, %p706
      %p709 = scmp.ne.s32.totalorder %s694, %s708
      %p710 = scmp.eq.s32.totalorder %s81, 0
      %p711 = por %p709, %p710
      %s713 = sadd.s32 %s712, 1
      %p716 = scmp.eq.s32.totalorder %s75, 1
      %p717 = scmp.ne.s32.totalorder %s712, %s714
      %p718 = scmp.eq.s32.totalorder %s75, 0
      %p719 = por %p717, %p718
      %p720 = scmp.ne.s32.totalorder %s712, %s714
      %p721 = scmp.eq.s32.totalorder %s80, 1
      %p722 = por %p720, %p721
      %p723 = scmp.ne.s32.totalorder %s714, %s715
      %p724 = scmp.eq.s32.totalorder %s80, 0
      %p725 = por %p723, %p724
      %p726 = scmp.ne.s32.totalorder %s714, %s715
      %p727 = scmp.eq.s32.totalorder %s81, 1
      %p728 = por %p726, %p727
      %p730 = scmp.ne.s32.totalorder %s715, %s729
      %p731 = scmp.eq.s32.totalorder %s81, 0
      %p732 = por %p730, %p731
      %s734 = sadd.s32 %s733, 1
      %p737 = scmp.eq.s32.totalorder %s75, 1
      %p738 = scmp.ne.s32.totalorder %s733, %s735
      %p739 = scmp.eq.s32.totalorder %s75, 0
      %p740 = por %p738, %p739
      %p741 = scmp.ne.s32.totalorder %s733, %s735
      %p742 = scmp.eq.s32.totalorder %s80, 1
      %p743 = por %p741, %p742
      %p744 = scmp.ne.s32.totalorder %s735, %s736
      %p745 = scmp.eq.s32.totalorder %s80, 0
      %p746 = por %p744, %p745
      %p747 = scmp.ne.s32.totalorder %s735, %s736
      %p748 = scmp.eq.s32.totalorder %s81, 1
      %p749 = por %p747, %p748
      %p751 = scmp.ne.s32.totalorder %s736, %s750
      %p752 = scmp.eq.s32.totalorder %s81, 0
      %p753 = por %p751, %p752
      %s755 = sadd.s32 %s754, 1
      %p758 = scmp.eq.s32.totalorder %s75, 1
      %p759 = scmp.ne.s32.totalorder %s754, %s756
      %p760 = scmp.eq.s32.totalorder %s75, 0
      %p761 = por %p759, %p760
      %p762 = scmp.ne.s32.totalorder %s754, %s756
      %p763 = scmp.eq.s32.totalorder %s80, 1
      %p764 = por %p762, %p763
      %p765 = scmp.ne.s32.totalorder %s756, %s757
      %p766 = scmp.eq.s32.totalorder %s80, 0
      %p767 = por %p765, %p766
      %p768 = scmp.ne.s32.totalorder %s756, %s757
      %p769 = scmp.eq.s32.totalorder %s81, 1
      %p770 = por %p768, %p769
      %p772 = scmp.ne.s32.totalorder %s757, %s771
      %p773 = scmp.eq.s32.totalorder %s81, 0
      %p774 = por %p772, %p773
      %s775 = ssub.s32 %s75, %s82
      %p776 = scmp.eq.s32.totalorder %s775, 0
      %s778 = sadd.s32 %s777, 1
      %s779 = scalar_select %p776, %s777, %s778
      %p782 = pneg %p776
      %p783 = scmp.eq.s32.totalorder %s75, 1
      %p784 = por %p782, %p783
      %p785 = scmp.ne.s32.totalorder %s777, %s780
      %p786 = scmp.eq.s32.totalorder %s75, 0
      %p787 = por %p785, %p786
      %p788 = scmp.ne.s32.totalorder %s777, %s780
      %p789 = scmp.eq.s32.totalorder %s80, 1
      %p790 = por %p788, %p789
      %p791 = scmp.ne.s32.totalorder %s780, %s781
      %p792 = scmp.eq.s32.totalorder %s80, 0
      %p793 = por %p791, %p792
      %p794 = scmp.ne.s32.totalorder %s780, %s781
      %p795 = scmp.eq.s32.totalorder %s81, 1
      %p796 = por %p794, %p795
      %p798 = scmp.ne.s32.totalorder %s781, %s797
      %p799 = scmp.eq.s32.totalorder %s81, 0
      %p800 = por %p798, %p799
      %p801 = scmp.le.s32.totalorder 1, %s75
      %p802 = scmp.lt.s32.totalorder %s75, 3
      %p803 = pnand %p801, %p802
      %p804 = pneg %p803
      // Predicated region
      $region9: #{ltmti_forward.1} parent=5 // pred_check
        _
      $region10: #{ltmti_forward.1} parent=5 // pred_check_branch
        %806 = sbr.rel (%p803) target = $region12
      $region11: #{ltmti_forward.1} parent=5 // pred_region
        %s807 = ssub.s32 %s75, 1
        // Predicated region
        $region13: #{ltmti_forward.1} parent=11 // pred_check
          %p808 = pneg %p200
        $region14: #{ltmti_forward.1} parent=11 // pred_check_branch
          %810 = sbr.rel (%p808) target = $region16
        $region15: #{ltmti_forward.1} parent=11 // pred_region
          _
        $region16: #{ltmti_forward.1} parent=11 // pred_fallthru
          _
        // Predicated region
        $region17: #{ltmti_forward.1} parent=11 // pred_check
          %p811 = pneg %p221
        $region18: #{ltmti_forward.1} parent=11 // pred_check_branch
          %813 = sbr.rel (%p811) target = $region20
        $region19: #{ltmti_forward.1} parent=11 // pred_region
          _
        $region20: #{ltmti_forward.1} parent=11 // pred_fallthru
          _
        // Predicated region
        $region21: #{ltmti_forward.1} parent=11 // pred_check
          %p814 = pneg %p242
        $region22: #{ltmti_forward.1} parent=11 // pred_check_branch
          %816 = sbr.rel (%p814) target = $region24
        $region23: #{ltmti_forward.1} parent=11 // pred_region
          _
        $region24: #{ltmti_forward.1} parent=11 // pred_fallthru
          _
        // Predicated region
        $region25: #{ltmti_forward.1} parent=11 // pred_check
          %p817 = pneg %p263
        $region26: #{ltmti_forward.1} parent=11 // pred_check_branch
          %819 = sbr.rel (%p817) target = $region28
        $region27: #{ltmti_forward.1} parent=11 // pred_region
          _
        $region28: #{ltmti_forward.1} parent=11 // pred_fallthru
          _
        // Predicated region
        $region29: #{ltmti_forward.1} parent=11 // pred_check
          %p820 = pneg %p284
        $region30: #{ltmti_forward.1} parent=11 // pred_check_branch
          %822 = sbr.rel (%p820) target = $region32
        $region31: #{ltmti_forward.1} parent=11 // pred_region
          _
        $region32: #{ltmti_forward.1} parent=11 // pred_fallthru
          _
        // Predicated region
        $region33: #{ltmti_forward.1} parent=11 // pred_check
          %p823 = pneg %p305
        $region34: #{ltmti_forward.1} parent=11 // pred_check_branch
          %825 = sbr.rel (%p823) target = $region36
        $region35: #{ltmti_forward.1} parent=11 // pred_region
          _
        $region36: #{ltmti_forward.1} parent=11 // pred_fallthru
          _
        // Predicated region
        $region37: #{ltmti_forward.1} parent=11 // pred_check
          %p826 = pneg %p326
        $region38: #{ltmti_forward.1} parent=11 // pred_check_branch
          %828 = sbr.rel (%p826) target = $region40
        $region39: #{ltmti_forward.1} parent=11 // pred_region
          _
        $region40: #{ltmti_forward.1} parent=11 // pred_fallthru
          _
        // Predicated region
        $region41: #{ltmti_forward.1} parent=11 // pred_check
          %p829 = pneg %p347
        $region42: #{ltmti_forward.1} parent=11 // pred_check_branch
          %831 = sbr.rel (%p829) target = $region44
        $region43: #{ltmti_forward.1} parent=11 // pred_region
          _
        $region44: #{ltmti_forward.1} parent=11 // pred_fallthru
          _
        // Predicated region
        $region45: #{ltmti_forward.1} parent=11 // pred_check
          %p832 = pneg %p368
        $region46: #{ltmti_forward.1} parent=11 // pred_check_branch
          %834 = sbr.rel (%p832) target = $region48
        $region47: #{ltmti_forward.1} parent=11 // pred_region
          _
        $region48: #{ltmti_forward.1} parent=11 // pred_fallthru
          _
        // Predicated region
        $region49: #{ltmti_forward.1} parent=11 // pred_check
          %p835 = pneg %p389
        $region50: #{ltmti_forward.1} parent=11 // pred_check_branch
          %837 = sbr.rel (%p835) target = $region52
        $region51: #{ltmti_forward.1} parent=11 // pred_region
          _
        $region52: #{ltmti_forward.1} parent=11 // pred_fallthru
          _
        // Predicated region
        $region53: #{ltmti_forward.1} parent=11 // pred_check
          %p838 = pneg %p410
        $region54: #{ltmti_forward.1} parent=11 // pred_check_branch
          %840 = sbr.rel (%p838) target = $region56
        $region55: #{ltmti_forward.1} parent=11 // pred_region
          _
        $region56: #{ltmti_forward.1} parent=11 // pred_fallthru
          _
        // Predicated region
        $region57: #{ltmti_forward.1} parent=11 // pred_check
          %p841 = pneg %p431
        $region58: #{ltmti_forward.1} parent=11 // pred_check_branch
          %843 = sbr.rel (%p841) target = $region60
        $region59: #{ltmti_forward.1} parent=11 // pred_region
          _
        $region60: #{ltmti_forward.1} parent=11 // pred_fallthru
          _
        // Predicated region
        $region61: #{ltmti_forward.1} parent=11 // pred_check
          %p844 = pneg %p452
        $region62: #{ltmti_forward.1} parent=11 // pred_check_branch
          %846 = sbr.rel (%p844) target = $region64
        $region63: #{ltmti_forward.1} parent=11 // pred_region
          _
        $region64: #{ltmti_forward.1} parent=11 // pred_fallthru
          _
        // Predicated region
        $region65: #{ltmti_forward.1} parent=11 // pred_check
          %p847 = pneg %p473
        $region66: #{ltmti_forward.1} parent=11 // pred_check_branch
          %849 = sbr.rel (%p847) target = $region68
        $region67: #{ltmti_forward.1} parent=11 // pred_region
          _
        $region68: #{ltmti_forward.1} parent=11 // pred_fallthru
          _
        // Predicated region
        $region69: #{ltmti_forward.1} parent=11 // pred_check
          %p850 = pneg %p494
        $region70: #{ltmti_forward.1} parent=11 // pred_check_branch
          %852 = sbr.rel (%p850) target = $region72
        $region71: #{ltmti_forward.1} parent=11 // pred_region
          _
        $region72: #{ltmti_forward.1} parent=11 // pred_fallthru
          _
        // Predicated region
        $region73: #{ltmti_forward.1} parent=11 // pred_check
          %p853 = pneg %p515
        $region74: #{ltmti_forward.1} parent=11 // pred_check_branch
          %855 = sbr.rel (%p853) target = $region76
        $region75: #{ltmti_forward.1} parent=11 // pred_region
          _
        $region76: #{ltmti_forward.1} parent=11 // pred_fallthru
          _
        // Predicated region
        $region77: #{ltmti_forward.1} parent=11 // pred_check
          %p856 = pneg %p536
        $region78: #{ltmti_forward.1} parent=11 // pred_check_branch
          %858 = sbr.rel (%p856) target = $region80
        $region79: #{ltmti_forward.1} parent=11 // pred_region
          _
        $region80: #{ltmti_forward.1} parent=11 // pred_fallthru
          _
        // Predicated region
        $region81: #{ltmti_forward.1} parent=11 // pred_check
          %p859 = pneg %p557
        $region82: #{ltmti_forward.1} parent=11 // pred_check_branch
          %861 = sbr.rel (%p859) target = $region84
        $region83: #{ltmti_forward.1} parent=11 // pred_region
          _
        $region84: #{ltmti_forward.1} parent=11 // pred_fallthru
          _
        // Predicated region
        $region85: #{ltmti_forward.1} parent=11 // pred_check
          %p862 = pneg %p578
        $region86: #{ltmti_forward.1} parent=11 // pred_check_branch
          %864 = sbr.rel (%p862) target = $region88
        $region87: #{ltmti_forward.1} parent=11 // pred_region
          _
        $region88: #{ltmti_forward.1} parent=11 // pred_fallthru
          _
        // Predicated region
        $region89: #{ltmti_forward.1} parent=11 // pred_check
          %p865 = pneg %p599
        $region90: #{ltmti_forward.1} parent=11 // pred_check_branch
          %867 = sbr.rel (%p865) target = $region92
        $region91: #{ltmti_forward.1} parent=11 // pred_region
          _
        $region92: #{ltmti_forward.1} parent=11 // pred_fallthru
          _
        // Predicated region
        $region93: #{ltmti_forward.1} parent=11 // pred_check
          %p868 = pneg %p620
        $region94: #{ltmti_forward.1} parent=11 // pred_check_branch
          %870 = sbr.rel (%p868) target = $region96
        $region95: #{ltmti_forward.1} parent=11 // pred_region
          _
        $region96: #{ltmti_forward.1} parent=11 // pred_fallthru
          _
        // Predicated region
        $region97: #{ltmti_forward.1} parent=11 // pred_check
          %p871 = pneg %p641
        $region98: #{ltmti_forward.1} parent=11 // pred_check_branch
          %873 = sbr.rel (%p871) target = $region100
        $region99: #{ltmti_forward.1} parent=11 // pred_region
          _
        $region100: #{ltmti_forward.1} parent=11 // pred_fallthru
          _
        // Predicated region
        $region101: #{ltmti_forward.1} parent=11 // pred_check
          %p874 = pneg %p662
        $region102: #{ltmti_forward.1} parent=11 // pred_check_branch
          %876 = sbr.rel (%p874) target = $region104
        $region103: #{ltmti_forward.1} parent=11 // pred_region
          _
        $region104: #{ltmti_forward.1} parent=11 // pred_fallthru
          _
        // Predicated region
        $region105: #{ltmti_forward.1} parent=11 // pred_check
          %p877 = pneg %p683
        $region106: #{ltmti_forward.1} parent=11 // pred_check_branch
          %879 = sbr.rel (%p877) target = $region108
        $region107: #{ltmti_forward.1} parent=11 // pred_region
          _
        $region108: #{ltmti_forward.1} parent=11 // pred_fallthru
          _
        // Predicated region
        $region109: #{ltmti_forward.1} parent=11 // pred_check
          %p880 = pneg %p704
        $region110: #{ltmti_forward.1} parent=11 // pred_check_branch
          %882 = sbr.rel (%p880) target = $region112
        $region111: #{ltmti_forward.1} parent=11 // pred_region
          _
        $region112: #{ltmti_forward.1} parent=11 // pred_fallthru
          _
        // Predicated region
        $region113: #{ltmti_forward.1} parent=11 // pred_check
          %p883 = pneg %p725
        $region114: #{ltmti_forward.1} parent=11 // pred_check_branch
          %885 = sbr.rel (%p883) target = $region116
        $region115: #{ltmti_forward.1} parent=11 // pred_region
          _
        $region116: #{ltmti_forward.1} parent=11 // pred_fallthru
          _
        // Predicated region
        $region117: #{ltmti_forward.1} parent=11 // pred_check
          %p886 = pneg %p746
        $region118: #{ltmti_forward.1} parent=11 // pred_check_branch
          %888 = sbr.rel (%p886) target = $region120
        $region119: #{ltmti_forward.1} parent=11 // pred_region
          _
        $region120: #{ltmti_forward.1} parent=11 // pred_fallthru
          _
        // Predicated region
        $region121: #{ltmti_forward.1} parent=11 // pred_check
          %p889 = pneg %p767
        $region122: #{ltmti_forward.1} parent=11 // pred_check_branch
          %891 = sbr.rel (%p889) target = $region124
        $region123: #{ltmti_forward.1} parent=11 // pred_region
          _
        $region124: #{ltmti_forward.1} parent=11 // pred_fallthru
          _
      $region12: #{ltmti_forward.1} parent=5 // pred_fallthru
        _
      %p892 = scmp.lt.s32.totalorder %s75, 2
      // Predicated region
      $region125: #{ltmti_forward.1} parent=5 // pred_check
        %p893 = pneg %p892
      $region126: #{ltmti_forward.1} parent=5 // pred_check_branch
        %895 = sbr.rel (%p893) target = $region128
      $region127: #{ltmti_forward.1} parent=5 // pred_region
        // Predicated region
        $region129: #{ltmti_forward.1} parent=127 // pred_check
          %p896 = pneg %p95
        $region130: #{ltmti_forward.1} parent=127 // pred_check_branch
          %898 = sbr.rel (%p896) target = $region132
        $region131: #{ltmti_forward.1} parent=127 // pred_region
          %p899 = scmp.lt.s32.totalorder %s75, 1
          %s900 = scalar_select %p899, %s75, 1
          %s901 = smul.addr %s900, 8
          %s902 = scalar_lea.vmem %s1, %s901
        $region132: #{ltmti_forward.1} parent=127 // pred_fallthru
          _
        // Predicated region
        $region133: #{ltmti_forward.1} parent=127 // pred_check
          %p903 = pneg %p121
        $region134: #{ltmti_forward.1} parent=127 // pred_check_branch
          %905 = sbr.rel (%p903) target = $region136
        $region135: #{ltmti_forward.1} parent=127 // pred_region
          %p906 = scmp.lt.s32.totalorder %s75, 1
          %s907 = scalar_select %p906, %s75, 1
          %s908 = smul.addr %s907, 8
          %s909 = scalar_lea.vmem %s3, %s908
        $region136: #{ltmti_forward.1} parent=127 // pred_fallthru
          _
        // Predicated region
        $region137: #{ltmti_forward.1} parent=127 // pred_check
          %p910 = pneg %p147
        $region138: #{ltmti_forward.1} parent=127 // pred_check_branch
          %912 = sbr.rel (%p910) target = $region140
        $region139: #{ltmti_forward.1} parent=127 // pred_region
          %p913 = scmp.lt.s32.totalorder %s75, 1
          %s914 = scalar_select %p913, %s75, 1
          %s915 = smul.addr %s914, 8
          %s916 = scalar_lea.vmem %s5, %s915
        $region140: #{ltmti_forward.1} parent=127 // pred_fallthru
          _
        // Predicated region
        $region141: #{ltmti_forward.1} parent=127 // pred_check
          %p917 = pneg %p173
        $region142: #{ltmti_forward.1} parent=127 // pred_check_branch
          %919 = sbr.rel (%p917) target = $region144
        $region143: #{ltmti_forward.1} parent=127 // pred_region
          %p920 = scmp.lt.s32.totalorder %s75, 1
          %s921 = scalar_select %p920, %s75, 1
          %s922 = smul.addr %s921, 8
          %s923 = scalar_lea.vmem %s7, %s922
        $region144: #{ltmti_forward.1} parent=127 // pred_fallthru
          _
      $region128: #{ltmti_forward.1} parent=5 // pred_fallthru
        _
      %p924 = scmp.le.s32.totalorder 1, %s75
      %p925 = scmp.lt.s32.totalorder %s75, 3
      %p926 = pnand %p924, %p925
      %p927 = pneg %p926
      // Predicated region
      $region145: #{ltmti_forward.1} parent=5 // pred_check
        _
      $region146: #{ltmti_forward.1} parent=5 // pred_check_branch
        %929 = sbr.rel (%p926) target = $region148
      $region147: #{ltmti_forward.1} parent=5 // pred_region
        %s930 = ssub.s32 %s75, 1
        %p931 = scmp.lt.s32.totalorder %s80, 1
        %s932 = scalar_select %p931, %s80, 1
        %s933 = smul.addr %s932, 8
        %s934 = scalar_lea.vmem %s1, %s933
        %p935 = pneg %p101
        %p936 = pneg %p98
        %p937 = scmp.lt.s32.totalorder %s80, 1
        %s938 = scalar_select %p937, %s80, 1
        %s939 = smul.addr %s938, 8
        %s940 = scalar_lea.vmem %s3, %s939
        %p941 = pneg %p127
        %p942 = pneg %p124
        %p943 = scmp.lt.s32.totalorder %s80, 1
        %s944 = scalar_select %p943, %s80, 1
        %s945 = smul.addr %s944, 8
        %s946 = scalar_lea.vmem %s5, %s945
        %p947 = pneg %p153
        %p948 = pneg %p150
        %p949 = scmp.lt.s32.totalorder %s80, 1
        %s950 = scalar_select %p949, %s80, 1
        %s951 = smul.addr %s950, 8
        %s952 = scalar_lea.vmem %s7, %s951
        %p953 = pneg %p179
        %p954 = pneg %p176
        %p955 = pneg %p200
        %p956 = pneg %p197
        %p957 = pneg %p221
        %p958 = pneg %p218
        %p959 = pneg %p242
        %p960 = pneg %p239
        %p961 = pneg %p263
        %p962 = pneg %p260
        %p963 = pneg %p284
        %p964 = pneg %p281
        %p965 = pneg %p305
        %p966 = pneg %p302
        %p967 = pneg %p326
        %p968 = pneg %p323
        %p969 = pneg %p347
        %p970 = pneg %p344
        %p971 = pneg %p368
        %p972 = pneg %p365
        %p973 = pneg %p389
        %p974 = pneg %p386
        %p975 = pneg %p410
        %p976 = pneg %p407
        %p977 = pneg %p431
        %p978 = pneg %p428
        %p979 = pneg %p452
        %p980 = pneg %p449
        %p981 = pneg %p473
        %p982 = pneg %p470
        %p983 = pneg %p494
        %p984 = pneg %p491
        %p985 = pneg %p515
        %p986 = pneg %p512
        %p987 = pneg %p536
        %p988 = pneg %p533
        %p989 = pneg %p557
        %p990 = pneg %p554
        %p991 = pneg %p578
        %p992 = pneg %p575
        %p993 = pneg %p599
        %p994 = pneg %p596
        %p995 = pneg %p620
        %p996 = pneg %p617
        %p997 = pneg %p641
        %p998 = pneg %p638
        %p999 = pneg %p662
        %p1000 = pneg %p659
        %p1001 = pneg %p683
        %p1002 = pneg %p680
        %p1003 = pneg %p704
        %p1004 = pneg %p701
        %p1005 = pneg %p725
        %p1006 = pneg %p722
        %p1007 = pneg %p746
        %p1008 = pneg %p743
        %p1009 = pneg %p767
        %p1010 = pneg %p764
        %p1011 = pneg %p793
        %p1012 = pneg %p790
        %s1013 = sand.u32 %s780, 1
        %s1014 = scalar_lea.sflag [#allocation4], %s1013
        %s1015 = sand.u32 %s780, 1
        %s1016 = scalar_lea.vmem [#allocation3], %s1015
        %p1017 = scmp.lt.s32.totalorder %s80, 1
        %s1018 = scalar_select %p1017, %s80, 1
        %s1019 = smul.addr %s1018, 8
        %s1020 = scalar_lea.vmem %s1, %s1019
        %p1021 = scmp.lt.s32.totalorder %s80, 1
        %s1022 = scalar_select %p1021, %s80, 1
        %s1023 = smul.addr %s1022, 8
        %s1024 = scalar_lea.vmem %s3, %s1023
        %p1025 = scmp.lt.s32.totalorder %s80, 1
        %s1026 = scalar_select %p1025, %s80, 1
        %s1027 = smul.addr %s1026, 8
        %s1028 = scalar_lea.vmem %s5, %s1027
        %p1029 = scmp.lt.s32.totalorder %s80, 1
        %s1030 = scalar_select %p1029, %s80, 1
        %s1031 = smul.addr %s1030, 8
        %s1032 = scalar_lea.vmem %s7, %s1031
        %v1034 = vlaneseq
        %v1035 = vshrl.u32 %v1034, 7
        %v1036 = vlaneseq
        %v1037 = vand.u32 %v1036, 127
        %vm1038 = vcmp.ge.s32.totalorder %v1037, %v1035
        %v1039 = vsel %vm1038, 0.0, -1e+09
        %vm1040 = vcmp.le.s32.totalorder %v1037, %v1035
        %v1041 = vsel %vm1040, 0.0, -1e+09
        %v1042 = vld [vmem:[%s1020] sm:$0xff]
        %v1043 = vld [vmem:[%s1024] sm:$0xff]
        %v1044 = vld [vmem:[%s1028] sm:$0xff]
        %v1045 = vld [vmem:[%s1032] sm:$0xff]
        %1046 = vset.pattern.permute.xlu0 0
        %1047 = vperm.xlu0 %1046, %v1043
        %v1048 = vpop.permute.xlu0 %1047
        %vm1049 = vcmp.eq.s32.totalorder %v1037, %v1048
        %v1050 = vsel %vm1049, 1, 0
        %v1051 = vcvt.s32.f32 %v1050
        %v1052 = vld [vmem:[%s11] sm:$0xff]
        %v1053 = vld [vmem:[%s11 + $0x8] sm:$0x3]
        %1054 = vset.pattern.permute.xlu0 0
        %1055 = vperm.xlu0 %1054, %v1042
        %v1056 = vpop.permute.xlu0 %1055
        %vm1057 = vcmp.eq.s32.totalorder %v1037, %v1056
        %v1058 = vsel %vm1057, 1, 0
        %v1059 = vcvt.s32.f32 %v1058
        %v1060 = vld [vmem:[%s9] sm:$0xff]
        %v1061 = vld [vmem:[%s9 + $0x8] sm:$0xff]
        %v1062 = vld [vmem:[%s9 + $0x10] sm:$0xff]
        %v1063 = vld [vmem:[%s9 + $0x18] sm:$0xff]
        %v1064 = vld [vmem:[%s9 + $0x20] sm:$0xff]
        %v1065 = vld [vmem:[%s9 + $0x28] sm:$0xff]
        %v1066 = vld [vmem:[%s9 + $0x30] sm:$0x3]
        %vm1067 = vcmask 408576
        %v1069 = vsel %vm1067, %v1059, 0
        %vm1071 = vcmask 1041408
        %v1073 = vsel %vm1071, %v1066, 0
        %1075 = vmatprep.subr.mxu0 0.0
        %1076 = vmatpush1.msra.mxu0 %v1060
        %1077 = vmatprep.subr.mxu0 0.0
        %1078 = vmatpush1.msra.mxu0 %v1061
        %1079 = vmatprep.subr.mxu0 0.0
        %1080 = vmatpush1.msra.mxu0 %v1062
        %1081 = vmatprep.subr.mxu0 0.0
        %1082 = vmatpush1.msra.mxu0 %v1063
        %1083 = vmatprep.subr.mxu0 0.0
        %1084 = vmatpush1.msra.mxu0 %v1064
        %1085 = vmatprep.subr.mxu0 0.0
        %1086 = vmatpush1.msra.mxu0 %v1065
        %1087 = vmatprep.subr.mxu0 0.0
        %1088 = vmatpush1.msra.mxu0 %v1073
        %1089 = vmatprep.subr.mxu0 0.0
        %1090 = vmatpush1.msra.mxu0 0.0
        %1091 = vmatprep.subr.mxu0 0.0
        %1092 = vmatpush1.msra.mxu0 0.0
        %1093 = vmatprep.subr.mxu0 0.0
        %1094 = vmatpush1.msra.mxu0 0.0
        %1095 = vmatprep.subr.mxu0 0.0
        %1096 = vmatpush1.msra.mxu0 0.0
        %1097 = vmatprep.subr.mxu0 0.0
        %1098 = vmatpush1.msra.mxu0 0.0
        %1099 = vmatprep.subr.mxu0 0.0
        %1100 = vmatpush1.msra.mxu0 0.0
        %1101 = vmatprep.subr.mxu0 0.0
        %1102 = vmatpush1.msra.mxu0 0.0
        %1103 = vmatprep.subr.mxu0 0.0
        %1104 = vmatpush1.msra.mxu0 0.0
        %1105 = vmatprep.subr.mxu0 0.0
        %1106 = vmatpush1.msra.mxu0 0.0
        %1107 = vmatprep.subr.mxu0 0.0
        %1108 = vmatpush1.msra.mxu0 0.0
        %1109 = vmatprep.subr.mxu0 0.0
        %1110 = vmatpush1.msra.mxu0 0.0
        %1111 = vmatprep.subr.mxu0 0.0
        %1112 = vmatpush1.msra.mxu0 0.0
        %1113 = vmatprep.subr.mxu0 0.0
        %1114 = vmatpush1.msra.mxu0 0.0
        %1115 = vmatprep.subr.mxu0 0.0
        %1116 = vmatpush1.msra.mxu0 0.0
        %1117 = vmatprep.subr.mxu0 0.0
        %1118 = vmatpush1.msra.mxu0 0.0
        %1119 = vmatprep.subr.mxu0 0.0
        %1120 = vmatpush1.msra.mxu0 0.0
        %1121 = vmatprep.subr.mxu0 0.0
        %1122 = vmatpush1.msra.mxu0 0.0
        %1123 = vmatprep.subr.mxu0 0.0
        %1124 = vmatpush1.msra.mxu0 0.0
        %1125 = vmatprep.subr.mxu0 0.0
        %1126 = vmatpush1.msra.mxu0 0.0
        %1127 = vmatprep.subr.mxu0 0.0
        %1128 = vmatpush1.msra.mxu0 0.0
        %1129 = vmatprep.subr.mxu0 0.0
        %1130 = vmatpush1.msra.mxu0 0.0
        %1131 = vmatprep.subr.mxu0 0.0
        %1132 = vmatpush1.msra.mxu0 0.0
        %1133 = vmatprep.subr.mxu0 0.0
        %1134 = vmatpush1.msra.mxu0 0.0
        %1135 = vmatprep.subr.mxu0 0.0
        %1136 = vmatpush1.msra.mxu0 0.0
        %1137 = vmatprep.subr.mxu0 0.0
        %1138 = vmatpush1.msra.mxu0 0.0
        %1139 = vmatprep.mubr.f32.mxu0 0.0
        %1140 = vmatmul.mubr.f32.gmra.mrb[0].mxu0 %v1069
        %v1141 = vpop.f32.mrb[0].mxu0
        %v1142 = vadd.f32 0.0, %v1141
        %v1143 = vpop.f32.mrb[0].mxu0
        %1144 = vdwg.mxu0
        %vm1145 = vcmask 80896
        %v1147 = vsel %vm1145, %v1051, 0
        %v1150 = vsel %vm1071, %v1053, 0
        %1152 = vmatprep.subr.mxu0 0.0
        %1153 = vmatpush1.msra.mxu0 %v1052
        %1154 = vmatprep.subr.mxu0 0.0
        %1155 = vmatpush1.msra.mxu0 %v1150
        %1156 = vmatprep.subr.mxu0 0.0
        %1157 = vmatpush1.msra.mxu0 0.0
        %1158 = vmatprep.subr.mxu0 0.0
        %1159 = vmatpush1.msra.mxu0 0.0
        %1160 = vmatprep.subr.mxu0 0.0
        %1161 = vmatpush1.msra.mxu0 0.0
        %1162 = vmatprep.subr.mxu0 0.0
        %1163 = vmatpush1.msra.mxu0 0.0
        %1164 = vmatprep.subr.mxu0 0.0
        %1165 = vmatpush1.msra.mxu0 0.0
        %1166 = vmatprep.subr.mxu0 0.0
        %1167 = vmatpush1.msra.mxu0 0.0
        %1168 = vmatprep.subr.mxu0 0.0
        %1169 = vmatpush1.msra.mxu0 0.0
        %1170 = vmatprep.subr.mxu0 0.0
        %1171 = vmatpush1.msra.mxu0 0.0
        %1172 = vmatprep.subr.mxu0 0.0
        %1173 = vmatpush1.msra.mxu0 0.0
        %1174 = vmatprep.subr.mxu0 0.0
        %1175 = vmatpush1.msra.mxu0 0.0
        %1176 = vmatprep.subr.mxu0 0.0
        %1177 = vmatpush1.msra.mxu0 0.0
        %1178 = vmatprep.subr.mxu0 0.0
        %1179 = vmatpush1.msra.mxu0 0.0
        %1180 = vmatprep.subr.mxu0 0.0
        %1181 = vmatpush1.msra.mxu0 0.0
        %1182 = vmatprep.subr.mxu0 0.0
        %1183 = vmatpush1.msra.mxu0 0.0
        %1184 = vmatprep.subr.mxu0 0.0
        %1185 = vmatpush1.msra.mxu0 0.0
        %1186 = vmatprep.subr.mxu0 0.0
        %1187 = vmatpush1.msra.mxu0 0.0
        %1188 = vmatprep.subr.mxu0 0.0
        %1189 = vmatpush1.msra.mxu0 0.0
        %1190 = vmatprep.subr.mxu0 0.0
        %1191 = vmatpush1.msra.mxu0 0.0
        %1192 = vmatprep.subr.mxu0 0.0
        %1193 = vmatpush1.msra.mxu0 0.0
        %1194 = vmatprep.subr.mxu0 0.0
        %1195 = vmatpush1.msra.mxu0 0.0
        %1196 = vmatprep.subr.mxu0 0.0
        %1197 = vmatpush1.msra.mxu0 0.0
        %1198 = vmatprep.subr.mxu0 0.0
        %1199 = vmatpush1.msra.mxu0 0.0
        %1200 = vmatprep.subr.mxu0 0.0
        %1201 = vmatpush1.msra.mxu0 0.0
        %1202 = vmatprep.subr.mxu0 0.0
        %1203 = vmatpush1.msra.mxu0 0.0
        %1204 = vmatprep.subr.mxu0 0.0
        %1205 = vmatpush1.msra.mxu0 0.0
        %1206 = vmatprep.subr.mxu0 0.0
        %1207 = vmatpush1.msra.mxu0 0.0
        %1208 = vmatprep.subr.mxu0 0.0
        %1209 = vmatpush1.msra.mxu0 0.0
        %1210 = vmatprep.subr.mxu0 0.0
        %1211 = vmatpush1.msra.mxu0 0.0
        %1212 = vmatprep.subr.mxu0 0.0
        %1213 = vmatpush1.msra.mxu0 0.0
        %1214 = vmatprep.subr.mxu0 0.0
        %1215 = vmatpush1.msra.mxu0 0.0
        %1216 = vmatprep.mubr.f32.mxu0 0.0
        %1217 = vmatmul.mubr.f32.gmra.mrb[0].mxu0 %v1147
        %v1218 = vpop.f32.mrb[0].mxu0
        %v1219 = vadd.f32 %v1142, %v1218
        %v1220 = vpop.f32.mrb[0].mxu0
        %1221 = vdwg.mxu0
        %v1222 = vadd.s32 %v1037, 128
        %v1223 = vadd.s32 %v1037, 256
        %1224 = vset.pattern.permute.xlu0 0
        %1225 = vperm.xlu0 %1224, %v1045
        %v1226 = vpop.permute.xlu0 %1225
        %vm1227 = vcmp.eq.s32.totalorder %v1037, %v1226
        %vm1228 = vcmp.eq.s32.totalorder %v1222, %v1226
        %vm1229 = vcmp.eq.s32.totalorder %v1223, %v1226
        %v1230 = vsel %vm1227, 1, 0
        %v1231 = vsel %vm1228, 1, 0
        %v1232 = vsel %vm1229, 1, 0
        %v1233 = vcvt.s32.f32 %v1230
        %v1234 = vcvt.s32.f32 %v1231
        %v1235 = vcvt.s32.f32 %v1232
        %v1236 = vld [vmem:[%s13] sm:$0xff]
        %v1237 = vld [vmem:[%s13 + $0x8] sm:$0xff]
        %v1238 = vld [vmem:[%s13 + $0x10] sm:$0xff]
        %v1239 = vld [vmem:[%s13 + $0x18] sm:$0xff]
        %v1240 = vld [vmem:[%s13 + $0x20] sm:$0xff]
        %v1241 = vld [vmem:[%s13 + $0x28] sm:$0xff]
        %v1242 = vld [vmem:[%s13 + $0x30] sm:$0xff]
        %v1243 = vld [vmem:[%s13 + $0x38] sm:$0xff]
        %v1244 = vld [vmem:[%s13 + $0x40] sm:$0xff]
        %v1245 = vld [vmem:[%s13 + $0x48] sm:$0xff]
        %v1246 = vld [vmem:[%s13 + $0x50] sm:$0xff]
        %v1247 = vld [vmem:[%s13 + $0x58] sm:$0xff]
        %v1248 = vld [vmem:[%s13 + $0x60] sm:$0xff]
        %v1249 = vld [vmem:[%s13 + $0x68] sm:$0xff]
        %v1250 = vld [vmem:[%s13 + $0x70] sm:$0xff]
        %v1251 = vld [vmem:[%s13 + $0x78] sm:$0xff]
        %v1252 = vld [vmem:[%s13 + $0x80] sm:$0xff]
        %v1253 = vld [vmem:[%s13 + $0x88] sm:$0xff]
        %v1254 = vld [vmem:[%s13 + $0x90] sm:$0xff]
        %v1255 = vld [vmem:[%s13 + $0x98] sm:$0xff]
        %v1256 = vld [vmem:[%s13 + $0xa0] sm:$0xff]
        %v1257 = vld [vmem:[%s13 + $0xa8] sm:$0xff]
        %v1258 = vld [vmem:[%s13 + $0xb0] sm:$0xff]
        %v1259 = vld [vmem:[%s13 + $0xb8] sm:$0xff]
        %v1260 = vld [vmem:[%s13 + $0xc0] sm:$0xff]
        %v1261 = vld [vmem:[%s13 + $0xc8] sm:$0xff]
        %v1262 = vld [vmem:[%s13 + $0xd0] sm:$0xff]
        %v1263 = vld [vmem:[%s13 + $0xd8] sm:$0xff]
        %v1264 = vld [vmem:[%s13 + $0xe0] sm:$0xff]
        %v1265 = vld [vmem:[%s13 + $0xe8] sm:$0xff]
        %v1266 = vld [vmem:[%s13 + $0xf0] sm:$0xff]
        %v1267 = vld [vmem:[%s13 + $0xf8] sm:$0xff]
        %v1268 = vld [vmem:[%s13 + $0x100] sm:$0xff]
        %v1269 = vld [vmem:[%s13 + $0x108] sm:$0xff]
        %v1270 = vld [vmem:[%s13 + $0x110] sm:$0xff]
        %v1271 = vld [vmem:[%s13 + $0x118] sm:$0xff]
        %v1272 = vld [vmem:[%s13 + $0x120] sm:$0xff]
        %v1273 = vld [vmem:[%s13 + $0x128] sm:$0x1f]
        %vm1274 = vcmask 367616
        %v1276 = vsel %vm1274, %v1235, 0
        %vm1278 = vcmask 1044480
        %v1280 = vsel %vm1278, %v1273, 0
        %1282 = vmatprep.subr.mxu0 0.0
        %1283 = vmatpush1.msra.mxu0 %v1236
        %1284 = vmatprep.subr.mxu0 0.0
        %1285 = vmatpush1.msra.mxu0 %v1237
        %1286 = vmatprep.subr.mxu0 0.0
        %1287 = vmatpush1.msra.mxu0 %v1238
        %1288 = vmatprep.subr.mxu0 0.0
        %1289 = vmatpush1.msra.mxu0 %v1239
        %1290 = vmatprep.subr.mxu0 0.0
        %1291 = vmatpush1.msra.mxu0 %v1240
        %1292 = vmatprep.subr.mxu0 0.0
        %1293 = vmatpush1.msra.mxu0 %v1241
        %1294 = vmatprep.subr.mxu0 0.0
        %1295 = vmatpush1.msra.mxu0 %v1242
        %1296 = vmatprep.subr.mxu0 0.0
        %1297 = vmatpush1.msra.mxu0 %v1243
        %1298 = vmatprep.subr.mxu0 0.0
        %1299 = vmatpush1.msra.mxu0 %v1244
        %1300 = vmatprep.subr.mxu0 0.0
        %1301 = vmatpush1.msra.mxu0 %v1245
        %1302 = vmatprep.subr.mxu0 0.0
        %1303 = vmatpush1.msra.mxu0 %v1246
        %1304 = vmatprep.subr.mxu0 0.0
        %1305 = vmatpush1.msra.mxu0 %v1247
        %1306 = vmatprep.subr.mxu0 0.0
        %1307 = vmatpush1.msra.mxu0 %v1248
        %1308 = vmatprep.subr.mxu0 0.0
        %1309 = vmatpush1.msra.mxu0 %v1249
        %1310 = vmatprep.subr.mxu0 0.0
        %1311 = vmatpush1.msra.mxu0 %v1250
        %1312 = vmatprep.subr.mxu0 0.0
        %1313 = vmatpush1.msra.mxu0 %v1251
        %1314 = vmatprep.subr.mxu0 0.0
        %1315 = vmatpush1.msra.mxu0 %v1252
        %1316 = vmatprep.subr.mxu0 0.0
        %1317 = vmatpush1.msra.mxu0 %v1253
        %1318 = vmatprep.subr.mxu0 0.0
        %1319 = vmatpush1.msra.mxu0 %v1254
        %1320 = vmatprep.subr.mxu0 0.0
        %1321 = vmatpush1.msra.mxu0 %v1255
        %1322 = vmatprep.subr.mxu0 0.0
        %1323 = vmatpush1.msra.mxu0 %v1256
        %1324 = vmatprep.subr.mxu0 0.0
        %1325 = vmatpush1.msra.mxu0 %v1257
        %1326 = vmatprep.subr.mxu0 0.0
        %1327 = vmatpush1.msra.mxu0 %v1258
        %1328 = vmatprep.subr.mxu0 0.0
        %1329 = vmatpush1.msra.mxu0 %v1259
        %1330 = vmatprep.subr.mxu0 0.0
        %1331 = vmatpush1.msra.mxu0 %v1260
        %1332 = vmatprep.subr.mxu0 0.0
        %1333 = vmatpush1.msra.mxu0 %v1261
        %1334 = vmatprep.subr.mxu0 0.0
        %1335 = vmatpush1.msra.mxu0 %v1262
        %1336 = vmatprep.subr.mxu0 0.0
        %1337 = vmatpush1.msra.mxu0 %v1263
        %1338 = vmatprep.subr.mxu0 0.0
        %1339 = vmatpush1.msra.mxu0 %v1264
        %1340 = vmatprep.subr.mxu0 0.0
        %1341 = vmatpush1.msra.mxu0 %v1265
        %1342 = vmatprep.subr.mxu0 0.0
        %1343 = vmatpush1.msra.mxu0 %v1266
        %1344 = vmatprep.subr.mxu0 0.0
        %1345 = vmatpush1.msra.mxu0 %v1267
        %1346 = vmatprep.mubr.f32.mxu0 %v1234
        %1347 = vmatmul.mubr.f32.gmra.mrb[0].mxu0 %v1233
        %v1348 = vpop.f32.mrb[0].mxu0
        %v1349 = vadd.f32 0.0, %v1348
        %v1350 = vpop.f32.mrb[0].mxu0
        %1351 = vdwg.mxu0
        %1352 = vmatprep.subr.mxu0 0.0
        %1353 = vmatpush1.msra.mxu0 %v1268
        %1354 = vmatprep.subr.mxu0 0.0
        %1355 = vmatpush1.msra.mxu0 %v1269
        %1356 = vmatprep.subr.mxu0 0.0
        %1357 = vmatpush1.msra.mxu0 %v1270
        %1358 = vmatprep.subr.mxu0 0.0
        %1359 = vmatpush1.msra.mxu0 %v1271
        %1360 = vmatprep.subr.mxu0 0.0
        %1361 = vmatpush1.msra.mxu0 %v1272
        %1362 = vmatprep.subr.mxu0 0.0
        %1363 = vmatpush1.msra.mxu0 %v1280
        %1364 = vmatprep.subr.mxu0 0.0
        %1365 = vmatpush1.msra.mxu0 0.0
        %1366 = vmatprep.subr.mxu0 0.0
        %1367 = vmatpush1.msra.mxu0 0.0
        %1368 = vmatprep.subr.mxu0 0.0
        %1369 = vmatpush1.msra.mxu0 0.0
        %1370 = vmatprep.subr.mxu0 0.0
        %1371 = vmatpush1.msra.mxu0 0.0
        %1372 = vmatprep.subr.mxu0 0.0
        %1373 = vmatpush1.msra.mxu0 0.0
        %1374 = vmatprep.subr.mxu0 0.0
        %1375 = vmatpush1.msra.mxu0 0.0
        %1376 = vmatprep.subr.mxu0 0.0
        %1377 = vmatpush1.msra.mxu0 0.0
        %1378 = vmatprep.subr.mxu0 0.0
        %1379 = vmatpush1.msra.mxu0 0.0
        %1380 = vmatprep.subr.mxu0 0.0
        %1381 = vmatpush1.msra.mxu0 0.0
        %1382 = vmatprep.subr.mxu0 0.0
        %1383 = vmatpush1.msra.mxu0 0.0
        %1384 = vmatprep.subr.mxu0 0.0
        %1385 = vmatpush1.msra.mxu0 0.0
        %1386 = vmatprep.subr.mxu0 0.0
        %1387 = vmatpush1.msra.mxu0 0.0
        %1388 = vmatprep.subr.mxu0 0.0
        %1389 = vmatpush1.msra.mxu0 0.0
        %1390 = vmatprep.subr.mxu0 0.0
        %1391 = vmatpush1.msra.mxu0 0.0
        %1392 = vmatprep.subr.mxu0 0.0
        %1393 = vmatpush1.msra.mxu0 0.0
        %1394 = vmatprep.subr.mxu0 0.0
        %1395 = vmatpush1.msra.mxu0 0.0
        %1396 = vmatprep.subr.mxu0 0.0
        %1397 = vmatpush1.msra.mxu0 0.0
        %1398 = vmatprep.subr.mxu0 0.0
        %1399 = vmatpush1.msra.mxu0 0.0
        %1400 = vmatprep.subr.mxu0 0.0
        %1401 = vmatpush1.msra.mxu0 0.0
        %1402 = vmatprep.subr.mxu0 0.0
        %1403 = vmatpush1.msra.mxu0 0.0
        %1404 = vmatprep.subr.mxu0 0.0
        %1405 = vmatpush1.msra.mxu0 0.0
        %1406 = vmatprep.subr.mxu0 0.0
        %1407 = vmatpush1.msra.mxu0 0.0
        %1408 = vmatprep.subr.mxu0 0.0
        %1409 = vmatpush1.msra.mxu0 0.0
        %1410 = vmatprep.subr.mxu0 0.0
        %1411 = vmatpush1.msra.mxu0 0.0
        %1412 = vmatprep.subr.mxu0 0.0
        %1413 = vmatpush1.msra.mxu0 0.0
        %1414 = vmatprep.subr.mxu0 0.0
        %1415 = vmatpush1.msra.mxu0 0.0
        %1416 = vmatprep.mubr.f32.mxu0 0.0
        %1417 = vmatmul.mubr.f32.gmra.mrb[0].mxu0 %v1276
        %v1418 = vpop.f32.mrb[0].mxu0
        %v1419 = vadd.f32 %v1349, %v1418
        %v1420 = vpop.f32.mrb[0].mxu0
        %1421 = vdwg.mxu0
        %v1422 = vadd.f32 %v1219, %v1419
        %1423 = vset.pattern.permute.xlu0 0
        %1424 = vperm.xlu0 %1423, %v1044
        %v1425 = vpop.permute.xlu0 %1424
        %vm1426 = vcmp.eq.s32.totalorder %v1037, %v1425
        %v1427 = vsel %vm1426, 1, 0
        %v1428 = vcvt.s32.f32 %v1427
        %v1429 = vld [vmem:[%s15] sm:$0xff]
        %v1430 = vld [vmem:[%s15 + $0x8] sm:$0xff]
        %v1431 = vld [vmem:[%s15 + $0x10] sm:$0xff]
        %v1432 = vld [vmem:[%s15 + $0x18] sm:$0xff]
        %v1433 = vld [vmem:[%s15 + $0x20] sm:$0xff]
        %v1434 = vld [vmem:[%s15 + $0x28] sm:$0xff]
        %v1435 = vld [vmem:[%s15 + $0x30] sm:$0x3]
        %v1437 = vsel %vm1067, %v1428, 0
        %v1440 = vsel %vm1071, %v1435, 0
        %1442 = vmatprep.subr.mxu0 0.0
        %1443 = vmatpush1.msra.mxu0 %v1429
        %1444 = vmatprep.subr.mxu0 0.0
        %1445 = vmatpush1.msra.mxu0 %v1430
        %1446 = vmatprep.subr.mxu0 0.0
        %1447 = vmatpush1.msra.mxu0 %v1431
        %1448 = vmatprep.subr.mxu0 0.0
        %1449 = vmatpush1.msra.mxu0 %v1432
        %1450 = vmatprep.subr.mxu0 0.0
        %1451 = vmatpush1.msra.mxu0 %v1433
        %1452 = vmatprep.subr.mxu0 0.0
        %1453 = vmatpush1.msra.mxu0 %v1434
        %1454 = vmatprep.subr.mxu0 0.0
        %1455 = vmatpush1.msra.mxu0 %v1440
        %1456 = vmatprep.subr.mxu0 0.0
        %1457 = vmatpush1.msra.mxu0 0.0
        %1458 = vmatprep.subr.mxu0 0.0
        %1459 = vmatpush1.msra.mxu0 0.0
        %1460 = vmatprep.subr.mxu0 0.0
        %1461 = vmatpush1.msra.mxu0 0.0
        %1462 = vmatprep.subr.mxu0 0.0
        %1463 = vmatpush1.msra.mxu0 0.0
        %1464 = vmatprep.subr.mxu0 0.0
        %1465 = vmatpush1.msra.mxu0 0.0
        %1466 = vmatprep.subr.mxu0 0.0
        %1467 = vmatpush1.msra.mxu0 0.0
        %1468 = vmatprep.subr.mxu0 0.0
        %1469 = vmatpush1.msra.mxu0 0.0
        %1470 = vmatprep.subr.mxu0 0.0
        %1471 = vmatpush1.msra.mxu0 0.0
        %1472 = vmatprep.subr.mxu0 0.0
        %1473 = vmatpush1.msra.mxu0 0.0
        %1474 = vmatprep.subr.mxu0 0.0
        %1475 = vmatpush1.msra.mxu0 0.0
        %1476 = vmatprep.subr.mxu0 0.0
        %1477 = vmatpush1.msra.mxu0 0.0
        %1478 = vmatprep.subr.mxu0 0.0
        %1479 = vmatpush1.msra.mxu0 0.0
        %1480 = vmatprep.subr.mxu0 0.0
        %1481 = vmatpush1.msra.mxu0 0.0
        %1482 = vmatprep.subr.mxu0 0.0
        %1483 = vmatpush1.msra.mxu0 0.0
        %1484 = vmatprep.subr.mxu0 0.0
        %1485 = vmatpush1.msra.mxu0 0.0
        %1486 = vmatprep.subr.mxu0 0.0
        %1487 = vmatpush1.msra.mxu0 0.0
        %1488 = vmatprep.subr.mxu0 0.0
        %1489 = vmatpush1.msra.mxu0 0.0
        %1490 = vmatprep.subr.mxu0 0.0
        %1491 = vmatpush1.msra.mxu0 0.0
        %1492 = vmatprep.subr.mxu0 0.0
        %1493 = vmatpush1.msra.mxu0 0.0
        %1494 = vmatprep.subr.mxu0 0.0
        %1495 = vmatpush1.msra.mxu0 0.0
        %1496 = vmatprep.subr.mxu0 0.0
        %1497 = vmatpush1.msra.mxu0 0.0
        %1498 = vmatprep.subr.mxu0 0.0
        %1499 = vmatpush1.msra.mxu0 0.0
        %1500 = vmatprep.subr.mxu0 0.0
        %1501 = vmatpush1.msra.mxu0 0.0
        %1502 = vmatprep.subr.mxu0 0.0
        %1503 = vmatpush1.msra.mxu0 0.0
        %1504 = vmatprep.subr.mxu0 0.0
        %1505 = vmatpush1.msra.mxu0 0.0
        %1506 = vmatprep.mubr.f32.mxu0 0.0
        %1507 = vmatmul.mubr.f32.gmra.mrb[0].mxu0 %v1437
        %v1508 = vpop.f32.mrb[0].mxu0
        %v1509 = vadd.f32 0.0, %v1508
        %v1510 = vpop.f32.mrb[0].mxu0
        %1511 = vdwg.mxu0
        %v1512 = vadd.f32 %v1422, %v1509
        %v1513 = vld [vmem:[%s17] sm:$0xff]
        %v1514 = vadd.f32 %v1512, %v1513
        %v1515 = vld [vmem:[%s19] sm:$0xff]
        %v1516 = vld [vmem:[%s19 + $0x8] sm:$0xff]
        %v1517 = vld [vmem:[%s19 + $0x10] sm:$0xff]
        %v1518 = vld [vmem:[%s19 + $0x18] sm:$0xff]
        %v1519 = vld [vmem:[%s19 + $0x20] sm:$0xff]
        %v1520 = vld [vmem:[%s19 + $0x28] sm:$0xff]
        %v1521 = vld [vmem:[%s19 + $0x30] sm:$0x3]
        %v1522 = vld [vmem:[%s21] sm:$0xff]
        %v1523 = vld [vmem:[%s21 + $0x8] sm:$0x3]
        %v1525 = vsel %vm1071, %v1523, 0
        %1527 = vmatprep.subr.mxu0 0.0
        %1528 = vmatpush1.msra.mxu0 %v1522
        %1529 = vmatprep.subr.mxu0 0.0
        %1530 = vmatpush1.msra.mxu0 %v1525
        %1531 = vmatprep.subr.mxu0 0.0
        %1532 = vmatpush1.msra.mxu0 0.0
        %1533 = vmatprep.subr.mxu0 0.0
        %1534 = vmatpush1.msra.mxu0 0.0
        %1535 = vmatprep.subr.mxu0 0.0
        %1536 = vmatpush1.msra.mxu0 0.0
        %1537 = vmatprep.subr.mxu0 0.0
        %1538 = vmatpush1.msra.mxu0 0.0
        %1539 = vmatprep.subr.mxu0 0.0
        %1540 = vmatpush1.msra.mxu0 0.0
        %1541 = vmatprep.subr.mxu0 0.0
        %1542 = vmatpush1.msra.mxu0 0.0
        %1543 = vmatprep.subr.mxu0 0.0
        %1544 = vmatpush1.msra.mxu0 0.0
        %1545 = vmatprep.subr.mxu0 0.0
        %1546 = vmatpush1.msra.mxu0 0.0
        %1547 = vmatprep.subr.mxu0 0.0
        %1548 = vmatpush1.msra.mxu0 0.0
        %1549 = vmatprep.subr.mxu0 0.0
        %1550 = vmatpush1.msra.mxu0 0.0
        %1551 = vmatprep.subr.mxu0 0.0
        %1552 = vmatpush1.msra.mxu0 0.0
        %1553 = vmatprep.subr.mxu0 0.0
        %1554 = vmatpush1.msra.mxu0 0.0
        %1555 = vmatprep.subr.mxu0 0.0
        %1556 = vmatpush1.msra.mxu0 0.0
        %1557 = vmatprep.subr.mxu0 0.0
        %1558 = vmatpush1.msra.mxu0 0.0
        %1559 = vmatprep.subr.mxu0 0.0
        %1560 = vmatpush1.msra.mxu0 0.0
        %1561 = vmatprep.subr.mxu0 0.0
        %1562 = vmatpush1.msra.mxu0 0.0
        %1563 = vmatprep.subr.mxu0 0.0
        %1564 = vmatpush1.msra.mxu0 0.0
        %1565 = vmatprep.subr.mxu0 0.0
        %1566 = vmatpush1.msra.mxu0 0.0
        %1567 = vmatprep.subr.mxu0 0.0
        %1568 = vmatpush1.msra.mxu0 0.0
        %1569 = vmatprep.subr.mxu0 0.0
        %1570 = vmatpush1.msra.mxu0 0.0
        %1571 = vmatprep.subr.mxu0 0.0
        %1572 = vmatpush1.msra.mxu0 0.0
        %1573 = vmatprep.subr.mxu0 0.0
        %1574 = vmatpush1.msra.mxu0 0.0
        %1575 = vmatprep.subr.mxu0 0.0
        %1576 = vmatpush1.msra.mxu0 0.0
        %1577 = vmatprep.subr.mxu0 0.0
        %1578 = vmatpush1.msra.mxu0 0.0
        %1579 = vmatprep.subr.mxu0 0.0
        %1580 = vmatpush1.msra.mxu0 0.0
        %1581 = vmatprep.subr.mxu0 0.0
        %1582 = vmatpush1.msra.mxu0 0.0
        %1583 = vmatprep.subr.mxu0 0.0
        %1584 = vmatpush1.msra.mxu0 0.0
        %1585 = vmatprep.subr.mxu0 0.0
        %1586 = vmatpush1.msra.mxu0 0.0
        %1587 = vmatprep.subr.mxu0 0.0
        %1588 = vmatpush1.msra.mxu0 0.0
        %1589 = vmatprep.subr.mxu0 0.0
        %1590 = vmatpush1.msra.mxu0 0.0
        %1591 = vmatprep.mubr.f32.mxu0 0.0
        %1592 = vmatmul.mubr.f32.gmra.mrb[0].mxu0 %v1147
        %v1593 = vpop.f32.mrb[0].mxu0
        %v1594 = vadd.f32 0.0, %v1593
        %v1595 = vpop.f32.mrb[0].mxu0
        %1596 = vdwg.mxu0
        %v1598 = vsel %vm1071, %v1521, 0
        %1600 = vmatprep.subr.mxu0 0.0
        %1601 = vmatpush1.msra.mxu0 %v1515
        %1602 = vmatprep.subr.mxu0 0.0
        %1603 = vmatpush1.msra.mxu0 %v1516
        %1604 = vmatprep.subr.mxu0 0.0
        %1605 = vmatpush1.msra.mxu0 %v1517
        %1606 = vmatprep.subr.mxu0 0.0
        %1607 = vmatpush1.msra.mxu0 %v1518
        %1608 = vmatprep.subr.mxu0 0.0
        %1609 = vmatpush1.msra.mxu0 %v1519
        %1610 = vmatprep.subr.mxu0 0.0
        %1611 = vmatpush1.msra.mxu0 %v1520
        %1612 = vmatprep.subr.mxu0 0.0
        %1613 = vmatpush1.msra.mxu0 %v1598
        %1614 = vmatprep.subr.mxu0 0.0
        %1615 = vmatpush1.msra.mxu0 0.0
        %1616 = vmatprep.subr.mxu0 0.0
        %1617 = vmatpush1.msra.mxu0 0.0
        %1618 = vmatprep.subr.mxu0 0.0
        %1619 = vmatpush1.msra.mxu0 0.0
        %1620 = vmatprep.subr.mxu0 0.0
        %1621 = vmatpush1.msra.mxu0 0.0
        %1622 = vmatprep.subr.mxu0 0.0
        %1623 = vmatpush1.msra.mxu0 0.0
        %1624 = vmatprep.subr.mxu0 0.0
        %1625 = vmatpush1.msra.mxu0 0.0
        %1626 = vmatprep.subr.mxu0 0.0
        %1627 = vmatpush1.msra.mxu0 0.0
        %1628 = vmatprep.subr.mxu0 0.0
        %1629 = vmatpush1.msra.mxu0 0.0
        %1630 = vmatprep.subr.mxu0 0.0
        %1631 = vmatpush1.msra.mxu0 0.0
        %1632 = vmatprep.subr.mxu0 0.0
        %1633 = vmatpush1.msra.mxu0 0.0
        %1634 = vmatprep.subr.mxu0 0.0
        %1635 = vmatpush1.msra.mxu0 0.0
        %1636 = vmatprep.subr.mxu0 0.0
        %1637 = vmatpush1.msra.mxu0 0.0
        %1638 = vmatprep.subr.mxu0 0.0
        %1639 = vmatpush1.msra.mxu0 0.0
        %1640 = vmatprep.subr.mxu0 0.0
        %1641 = vmatpush1.msra.mxu0 0.0
        %1642 = vmatprep.subr.mxu0 0.0
        %1643 = vmatpush1.msra.mxu0 0.0
        %1644 = vmatprep.subr.mxu0 0.0
        %1645 = vmatpush1.msra.mxu0 0.0
        %1646 = vmatprep.subr.mxu0 0.0
        %1647 = vmatpush1.msra.mxu0 0.0
        %1648 = vmatprep.subr.mxu0 0.0
        %1649 = vmatpush1.msra.mxu0 0.0
        %1650 = vmatprep.subr.mxu0 0.0
        %1651 = vmatpush1.msra.mxu0 0.0
        %1652 = vmatprep.subr.mxu0 0.0
        %1653 = vmatpush1.msra.mxu0 0.0
        %1654 = vmatprep.subr.mxu0 0.0
        %1655 = vmatpush1.msra.mxu0 0.0
        %1656 = vmatprep.subr.mxu0 0.0
        %1657 = vmatpush1.msra.mxu0 0.0
        %1658 = vmatprep.subr.mxu0 0.0
        %1659 = vmatpush1.msra.mxu0 0.0
        %1660 = vmatprep.subr.mxu0 0.0
        %1661 = vmatpush1.msra.mxu0 0.0
        %1662 = vmatprep.subr.mxu0 0.0
        %1663 = vmatpush1.msra.mxu0 0.0
        %1664 = vmatprep.mubr.f32.mxu0 0.0
        %1665 = vmatmul.mubr.f32.gmra.mrb[0].mxu0 %v1069
        %v1666 = vpop.f32.mrb[0].mxu0
        %v1667 = vadd.f32 %v1594, %v1666
        %v1668 = vpop.f32.mrb[0].mxu0
        %1669 = vdwg.mxu0
        %v1670 = vld [vmem:[%s23] sm:$0xff]
        %v1671 = vadd.f32 %v1667, %v1670
        %v1672 = vld [vmem:[%s25] sm:$0x1]
        %v1673 = vld [vmem:[%s25 + $0x1] sm:$0x1]
        %v1674 = vld [vmem:[%s25 + $0x2] sm:$0x1]
        %v1675 = vld [vmem:[%s25 + $0x3] sm:$0x1]
        %vm1676 = vcmask 261120
        %v1677 = vsel %vm1676, %v1514, 0.0
        %1678 = vadd.xlane.f32.xlu0 %v1677
        %v1679 = vpop.xlane.xlu0 %1678
        %v1680 = vrcp.pop 32.0
        %v1681 = vmul.f32 %v1679, %v1680
        %v1682 = vsub.f32 %v1514, %v1681
        %v1683 = vmul.f32 %v1682, %v1682
        %v1684 = vsel %vm1676, %v1683, 0.0
        %1685 = vadd.xlane.f32.xlu0 %v1684
        %v1686 = vpop.xlane.xlu0 %1685
        %v1687 = vmul.f32 %v1686, %v1680
        %v1688 = vadd.f32 %v1687, 1e-05
        %v1689 = vrsqrt.pop %v1688
        %v1690 = vmul.f32 %v1682, %v1689
        %v1692 = vlaneseq
        %v1693 = vshrl.u32 %v1692, 7
        %v1694 = vsub.s32 0, %v1693
        %v1695 = vrot.slane %v1672, %v1694
        %v1697 = vmul.f32 %v1690, %v1695
        %v1699 = vlaneseq
        %v1700 = vshrl.u32 %v1699, 7
        %v1701 = vsub.s32 0, %v1700
        %v1702 = vrot.slane %v1673, %v1701
        %v1704 = vadd.f32 %v1697, %v1702
        %v1705 = vpack.c.bf16 %v1704, %v1704
        %v1706 = vld [vmem:[%s27] sm:$0xf]
        %v1707 = vld [vmem:[%s27 + $0x4] sm:$0xf]
        %v1708 = vld [vmem:[%s27 + $0x8] sm:$0xf]
        %v1709 = vld [vmem:[%s27 + $0xc] sm:$0xf]
        %v1710 = vld [vmem:[%s31] sm:$0x1]
        %v1712 = vlaneseq
        %v1713 = vshrl.u32 %v1712, 7
        %v1714 = vsub.s32 0, %v1713
        %v1715 = vrot.slane %v1710, %v1714
        %v1721 = vunpack.c.l.b16 %v1706
        %v1722 = vunpack.c.l.b16 %v1707
        %v1723 = vunpack.c.l.b16 %v1708
        %v1724 = vunpack.c.l.b16 %v1709
        %v1725 = vpack.c.b16 %v1722, %v1721
        %v1726 = vpack.c.b16 %v1724, %v1723
        %v1730 = vsel %vm1676, %v1705, 0
        %1732 = vmatprep.subr.bf16.mxu0 0
        %1733 = vmatpush1.bf16.msra.mxu0 %v1725
        %1734 = vmatprep.subr.bf16.mxu0 0
        %1735 = vmatpush1.bf16.msra.mxu0 %v1726
        %1736 = vmatprep.subr.bf16.mxu0 0
        %1737 = vmatpush1.bf16.msra.mxu0 0
        %1738 = vmatprep.subr.bf16.mxu0 0
        %1739 = vmatpush1.bf16.msra.mxu0 0
        %1740 = vmatprep.subr.bf16.mxu0 0
        %1741 = vmatpush1.bf16.msra.mxu0 0
        %1742 = vmatprep.subr.bf16.mxu0 0
        %1743 = vmatpush1.bf16.msra.mxu0 0
        %1744 = vmatprep.subr.bf16.mxu0 0
        %1745 = vmatpush1.bf16.msra.mxu0 0
        %1746 = vmatprep.subr.bf16.mxu0 0
        %1747 = vmatpush1.bf16.msra.mxu0 0
        %1748 = vmatprep.subr.bf16.mxu0 0
        %1749 = vmatpush1.bf16.msra.mxu0 0
        %1750 = vmatprep.subr.bf16.mxu0 0
        %1751 = vmatpush1.bf16.msra.mxu0 0
        %1752 = vmatprep.subr.bf16.mxu0 0
        %1753 = vmatpush1.bf16.msra.mxu0 0
        %1754 = vmatprep.subr.bf16.mxu0 0
        %1755 = vmatpush1.bf16.msra.mxu0 0
        %1756 = vmatprep.subr.bf16.mxu0 0
        %1757 = vmatpush1.bf16.msra.mxu0 0
        %1758 = vmatprep.subr.bf16.mxu0 0
        %1759 = vmatpush1.bf16.msra.mxu0 0
        %1760 = vmatprep.subr.bf16.mxu0 0
        %1761 = vmatpush1.bf16.msra.mxu0 0
        %1762 = vmatprep.subr.bf16.mxu0 0
        %1763 = vmatpush1.bf16.msra.mxu0 0
        %1764 = vmatprep.mubr.bf16.mxu0 0
        %1765 = vmatmul.mubr.bf16.gmra.mrb[0].mxu0 %v1730
        %v1766 = vpop.f32.mrb[0].mxu0
        %v1767 = vadd.f32 %v1715, %v1766
        %v1768 = vpop.f32.mrb[0].mxu0
        %v1769 = vpop.f32.mrb[0].mxu0
        %v1770 = vpop.f32.mrb[0].mxu0
        %1771 = vdwg.mxu0
        %v1772 = vld [vmem:[%s29] sm:$0xf]
        %v1773 = vld [vmem:[%s29 + $0x4] sm:$0xf]
        %v1774 = vld [vmem:[%s29 + $0x8] sm:$0xf]
        %v1775 = vld [vmem:[%s29 + $0xc] sm:$0xf]
        %v1776 = vld [vmem:[%s33] sm:$0x1]
        %v1778 = vlaneseq
        %v1779 = vshrl.u32 %v1778, 7
        %v1780 = vsub.s32 0, %v1779
        %v1781 = vrot.slane %v1776, %v1780
        %v1787 = vunpack.c.l.b16 %v1772
        %v1788 = vunpack.c.l.b16 %v1773
        %v1789 = vunpack.c.l.b16 %v1774
        %v1790 = vunpack.c.l.b16 %v1775
        %v1791 = vpack.c.b16 %v1788, %v1787
        %v1792 = vpack.c.b16 %v1790, %v1789
        %1795 = vmatprep.subr.bf16.mxu0 0
        %1796 = vmatpush1.bf16.msra.mxu0 %v1791
        %1797 = vmatprep.subr.bf16.mxu0 0
        %1798 = vmatpush1.bf16.msra.mxu0 %v1792
        %1799 = vmatprep.subr.bf16.mxu0 0
        %1800 = vmatpush1.bf16.msra.mxu0 0
        %1801 = vmatprep.subr.bf16.mxu0 0
        %1802 = vmatpush1.bf16.msra.mxu0 0
        %1803 = vmatprep.subr.bf16.mxu0 0
        %1804 = vmatpush1.bf16.msra.mxu0 0
        %1805 = vmatprep.subr.bf16.mxu0 0
        %1806 = vmatpush1.bf16.msra.mxu0 0
        %1807 = vmatprep.subr.bf16.mxu0 0
        %1808 = vmatpush1.bf16.msra.mxu0 0
        %1809 = vmatprep.subr.bf16.mxu0 0
        %1810 = vmatpush1.bf16.msra.mxu0 0
        %1811 = vmatprep.subr.bf16.mxu0 0
        %1812 = vmatpush1.bf16.msra.mxu0 0
        %1813 = vmatprep.subr.bf16.mxu0 0
        %1814 = vmatpush1.bf16.msra.mxu0 0
        %1815 = vmatprep.subr.bf16.mxu0 0
        %1816 = vmatpush1.bf16.msra.mxu0 0
        %1817 = vmatprep.subr.bf16.mxu0 0
        %1818 = vmatpush1.bf16.msra.mxu0 0
        %1819 = vmatprep.subr.bf16.mxu0 0
        %1820 = vmatpush1.bf16.msra.mxu0 0
        %1821 = vmatprep.subr.bf16.mxu0 0
        %1822 = vmatpush1.bf16.msra.mxu0 0
        %1823 = vmatprep.subr.bf16.mxu0 0
        %1824 = vmatpush1.bf16.msra.mxu0 0
        %1825 = vmatprep.subr.bf16.mxu0 0
        %1826 = vmatpush1.bf16.msra.mxu0 0
        %1827 = vmatprep.mubr.bf16.mxu0 0
        %1828 = vmatmul.mubr.bf16.gmra.mrb[0].mxu0 %v1730
        %v1829 = vpop.f32.mrb[0].mxu0
        %v1830 = vadd.f32 %v1781, %v1829
        %v1831 = vpop.f32.mrb[0].mxu0
        %v1832 = vpop.f32.mrb[0].mxu0
        %v1833 = vpop.f32.mrb[0].mxu0
        %1834 = vdwg.mxu0
        %1836 = vrot.lane.b32.xlu0 %v1767, 120
        %v1837 = vpop.permute.xlu0 %1836
        %1839 = vrot.lane.b32.xlu0 %v1767, 112
        %v1840 = vpop.permute.xlu0 %1839
        %1842 = vrot.lane.b32.xlu0 %v1767, 104
        %v1843 = vpop.permute.xlu0 %1842
        %1846 = vrot.lane.b32.xlu0 %v1830, 120
        %v1847 = vpop.permute.xlu0 %1846
        %1849 = vrot.lane.b32.xlu0 %v1830, 112
        %v1850 = vpop.permute.xlu0 %1849
        %1852 = vrot.lane.b32.xlu0 %v1830, 104
        %v1853 = vpop.permute.xlu0 %1852
        %v1855 = vpack.c.bf16 %v1767, %v1767
        %v1856 = vpack.c.bf16 %v1837, %v1837
        %v1857 = vpack.c.bf16 %v1840, %v1840
        %v1858 = vpack.c.bf16 %v1843, %v1843
        %v1859 = vpack.c.bf16 %v1830, %v1830
        %v1860 = vpack.c.bf16 %v1847, %v1847
        %v1861 = vpack.c.bf16 %v1850, %v1850
        %v1862 = vpack.c.bf16 %v1853, %v1853
        %vm1863 = vcmask 64512
        %v1865 = vsel %vm1863, %v1855, 0
        %v1868 = vsel %vm1863, %v1859, 0
        %1870 = vmatprep.subr.bf16.mxu0 0
        %1871 = vmatpush1.bf16.xpose.msra.mxu0 %v1868
        %1872 = vmatprep.subr.bf16.mxu0 0
        %1873 = vmatpush1.bf16.xpose.msra.mxu0 0
        %1874 = vmatprep.subr.bf16.mxu0 0
        %1875 = vmatpush1.bf16.xpose.msra.mxu0 0
        %1876 = vmatprep.subr.bf16.mxu0 0
        %1877 = vmatpush1.bf16.xpose.msra.mxu0 0
        %1878 = vmatprep.subr.bf16.mxu0 0
        %1879 = vmatpush1.bf16.xpose.msra.mxu0 0
        %1880 = vmatprep.subr.bf16.mxu0 0
        %1881 = vmatpush1.bf16.xpose.msra.mxu0 0
        %1882 = vmatprep.subr.bf16.mxu0 0
        %1883 = vmatpush1.bf16.xpose.msra.mxu0 0
        %1884 = vmatprep.subr.bf16.mxu0 0
        %1885 = vmatpush1.bf16.xpose.msra.mxu0 0
        %1886 = vmatprep.subr.bf16.mxu0 0
        %1887 = vmatpush1.bf16.xpose.msra.mxu0 0
        %1888 = vmatprep.subr.bf16.mxu0 0
        %1889 = vmatpush1.bf16.xpose.msra.mxu0 0
        %1890 = vmatprep.subr.bf16.mxu0 0
        %1891 = vmatpush1.bf16.xpose.msra.mxu0 0
        %1892 = vmatprep.subr.bf16.mxu0 0
        %1893 = vmatpush1.bf16.xpose.msra.mxu0 0
        %1894 = vmatprep.subr.bf16.mxu0 0
        %1895 = vmatpush1.bf16.xpose.msra.mxu0 0
        %1896 = vmatprep.subr.bf16.mxu0 0
        %1897 = vmatpush1.bf16.xpose.msra.mxu0 0
        %1898 = vmatprep.subr.bf16.mxu0 0
        %1899 = vmatpush1.bf16.xpose.msra.mxu0 0
        %1900 = vmatprep.subr.bf16.mxu0 0
        %1901 = vmatpush1.bf16.xpose.msra.mxu0 0
        %1902 = vmatprep.mubr.bf16.mxu0 0
        %1903 = vmatmul.mubr.bf16.gmra.mrb[0].mxu0 %v1865
        %v1904 = vpop.f32.mrb[0].mxu0
        %v1905 = vadd.f32 0.0, %v1904
        %v1906 = vpop.f32.mrb[0].mxu0
        %v1907 = vpop.f32.mrb[0].mxu0
        %v1908 = vpop.f32.mrb[0].mxu0
        %1909 = vdwg.mxu0
        %v1911 = vsel %vm1863, %v1856, 0
        %v1914 = vsel %vm1863, %v1860, 0
        %1916 = vmatprep.subr.bf16.mxu0 0
        %1917 = vmatpush1.bf16.xpose.msra.mxu0 %v1914
        %1918 = vmatprep.subr.bf16.mxu0 0
        %1919 = vmatpush1.bf16.xpose.msra.mxu0 0
        %1920 = vmatprep.subr.bf16.mxu0 0
        %1921 = vmatpush1.bf16.xpose.msra.mxu0 0
        %1922 = vmatprep.subr.bf16.mxu0 0
        %1923 = vmatpush1.bf16.xpose.msra.mxu0 0
        %1924 = vmatprep.subr.bf16.mxu0 0
        %1925 = vmatpush1.bf16.xpose.msra.mxu0 0
        %1926 = vmatprep.subr.bf16.mxu0 0
        %1927 = vmatpush1.bf16.xpose.msra.mxu0 0
        %1928 = vmatprep.subr.bf16.mxu0 0
        %1929 = vmatpush1.bf16.xpose.msra.mxu0 0
        %1930 = vmatprep.subr.bf16.mxu0 0
        %1931 = vmatpush1.bf16.xpose.msra.mxu0 0
        %1932 = vmatprep.subr.bf16.mxu0 0
        %1933 = vmatpush1.bf16.xpose.msra.mxu0 0
        %1934 = vmatprep.subr.bf16.mxu0 0
        %1935 = vmatpush1.bf16.xpose.msra.mxu0 0
        %1936 = vmatprep.subr.bf16.mxu0 0
        %1937 = vmatpush1.bf16.xpose.msra.mxu0 0
        %1938 = vmatprep.subr.bf16.mxu0 0
        %1939 = vmatpush1.bf16.xpose.msra.mxu0 0
        %1940 = vmatprep.subr.bf16.mxu0 0
        %1941 = vmatpush1.bf16.xpose.msra.mxu0 0
        %1942 = vmatprep.subr.bf16.mxu0 0
        %1943 = vmatpush1.bf16.xpose.msra.mxu0 0
        %1944 = vmatprep.subr.bf16.mxu0 0
        %1945 = vmatpush1.bf16.xpose.msra.mxu0 0
        %1946 = vmatprep.subr.bf16.mxu0 0
        %1947 = vmatpush1.bf16.xpose.msra.mxu0 0
        %1948 = vmatprep.mubr.bf16.mxu0 0
        %1949 = vmatmul.mubr.bf16.gmra.mrb[0].mxu0 %v1911
        %v1950 = vpop.f32.mrb[0].mxu0
        %v1951 = vadd.f32 0.0, %v1950
        %v1952 = vpop.f32.mrb[0].mxu0
        %v1953 = vpop.f32.mrb[0].mxu0
        %v1954 = vpop.f32.mrb[0].mxu0
        %1955 = vdwg.mxu0
        %v1957 = vsel %vm1863, %v1857, 0
        %v1960 = vsel %vm1863, %v1861, 0
        %1962 = vmatprep.subr.bf16.mxu0 0
        %1963 = vmatpush1.bf16.xpose.msra.mxu0 %v1960
        %1964 = vmatprep.subr.bf16.mxu0 0
        %1965 = vmatpush1.bf16.xpose.msra.mxu0 0
        %1966 = vmatprep.subr.bf16.mxu0 0
        %1967 = vmatpush1.bf16.xpose.msra.mxu0 0
        %1968 = vmatprep.subr.bf16.mxu0 0
        %1969 = vmatpush1.bf16.xpose.msra.mxu0 0
        %1970 = vmatprep.subr.bf16.mxu0 0
        %1971 = vmatpush1.bf16.xpose.msra.mxu0 0
        %1972 = vmatprep.subr.bf16.mxu0 0
        %1973 = vmatpush1.bf16.xpose.msra.mxu0 0
        %1974 = vmatprep.subr.bf16.mxu0 0
        %1975 = vmatpush1.bf16.xpose.msra.mxu0 0
        %1976 = vmatprep.subr.bf16.mxu0 0
        %1977 = vmatpush1.bf16.xpose.msra.mxu0 0
        %1978 = vmatprep.subr.bf16.mxu0 0
        %1979 = vmatpush1.bf16.xpose.msra.mxu0 0
        %1980 = vmatprep.subr.bf16.mxu0 0
        %1981 = vmatpush1.bf16.xpose.msra.mxu0 0
        %1982 = vmatprep.subr.bf16.mxu0 0
        %1983 = vmatpush1.bf16.xpose.msra.mxu0 0
        %1984 = vmatprep.subr.bf16.mxu0 0
        %1985 = vmatpush1.bf16.xpose.msra.mxu0 0
        %1986 = vmatprep.subr.bf16.mxu0 0
        %1987 = vmatpush1.bf16.xpose.msra.mxu0 0
        %1988 = vmatprep.subr.bf16.mxu0 0
        %1989 = vmatpush1.bf16.xpose.msra.mxu0 0
        %1990 = vmatprep.subr.bf16.mxu0 0
        %1991 = vmatpush1.bf16.xpose.msra.mxu0 0
        %1992 = vmatprep.subr.bf16.mxu0 0
        %1993 = vmatpush1.bf16.xpose.msra.mxu0 0
        %1994 = vmatprep.mubr.bf16.mxu0 0
        %1995 = vmatmul.mubr.bf16.gmra.mrb[0].mxu0 %v1957
        %v1996 = vpop.f32.mrb[0].mxu0
        %v1997 = vadd.f32 0.0, %v1996
        %v1998 = vpop.f32.mrb[0].mxu0
        %v1999 = vpop.f32.mrb[0].mxu0
        %v2000 = vpop.f32.mrb[0].mxu0
        %2001 = vdwg.mxu0
        %v2003 = vsel %vm1863, %v1858, 0
        %v2006 = vsel %vm1863, %v1862, 0
        %2008 = vmatprep.subr.bf16.mxu0 0
        %2009 = vmatpush1.bf16.xpose.msra.mxu0 %v2006
        %2010 = vmatprep.subr.bf16.mxu0 0
        %2011 = vmatpush1.bf16.xpose.msra.mxu0 0
        %2012 = vmatprep.subr.bf16.mxu0 0
        %2013 = vmatpush1.bf16.xpose.msra.mxu0 0
        %2014 = vmatprep.subr.bf16.mxu0 0
        %2015 = vmatpush1.bf16.xpose.msra.mxu0 0
        %2016 = vmatprep.subr.bf16.mxu0 0
        %2017 = vmatpush1.bf16.xpose.msra.mxu0 0
        %2018 = vmatprep.subr.bf16.mxu0 0
        %2019 = vmatpush1.bf16.xpose.msra.mxu0 0
        %2020 = vmatprep.subr.bf16.mxu0 0
        %2021 = vmatpush1.bf16.xpose.msra.mxu0 0
        %2022 = vmatprep.subr.bf16.mxu0 0
        %2023 = vmatpush1.bf16.xpose.msra.mxu0 0
        %2024 = vmatprep.subr.bf16.mxu0 0
        %2025 = vmatpush1.bf16.xpose.msra.mxu0 0
        %2026 = vmatprep.subr.bf16.mxu0 0
        %2027 = vmatpush1.bf16.xpose.msra.mxu0 0
        %2028 = vmatprep.subr.bf16.mxu0 0
        %2029 = vmatpush1.bf16.xpose.msra.mxu0 0
        %2030 = vmatprep.subr.bf16.mxu0 0
        %2031 = vmatpush1.bf16.xpose.msra.mxu0 0
        %2032 = vmatprep.subr.bf16.mxu0 0
        %2033 = vmatpush1.bf16.xpose.msra.mxu0 0
        %2034 = vmatprep.subr.bf16.mxu0 0
        %2035 = vmatpush1.bf16.xpose.msra.mxu0 0
        %2036 = vmatprep.subr.bf16.mxu0 0
        %2037 = vmatpush1.bf16.xpose.msra.mxu0 0
        %2038 = vmatprep.subr.bf16.mxu0 0
        %2039 = vmatpush1.bf16.xpose.msra.mxu0 0
        %2040 = vmatprep.mubr.bf16.mxu0 0
        %2041 = vmatmul.mubr.bf16.gmra.mrb[0].mxu0 %v2003
        %v2042 = vpop.f32.mrb[0].mxu0
        %v2043 = vadd.f32 0.0, %v2042
        %v2044 = vpop.f32.mrb[0].mxu0
        %v2045 = vpop.f32.mrb[0].mxu0
        %v2046 = vpop.f32.mrb[0].mxu0
        %2047 = vdwg.mxu0
        %v2048 = vmul.f32 %v1905, 0.35355338
        %v2049 = vmul.f32 %v1951, 0.35355338
        %v2050 = vmul.f32 %v1997, 0.35355338
        %v2051 = vmul.f32 %v2043, 0.35355338
        %v2052 = vadd.f32 %v2048, %v1039
        %v2053 = vadd.f32 %v2049, %v1039
        %v2054 = vadd.f32 %v2050, %v1039
        %v2055 = vadd.f32 %v2051, %v1039
        %v2056 = vsel %vm1863, %v2052, -inf
        %2057 = vmax.xlane.f32.xlu0 %v2056
        %v2058 = vpop.xlane.xlu0 %2057
        %v2059 = vsel %vm1863, %v2053, -inf
        %2060 = vmax.xlane.f32.xlu0 %v2059
        %v2061 = vpop.xlane.xlu0 %2060
        %v2062 = vsel %vm1863, %v2054, -inf
        %2063 = vmax.xlane.f32.xlu0 %v2062
        %v2064 = vpop.xlane.xlu0 %2063
        %v2065 = vsel %vm1863, %v2055, -inf
        %2066 = vmax.xlane.f32.xlu0 %v2065
        %v2067 = vpop.xlane.xlu0 %2066
        %v2068 = vsub.f32 %v2052, %v2058
        %v2069 = vsub.f32 %v2053, %v2061
        %v2070 = vsub.f32 %v2054, %v2064
        %v2071 = vsub.f32 %v2055, %v2067
        %v2072 = vmul.f32 %v2068, 1.442695
        %v2073 = vpow.pop %v2072
        %v2074 = vmul.f32 %v2069, 1.442695
        %v2075 = vpow.pop %v2074
        %v2076 = vmul.f32 %v2070, 1.442695
        %v2077 = vpow.pop %v2076
        %v2078 = vmul.f32 %v2071, 1.442695
        %v2079 = vpow.pop %v2078
        %v2080 = vsel %vm1863, %v2073, 0.0
        %2081 = vadd.xlane.f32.xlu0 %v2080
        %v2082 = vpop.xlane.xlu0 %2081
        %v2083 = vsel %vm1863, %v2075, 0.0
        %2084 = vadd.xlane.f32.xlu0 %v2083
        %v2085 = vpop.xlane.xlu0 %2084
        %v2086 = vsel %vm1863, %v2077, 0.0
        %2087 = vadd.xlane.f32.xlu0 %v2086
        %v2088 = vpop.xlane.xlu0 %2087
        %v2089 = vsel %vm1863, %v2079, 0.0
        %2090 = vadd.xlane.f32.xlu0 %v2089
        %v2091 = vpop.xlane.xlu0 %2090
        %v2092 = vrcp.pop %v2082
        %v2093 = vrcp.pop %v2085
        %v2094 = vrcp.pop %v2088
        %v2095 = vrcp.pop %v2091
        %v2096 = vmul.f32 %v2073, %v2092
        %v2097 = vmul.f32 %v2075, %v2093
        %v2098 = vmul.f32 %v2077, %v2094
        %v2099 = vmul.f32 %v2079, %v2095
        %v2100 = vpack.c.bf16 %v2096, %v2096
        %v2101 = vpack.c.bf16 %v2097, %v2097
        %v2102 = vpack.c.bf16 %v2098, %v2098
        %v2103 = vpack.c.bf16 %v2099, %v2099
        %2105 = vrot.lane.b32.xlu0 %v1859, 96
        %v2106 = vpop.permute.xlu0 %2105
        %v2108 = vsel %vm1863, %v2100, 0
        %vm2110 = vcmask 1043456
        %v2112 = vsel %vm2110, %v2106, 0
        %2114 = vmatprep.subr.bf16.mxu0 0
        %2115 = vmatpush1.bf16.msra.mxu0 %v2112
        %2116 = vmatprep.subr.bf16.mxu0 0
        %2117 = vmatpush1.bf16.msra.mxu0 0
        %2118 = vmatprep.subr.bf16.mxu0 0
        %2119 = vmatpush1.bf16.msra.mxu0 0
        %2120 = vmatprep.subr.bf16.mxu0 0
        %2121 = vmatpush1.bf16.msra.mxu0 0
        %2122 = vmatprep.subr.bf16.mxu0 0
        %2123 = vmatpush1.bf16.msra.mxu0 0
        %2124 = vmatprep.subr.bf16.mxu0 0
        %2125 = vmatpush1.bf16.msra.mxu0 0
        %2126 = vmatprep.subr.bf16.mxu0 0
        %2127 = vmatpush1.bf16.msra.mxu0 0
        %2128 = vmatprep.subr.bf16.mxu0 0
        %2129 = vmatpush1.bf16.msra.mxu0 0
        %2130 = vmatprep.subr.bf16.mxu0 0
        %2131 = vmatpush1.bf16.msra.mxu0 0
        %2132 = vmatprep.subr.bf16.mxu0 0
        %2133 = vmatpush1.bf16.msra.mxu0 0
        %2134 = vmatprep.subr.bf16.mxu0 0
        %2135 = vmatpush1.bf16.msra.mxu0 0
        %2136 = vmatprep.subr.bf16.mxu0 0
        %2137 = vmatpush1.bf16.msra.mxu0 0
        %2138 = vmatprep.subr.bf16.mxu0 0
        %2139 = vmatpush1.bf16.msra.mxu0 0
        %2140 = vmatprep.subr.bf16.mxu0 0
        %2141 = vmatpush1.bf16.msra.mxu0 0
        %2142 = vmatprep.subr.bf16.mxu0 0
        %2143 = vmatpush1.bf16.msra.mxu0 0
        %2144 = vmatprep.subr.bf16.mxu0 0
        %2145 = vmatpush1.bf16.msra.mxu0 0
        %2146 = vmatprep.mubr.bf16.mxu0 0
        %2147 = vmatmul.mubr.bf16.gmra.mrb[0].mxu0 %v2108
        %v2148 = vpop.f32.mrb[0].mxu0
        %v2149 = vadd.f32 0.0, %v2148
        %v2150 = vpop.f32.mrb[0].mxu0
        %v2151 = vpop.f32.mrb[0].mxu0
        %v2152 = vpop.f32.mrb[0].mxu0
        %2153 = vdwg.mxu0
        %2155 = vrot.lane.b32.xlu0 %v1860, 96
        %v2156 = vpop.permute.xlu0 %2155
        %v2158 = vsel %vm1863, %v2101, 0
        %v2161 = vsel %vm2110, %v2156, 0
        %2163 = vmatprep.subr.bf16.mxu0 0
        %2164 = vmatpush1.bf16.msra.mxu0 %v2161
        %2165 = vmatprep.subr.bf16.mxu0 0
        %2166 = vmatpush1.bf16.msra.mxu0 0
        %2167 = vmatprep.subr.bf16.mxu0 0
        %2168 = vmatpush1.bf16.msra.mxu0 0
        %2169 = vmatprep.subr.bf16.mxu0 0
        %2170 = vmatpush1.bf16.msra.mxu0 0
        %2171 = vmatprep.subr.bf16.mxu0 0
        %2172 = vmatpush1.bf16.msra.mxu0 0
        %2173 = vmatprep.subr.bf16.mxu0 0
        %2174 = vmatpush1.bf16.msra.mxu0 0
        %2175 = vmatprep.subr.bf16.mxu0 0
        %2176 = vmatpush1.bf16.msra.mxu0 0
        %2177 = vmatprep.subr.bf16.mxu0 0
        %2178 = vmatpush1.bf16.msra.mxu0 0
        %2179 = vmatprep.subr.bf16.mxu0 0
        %2180 = vmatpush1.bf16.msra.mxu0 0
        %2181 = vmatprep.subr.bf16.mxu0 0
        %2182 = vmatpush1.bf16.msra.mxu0 0
        %2183 = vmatprep.subr.bf16.mxu0 0
        %2184 = vmatpush1.bf16.msra.mxu0 0
        %2185 = vmatprep.subr.bf16.mxu0 0
        %2186 = vmatpush1.bf16.msra.mxu0 0
        %2187 = vmatprep.subr.bf16.mxu0 0
        %2188 = vmatpush1.bf16.msra.mxu0 0
        %2189 = vmatprep.subr.bf16.mxu0 0
        %2190 = vmatpush1.bf16.msra.mxu0 0
        %2191 = vmatprep.subr.bf16.mxu0 0
        %2192 = vmatpush1.bf16.msra.mxu0 0
        %2193 = vmatprep.subr.bf16.mxu0 0
        %2194 = vmatpush1.bf16.msra.mxu0 0
        %2195 = vmatprep.mubr.bf16.mxu0 0
        %2196 = vmatmul.mubr.bf16.gmra.mrb[0].mxu0 %v2158
        %v2197 = vpop.f32.mrb[0].mxu0
        %v2198 = vadd.f32 0.0, %v2197
        %v2199 = vpop.f32.mrb[0].mxu0
        %v2200 = vpop.f32.mrb[0].mxu0
        %v2201 = vpop.f32.mrb[0].mxu0
        %2202 = vdwg.mxu0
        %2204 = vrot.lane.b32.xlu0 %v1861, 96
        %v2205 = vpop.permute.xlu0 %2204
        %v2207 = vsel %vm1863, %v2102, 0
        %v2210 = vsel %vm2110, %v2205, 0
        %2212 = vmatprep.subr.bf16.mxu0 0
        %2213 = vmatpush1.bf16.msra.mxu0 %v2210
        %2214 = vmatprep.subr.bf16.mxu0 0
        %2215 = vmatpush1.bf16.msra.mxu0 0
        %2216 = vmatprep.subr.bf16.mxu0 0
        %2217 = vmatpush1.bf16.msra.mxu0 0
        %2218 = vmatprep.subr.bf16.mxu0 0
        %2219 = vmatpush1.bf16.msra.mxu0 0
        %2220 = vmatprep.subr.bf16.mxu0 0
        %2221 = vmatpush1.bf16.msra.mxu0 0
        %2222 = vmatprep.subr.bf16.mxu0 0
        %2223 = vmatpush1.bf16.msra.mxu0 0
        %2224 = vmatprep.subr.bf16.mxu0 0
        %2225 = vmatpush1.bf16.msra.mxu0 0
        %2226 = vmatprep.subr.bf16.mxu0 0
        %2227 = vmatpush1.bf16.msra.mxu0 0
        %2228 = vmatprep.subr.bf16.mxu0 0
        %2229 = vmatpush1.bf16.msra.mxu0 0
        %2230 = vmatprep.subr.bf16.mxu0 0
        %2231 = vmatpush1.bf16.msra.mxu0 0
        %2232 = vmatprep.subr.bf16.mxu0 0
        %2233 = vmatpush1.bf16.msra.mxu0 0
        %2234 = vmatprep.subr.bf16.mxu0 0
        %2235 = vmatpush1.bf16.msra.mxu0 0
        %2236 = vmatprep.subr.bf16.mxu0 0
        %2237 = vmatpush1.bf16.msra.mxu0 0
        %2238 = vmatprep.subr.bf16.mxu0 0
        %2239 = vmatpush1.bf16.msra.mxu0 0
        %2240 = vmatprep.subr.bf16.mxu0 0
        %2241 = vmatpush1.bf16.msra.mxu0 0
        %2242 = vmatprep.subr.bf16.mxu0 0
        %2243 = vmatpush1.bf16.msra.mxu0 0
        %2244 = vmatprep.mubr.bf16.mxu0 0
        %2245 = vmatmul.mubr.bf16.gmra.mrb[0].mxu0 %v2207
        %v2246 = vpop.f32.mrb[0].mxu0
        %v2247 = vadd.f32 0.0, %v2246
        %v2248 = vpop.f32.mrb[0].mxu0
        %v2249 = vpop.f32.mrb[0].mxu0
        %v2250 = vpop.f32.mrb[0].mxu0
        %2251 = vdwg.mxu0
        %2253 = vrot.lane.b32.xlu0 %v1862, 96
        %v2254 = vpop.permute.xlu0 %2253
        %v2256 = vsel %vm1863, %v2103, 0
        %v2259 = vsel %vm2110, %v2254, 0
        %2261 = vmatprep.subr.bf16.mxu0 0
        %2262 = vmatpush1.bf16.msra.mxu0 %v2259
        %2263 = vmatprep.subr.bf16.mxu0 0
        %2264 = vmatpush1.bf16.msra.mxu0 0
        %2265 = vmatprep.subr.bf16.mxu0 0
        %2266 = vmatpush1.bf16.msra.mxu0 0
        %2267 = vmatprep.subr.bf16.mxu0 0
        %2268 = vmatpush1.bf16.msra.mxu0 0
        %2269 = vmatprep.subr.bf16.mxu0 0
        %2270 = vmatpush1.bf16.msra.mxu0 0
        %2271 = vmatprep.subr.bf16.mxu0 0
        %2272 = vmatpush1.bf16.msra.mxu0 0
        %2273 = vmatprep.subr.bf16.mxu0 0
        %2274 = vmatpush1.bf16.msra.mxu0 0
        %2275 = vmatprep.subr.bf16.mxu0 0
        %2276 = vmatpush1.bf16.msra.mxu0 0
        %2277 = vmatprep.subr.bf16.mxu0 0
        %2278 = vmatpush1.bf16.msra.mxu0 0
        %2279 = vmatprep.subr.bf16.mxu0 0
        %2280 = vmatpush1.bf16.msra.mxu0 0
        %2281 = vmatprep.subr.bf16.mxu0 0
        %2282 = vmatpush1.bf16.msra.mxu0 0
        %2283 = vmatprep.subr.bf16.mxu0 0
        %2284 = vmatpush1.bf16.msra.mxu0 0
        %2285 = vmatprep.subr.bf16.mxu0 0
        %2286 = vmatpush1.bf16.msra.mxu0 0
        %2287 = vmatprep.subr.bf16.mxu0 0
        %2288 = vmatpush1.bf16.msra.mxu0 0
        %2289 = vmatprep.subr.bf16.mxu0 0
        %2290 = vmatpush1.bf16.msra.mxu0 0
        %2291 = vmatprep.subr.bf16.mxu0 0
        %2292 = vmatpush1.bf16.msra.mxu0 0
        %2293 = vmatprep.mubr.bf16.mxu0 0
        %2294 = vmatmul.mubr.bf16.gmra.mrb[0].mxu0 %v2256
        %v2295 = vpop.f32.mrb[0].mxu0
        %v2296 = vadd.f32 0.0, %v2295
        %v2297 = vpop.f32.mrb[0].mxu0
        %v2298 = vpop.f32.mrb[0].mxu0
        %v2299 = vpop.f32.mrb[0].mxu0
        %2300 = vdwg.mxu0
        %v2301 = vpack.c.bf16 %v2149, %v2149
        %v2302 = vpack.c.bf16 %v2198, %v2198
        %v2303 = vpack.c.bf16 %v2247, %v2247
        %v2304 = vpack.c.bf16 %v2296, %v2296
        %v2305 = vld [vmem:[%s35] sm:$0xf]
        %v2306 = vld [vmem:[%s35 + $0x4] sm:$0xf]
        %v2307 = vld [vmem:[%s35 + $0x8] sm:$0xf]
        %v2308 = vld [vmem:[%s35 + $0xc] sm:$0xf]
        %v2310 = vsel %vm1863, %v2301, 0
        %v2313 = vsel %vm2110, %v2305, 0
        %2315 = vmatprep.subr.bf16.mxu0 0
        %2316 = vmatpush1.bf16.msra.mxu0 %v2313
        %2317 = vmatprep.subr.bf16.mxu0 0
        %2318 = vmatpush1.bf16.msra.mxu0 0
        %2319 = vmatprep.subr.bf16.mxu0 0
        %2320 = vmatpush1.bf16.msra.mxu0 0
        %2321 = vmatprep.subr.bf16.mxu0 0
        %2322 = vmatpush1.bf16.msra.mxu0 0
        %2323 = vmatprep.subr.bf16.mxu0 0
        %2324 = vmatpush1.bf16.msra.mxu0 0
        %2325 = vmatprep.subr.bf16.mxu0 0
        %2326 = vmatpush1.bf16.msra.mxu0 0
        %2327 = vmatprep.subr.bf16.mxu0 0
        %2328 = vmatpush1.bf16.msra.mxu0 0
        %2329 = vmatprep.subr.bf16.mxu0 0
        %2330 = vmatpush1.bf16.msra.mxu0 0
        %2331 = vmatprep.subr.bf16.mxu0 0
        %2332 = vmatpush1.bf16.msra.mxu0 0
        %2333 = vmatprep.subr.bf16.mxu0 0
        %2334 = vmatpush1.bf16.msra.mxu0 0
        %2335 = vmatprep.subr.bf16.mxu0 0
        %2336 = vmatpush1.bf16.msra.mxu0 0
        %2337 = vmatprep.subr.bf16.mxu0 0
        %2338 = vmatpush1.bf16.msra.mxu0 0
        %2339 = vmatprep.subr.bf16.mxu0 0
        %2340 = vmatpush1.bf16.msra.mxu0 0
        %2341 = vmatprep.subr.bf16.mxu0 0
        %2342 = vmatpush1.bf16.msra.mxu0 0
        %2343 = vmatprep.subr.bf16.mxu0 0
        %2344 = vmatpush1.bf16.msra.mxu0 0
        %2345 = vmatprep.subr.bf16.mxu0 0
        %2346 = vmatpush1.bf16.msra.mxu0 0
        %2347 = vmatprep.mubr.bf16.mxu0 0
        %2348 = vmatmul.mubr.bf16.gmra.mrb[0].mxu0 %v2310
        %v2349 = vpop.f32.mrb[0].mxu0
        %v2350 = vadd.f32 0.0, %v2349
        %v2351 = vpop.f32.mrb[0].mxu0
        %v2352 = vpop.f32.mrb[0].mxu0
        %v2353 = vpop.f32.mrb[0].mxu0
        %2354 = vdwg.mxu0
        %v2356 = vsel %vm1863, %v2302, 0
        %v2359 = vsel %vm2110, %v2306, 0
        %2361 = vmatprep.subr.bf16.mxu0 0
        %2362 = vmatpush1.bf16.msra.mxu0 %v2359
        %2363 = vmatprep.subr.bf16.mxu0 0
        %2364 = vmatpush1.bf16.msra.mxu0 0
        %2365 = vmatprep.subr.bf16.mxu0 0
        %2366 = vmatpush1.bf16.msra.mxu0 0
        %2367 = vmatprep.subr.bf16.mxu0 0
        %2368 = vmatpush1.bf16.msra.mxu0 0
        %2369 = vmatprep.subr.bf16.mxu0 0
        %2370 = vmatpush1.bf16.msra.mxu0 0
        %2371 = vmatprep.subr.bf16.mxu0 0
        %2372 = vmatpush1.bf16.msra.mxu0 0
        %2373 = vmatprep.subr.bf16.mxu0 0
        %2374 = vmatpush1.bf16.msra.mxu0 0
        %2375 = vmatprep.subr.bf16.mxu0 0
        %2376 = vmatpush1.bf16.msra.mxu0 0
        %2377 = vmatprep.subr.bf16.mxu0 0
        %2378 = vmatpush1.bf16.msra.mxu0 0
        %2379 = vmatprep.subr.bf16.mxu0 0
        %2380 = vmatpush1.bf16.msra.mxu0 0
        %2381 = vmatprep.subr.bf16.mxu0 0
        %2382 = vmatpush1.bf16.msra.mxu0 0
        %2383 = vmatprep.subr.bf16.mxu0 0
        %2384 = vmatpush1.bf16.msra.mxu0 0
        %2385 = vmatprep.subr.bf16.mxu0 0
        %2386 = vmatpush1.bf16.msra.mxu0 0
        %2387 = vmatprep.subr.bf16.mxu0 0
        %2388 = vmatpush1.bf16.msra.mxu0 0
        %2389 = vmatprep.subr.bf16.mxu0 0
        %2390 = vmatpush1.bf16.msra.mxu0 0
        %2391 = vmatprep.subr.bf16.mxu0 0
        %2392 = vmatpush1.bf16.msra.mxu0 0
        %2393 = vmatprep.mubr.bf16.mxu0 0
        %2394 = vmatmul.mubr.bf16.gmra.mrb[0].mxu0 %v2356
        %v2395 = vpop.f32.mrb[0].mxu0
        %v2396 = vadd.f32 0.0, %v2395
        %v2397 = vpop.f32.mrb[0].mxu0
        %v2398 = vpop.f32.mrb[0].mxu0
        %v2399 = vpop.f32.mrb[0].mxu0
        %2400 = vdwg.mxu0
        %v2402 = vsel %vm1863, %v2303, 0
        %v2405 = vsel %vm2110, %v2307, 0
        %2407 = vmatprep.subr.bf16.mxu0 0
        %2408 = vmatpush1.bf16.msra.mxu0 %v2405
        %2409 = vmatprep.subr.bf16.mxu0 0
        %2410 = vmatpush1.bf16.msra.mxu0 0
        %2411 = vmatprep.subr.bf16.mxu0 0
        %2412 = vmatpush1.bf16.msra.mxu0 0
        %2413 = vmatprep.subr.bf16.mxu0 0
        %2414 = vmatpush1.bf16.msra.mxu0 0
        %2415 = vmatprep.subr.bf16.mxu0 0
        %2416 = vmatpush1.bf16.msra.mxu0 0
        %2417 = vmatprep.subr.bf16.mxu0 0
        %2418 = vmatpush1.bf16.msra.mxu0 0
        %2419 = vmatprep.subr.bf16.mxu0 0
        %2420 = vmatpush1.bf16.msra.mxu0 0
        %2421 = vmatprep.subr.bf16.mxu0 0
        %2422 = vmatpush1.bf16.msra.mxu0 0
        %2423 = vmatprep.subr.bf16.mxu0 0
        %2424 = vmatpush1.bf16.msra.mxu0 0
        %2425 = vmatprep.subr.bf16.mxu0 0
        %2426 = vmatpush1.bf16.msra.mxu0 0
        %2427 = vmatprep.subr.bf16.mxu0 0
        %2428 = vmatpush1.bf16.msra.mxu0 0
        %2429 = vmatprep.subr.bf16.mxu0 0
        %2430 = vmatpush1.bf16.msra.mxu0 0
        %2431 = vmatprep.subr.bf16.mxu0 0
        %2432 = vmatpush1.bf16.msra.mxu0 0
        %2433 = vmatprep.subr.bf16.mxu0 0
        %2434 = vmatpush1.bf16.msra.mxu0 0
        %2435 = vmatprep.subr.bf16.mxu0 0
        %2436 = vmatpush1.bf16.msra.mxu0 0
        %2437 = vmatprep.subr.bf16.mxu0 0
        %2438 = vmatpush1.bf16.msra.mxu0 0
        %2439 = vmatprep.mubr.bf16.mxu0 0
        %2440 = vmatmul.mubr.bf16.gmra.mrb[0].mxu0 %v2402
        %v2441 = vpop.f32.mrb[0].mxu0
        %v2442 = vadd.f32 0.0, %v2441
        %v2443 = vpop.f32.mrb[0].mxu0
        %v2444 = vpop.f32.mrb[0].mxu0
        %v2445 = vpop.f32.mrb[0].mxu0
        %2446 = vdwg.mxu0
        %v2448 = vsel %vm1863, %v2304, 0
        %v2451 = vsel %vm2110, %v2308, 0
        %2453 = vmatprep.subr.bf16.mxu0 0
        %2454 = vmatpush1.bf16.msra.mxu0 %v2451
        %2455 = vmatprep.subr.bf16.mxu0 0
        %2456 = vmatpush1.bf16.msra.mxu0 0
        %2457 = vmatprep.subr.bf16.mxu0 0
        %2458 = vmatpush1.bf16.msra.mxu0 0
        %2459 = vmatprep.subr.bf16.mxu0 0
        %2460 = vmatpush1.bf16.msra.mxu0 0
        %2461 = vmatprep.subr.bf16.mxu0 0
        %2462 = vmatpush1.bf16.msra.mxu0 0
        %2463 = vmatprep.subr.bf16.mxu0 0
        %2464 = vmatpush1.bf16.msra.mxu0 0
        %2465 = vmatprep.subr.bf16.mxu0 0
        %2466 = vmatpush1.bf16.msra.mxu0 0
        %2467 = vmatprep.subr.bf16.mxu0 0
        %2468 = vmatpush1.bf16.msra.mxu0 0
        %2469 = vmatprep.subr.bf16.mxu0 0
        %2470 = vmatpush1.bf16.msra.mxu0 0
        %2471 = vmatprep.subr.bf16.mxu0 0
        %2472 = vmatpush1.bf16.msra.mxu0 0
        %2473 = vmatprep.subr.bf16.mxu0 0
        %2474 = vmatpush1.bf16.msra.mxu0 0
        %2475 = vmatprep.subr.bf16.mxu0 0
        %2476 = vmatpush1.bf16.msra.mxu0 0
        %2477 = vmatprep.subr.bf16.mxu0 0
        %2478 = vmatpush1.bf16.msra.mxu0 0
        %2479 = vmatprep.subr.bf16.mxu0 0
        %2480 = vmatpush1.bf16.msra.mxu0 0
        %2481 = vmatprep.subr.bf16.mxu0 0
        %2482 = vmatpush1.bf16.msra.mxu0 0
        %2483 = vmatprep.subr.bf16.mxu0 0
        %2484 = vmatpush1.bf16.msra.mxu0 0
        %2485 = vmatprep.mubr.bf16.mxu0 0
        %2486 = vmatmul.mubr.bf16.gmra.mrb[0].mxu0 %v2448
        %v2487 = vpop.f32.mrb[0].mxu0
        %v2488 = vadd.f32 0.0, %v2487
        %v2489 = vpop.f32.mrb[0].mxu0
        %v2490 = vpop.f32.mrb[0].mxu0
        %v2491 = vpop.f32.mrb[0].mxu0
        %2492 = vdwg.mxu0
        %v2493 = vsel %vm1676, %v2350, 0.0
        %v2494 = vsel %vm1676, %v2396, 0.0
        %v2495 = vadd.f32 %v2493, %v2494
        %v2496 = vsel %vm1676, %v2442, 0.0
        %v2497 = vadd.f32 %v2495, %v2496
        %v2498 = vsel %vm1676, %v2488, 0.0
        %v2499 = vadd.f32 %v2497, %v2498
        %v2500 = vld [vmem:[%s37] sm:$0x1]
        %v2502 = vlaneseq
        %v2503 = vshrl.u32 %v2502, 7
        %v2504 = vsub.s32 0, %v2503
        %v2505 = vrot.slane %v2500, %v2504
        %v2507 = vadd.f32 %v2499, %v2505
        %v2508 = vadd.f32 %v2507, %v1704
        %v2509 = vsel %vm1676, %v2508, 0.0
        %2510 = vadd.xlane.f32.xlu0 %v2509
        %v2511 = vpop.xlane.xlu0 %2510
        %v2512 = vmul.f32 %v2511, %v1680
        %v2513 = vsub.f32 %v2508, %v2512
        %v2514 = vmul.f32 %v2513, %v2513
        %v2515 = vsel %vm1676, %v2514, 0.0
        %2516 = vadd.xlane.f32.xlu0 %v2515
        %v2517 = vpop.xlane.xlu0 %2516
        %v2518 = vmul.f32 %v2517, %v1680
        %v2519 = vadd.f32 %v2518, 1e-05
        %v2520 = vrsqrt.pop %v2519
        %v2521 = vmul.f32 %v2513, %v2520
        %v2523 = vlaneseq
        %v2524 = vshrl.u32 %v2523, 7
        %v2525 = vsub.s32 0, %v2524
        %v2526 = vrot.slane %v1674, %v2525
        %v2528 = vmul.f32 %v2521, %v2526
        %v2530 = vlaneseq
        %v2531 = vshrl.u32 %v2530, 7
        %v2532 = vsub.s32 0, %v2531
        %v2533 = vrot.slane %v1675, %v2532
        %v2535 = vadd.f32 %v2528, %v2533
        %v2536 = vpack.c.bf16 %v2535, %v2535
        %v2537 = vld [vmem:[%s39] sm:$0xf]
        %v2538 = vld [vmem:[%s39 + $0x4] sm:$0xf]
        %v2539 = vld [vmem:[%s39 + $0x8] sm:$0xf]
        %v2540 = vld [vmem:[%s39 + $0xc] sm:$0xf]
        %v2541 = vld [vmem:[%s41] sm:$0x1]
        %v2543 = vlaneseq
        %v2544 = vshrl.u32 %v2543, 7
        %v2545 = vsub.s32 0, %v2544
        %v2546 = vrot.slane %v2541, %v2545
        %v2552 = vunpack.c.l.b16 %v2537
        %v2553 = vunpack.c.l.b16 %v2538
        %v2554 = vunpack.c.l.b16 %v2539
        %v2555 = vunpack.c.l.b16 %v2540
        %v2556 = vpack.c.b16 %v2553, %v2552
        %v2557 = vpack.c.b16 %v2555, %v2554
        %v2561 = vsel %vm1676, %v2536, 0
        %2563 = vmatprep.subr.bf16.mxu0 0
        %2564 = vmatpush1.bf16.msra.mxu0 %v2556
        %2565 = vmatprep.subr.bf16.mxu0 0
        %2566 = vmatpush1.bf16.msra.mxu0 %v2557
        %2567 = vmatprep.subr.bf16.mxu0 0
        %2568 = vmatpush1.bf16.msra.mxu0 0
        %2569 = vmatprep.subr.bf16.mxu0 0
        %2570 = vmatpush1.bf16.msra.mxu0 0
        %2571 = vmatprep.subr.bf16.mxu0 0
        %2572 = vmatpush1.bf16.msra.mxu0 0
        %2573 = vmatprep.subr.bf16.mxu0 0
        %2574 = vmatpush1.bf16.msra.mxu0 0
        %2575 = vmatprep.subr.bf16.mxu0 0
        %2576 = vmatpush1.bf16.msra.mxu0 0
        %2577 = vmatprep.subr.bf16.mxu0 0
        %2578 = vmatpush1.bf16.msra.mxu0 0
        %2579 = vmatprep.subr.bf16.mxu0 0
        %2580 = vmatpush1.bf16.msra.mxu0 0
        %2581 = vmatprep.subr.bf16.mxu0 0
        %2582 = vmatpush1.bf16.msra.mxu0 0
        %2583 = vmatprep.subr.bf16.mxu0 0
        %2584 = vmatpush1.bf16.msra.mxu0 0
        %2585 = vmatprep.subr.bf16.mxu0 0
        %2586 = vmatpush1.bf16.msra.mxu0 0
        %2587 = vmatprep.subr.bf16.mxu0 0
        %2588 = vmatpush1.bf16.msra.mxu0 0
        %2589 = vmatprep.subr.bf16.mxu0 0
        %2590 = vmatpush1.bf16.msra.mxu0 0
        %2591 = vmatprep.subr.bf16.mxu0 0
        %2592 = vmatpush1.bf16.msra.mxu0 0
        %2593 = vmatprep.subr.bf16.mxu0 0
        %2594 = vmatpush1.bf16.msra.mxu0 0
        %2595 = vmatprep.mubr.bf16.mxu0 0
        %2596 = vmatmul.mubr.bf16.gmra.mrb[0].mxu0 %v2561
        %v2597 = vpop.f32.mrb[0].mxu0
        %v2598 = vadd.f32 %v2546, %v2597
        %v2599 = vpop.f32.mrb[0].mxu0
        %v2600 = vpop.f32.mrb[0].mxu0
        %v2601 = vpop.f32.mrb[0].mxu0
        %2602 = vdwg.mxu0
        %v2603 = vmax.f32 %v2598, 0.0
        %v2604 = vpack.c.bf16 %v2603, %v2603
        %s2605 = scalar_lea.vmem %s39, 16
        %v2606 = vld [vmem:[%s2605] sm:$0xf]
        %v2607 = vld [vmem:[%s2605 + $0x4] sm:$0xf]
        %v2608 = vld [vmem:[%s2605 + $0x8] sm:$0xf]
        %v2609 = vld [vmem:[%s2605 + $0xc] sm:$0xf]
        %s2610 = scalar_lea.vmem %s41, 1
        %v2611 = vld [vmem:[%s2610] sm:$0x1]
        %v2613 = vlaneseq
        %v2614 = vshrl.u32 %v2613, 7
        %v2615 = vsub.s32 0, %v2614
        %v2616 = vrot.slane %v2611, %v2615
        %v2622 = vunpack.c.l.b16 %v2606
        %v2623 = vunpack.c.l.b16 %v2607
        %v2624 = vunpack.c.l.b16 %v2608
        %v2625 = vunpack.c.l.b16 %v2609
        %v2626 = vpack.c.b16 %v2623, %v2622
        %v2627 = vpack.c.b16 %v2625, %v2624
        %v2631 = vsel %vm1676, %v2604, 0
        %2633 = vmatprep.subr.bf16.mxu0 0
        %2634 = vmatpush1.bf16.msra.mxu0 %v2626
        %2635 = vmatprep.subr.bf16.mxu0 0
        %2636 = vmatpush1.bf16.msra.mxu0 %v2627
        %2637 = vmatprep.subr.bf16.mxu0 0
        %2638 = vmatpush1.bf16.msra.mxu0 0
        %2639 = vmatprep.subr.bf16.mxu0 0
        %2640 = vmatpush1.bf16.msra.mxu0 0
        %2641 = vmatprep.subr.bf16.mxu0 0
        %2642 = vmatpush1.bf16.msra.mxu0 0
        %2643 = vmatprep.subr.bf16.mxu0 0
        %2644 = vmatpush1.bf16.msra.mxu0 0
        %2645 = vmatprep.subr.bf16.mxu0 0
        %2646 = vmatpush1.bf16.msra.mxu0 0
        %2647 = vmatprep.subr.bf16.mxu0 0
        %2648 = vmatpush1.bf16.msra.mxu0 0
        %2649 = vmatprep.subr.bf16.mxu0 0
        %2650 = vmatpush1.bf16.msra.mxu0 0
        %2651 = vmatprep.subr.bf16.mxu0 0
        %2652 = vmatpush1.bf16.msra.mxu0 0
        %2653 = vmatprep.subr.bf16.mxu0 0
        %2654 = vmatpush1.bf16.msra.mxu0 0
        %2655 = vmatprep.subr.bf16.mxu0 0
        %2656 = vmatpush1.bf16.msra.mxu0 0
        %2657 = vmatprep.subr.bf16.mxu0 0
        %2658 = vmatpush1.bf16.msra.mxu0 0
        %2659 = vmatprep.subr.bf16.mxu0 0
        %2660 = vmatpush1.bf16.msra.mxu0 0
        %2661 = vmatprep.subr.bf16.mxu0 0
        %2662 = vmatpush1.bf16.msra.mxu0 0
        %2663 = vmatprep.subr.bf16.mxu0 0
        %2664 = vmatpush1.bf16.msra.mxu0 0
        %2665 = vmatprep.mubr.bf16.mxu0 0
        %2666 = vmatmul.mubr.bf16.gmra.mrb[0].mxu0 %v2631
        %v2667 = vpop.f32.mrb[0].mxu0
        %v2668 = vadd.f32 %v2616, %v2667
        %v2669 = vpop.f32.mrb[0].mxu0
        %v2670 = vpop.f32.mrb[0].mxu0
        %v2671 = vpop.f32.mrb[0].mxu0
        %2672 = vdwg.mxu0
        %v2673 = vadd.f32 %v2668, %v2535
        %v2674 = vld [vmem:[%s43] sm:$0x1]
        %v2675 = vld [vmem:[%s43 + $0x1] sm:$0x1]
        %v2676 = vld [vmem:[%s43 + $0x2] sm:$0x1]
        %v2677 = vld [vmem:[%s43 + $0x3] sm:$0x1]
        %v2678 = vsel %vm1676, %v1671, 0.0
        %2679 = vadd.xlane.f32.xlu0 %v2678
        %v2680 = vpop.xlane.xlu0 %2679
        %v2681 = vmul.f32 %v2680, %v1680
        %v2682 = vsub.f32 %v1671, %v2681
        %v2683 = vmul.f32 %v2682, %v2682
        %v2684 = vsel %vm1676, %v2683, 0.0
        %2685 = vadd.xlane.f32.xlu0 %v2684
        %v2686 = vpop.xlane.xlu0 %2685
        %v2687 = vmul.f32 %v2686, %v1680
        %v2688 = vadd.f32 %v2687, 1e-05
        %v2689 = vrsqrt.pop %v2688
        %v2690 = vmul.f32 %v2682, %v2689
        %v2692 = vlaneseq
        %v2693 = vshrl.u32 %v2692, 7
        %v2694 = vsub.s32 0, %v2693
        %v2695 = vrot.slane %v2674, %v2694
        %v2697 = vmul.f32 %v2690, %v2695
        %v2699 = vlaneseq
        %v2700 = vshrl.u32 %v2699, 7
        %v2701 = vsub.s32 0, %v2700
        %v2702 = vrot.slane %v2675, %v2701
        %v2704 = vadd.f32 %v2697, %v2702
        %v2705 = vsel %vm1676, %v2673, 0.0
        %2706 = vadd.xlane.f32.xlu0 %v2705
        %v2707 = vpop.xlane.xlu0 %2706
        %v2708 = vmul.f32 %v2707, %v1680
        %v2709 = vsub.f32 %v2673, %v2708
        %v2710 = vmul.f32 %v2709, %v2709
        %v2711 = vsel %vm1676, %v2710, 0.0
        %2712 = vadd.xlane.f32.xlu0 %v2711
        %v2713 = vpop.xlane.xlu0 %2712
        %v2714 = vmul.f32 %v2713, %v1680
        %v2715 = vadd.f32 %v2714, 1e-05
        %v2716 = vrsqrt.pop %v2715
        %v2717 = vmul.f32 %v2709, %v2716
        %v2718 = vmul.f32 %v2717, %v2695
        %v2719 = vadd.f32 %v2718, %v2702
        %v2720 = vpack.c.bf16 %v2704, %v2704
        %v2721 = vld [vmem:[%s45] sm:$0xf]
        %v2722 = vld [vmem:[%s45 + $0x4] sm:$0xf]
        %v2723 = vld [vmem:[%s45 + $0x8] sm:$0xf]
        %v2724 = vld [vmem:[%s45 + $0xc] sm:$0xf]
        %v2725 = vld [vmem:[%s49] sm:$0x1]
        %v2727 = vlaneseq
        %v2728 = vshrl.u32 %v2727, 7
        %v2729 = vsub.s32 0, %v2728
        %v2730 = vrot.slane %v2725, %v2729
        %v2736 = vunpack.c.l.b16 %v2721
        %v2737 = vunpack.c.l.b16 %v2722
        %v2738 = vunpack.c.l.b16 %v2723
        %v2739 = vunpack.c.l.b16 %v2724
        %v2740 = vpack.c.b16 %v2737, %v2736
        %v2741 = vpack.c.b16 %v2739, %v2738
        %v2745 = vsel %vm1676, %v2720, 0
        %2747 = vmatprep.subr.bf16.mxu0 0
        %2748 = vmatpush1.bf16.msra.mxu0 %v2740
        %2749 = vmatprep.subr.bf16.mxu0 0
        %2750 = vmatpush1.bf16.msra.mxu0 %v2741
        %2751 = vmatprep.subr.bf16.mxu0 0
        %2752 = vmatpush1.bf16.msra.mxu0 0
        %2753 = vmatprep.subr.bf16.mxu0 0
        %2754 = vmatpush1.bf16.msra.mxu0 0
        %2755 = vmatprep.subr.bf16.mxu0 0
        %2756 = vmatpush1.bf16.msra.mxu0 0
        %2757 = vmatprep.subr.bf16.mxu0 0
        %2758 = vmatpush1.bf16.msra.mxu0 0
        %2759 = vmatprep.subr.bf16.mxu0 0
        %2760 = vmatpush1.bf16.msra.mxu0 0
        %2761 = vmatprep.subr.bf16.mxu0 0
        %2762 = vmatpush1.bf16.msra.mxu0 0
        %2763 = vmatprep.subr.bf16.mxu0 0
        %2764 = vmatpush1.bf16.msra.mxu0 0
        %2765 = vmatprep.subr.bf16.mxu0 0
        %2766 = vmatpush1.bf16.msra.mxu0 0
        %2767 = vmatprep.subr.bf16.mxu0 0
        %2768 = vmatpush1.bf16.msra.mxu0 0
        %2769 = vmatprep.subr.bf16.mxu0 0
        %2770 = vmatpush1.bf16.msra.mxu0 0
        %2771 = vmatprep.subr.bf16.mxu0 0
        %2772 = vmatpush1.bf16.msra.mxu0 0
        %2773 = vmatprep.subr.bf16.mxu0 0
        %2774 = vmatpush1.bf16.msra.mxu0 0
        %2775 = vmatprep.subr.bf16.mxu0 0
        %2776 = vmatpush1.bf16.msra.mxu0 0
        %2777 = vmatprep.subr.bf16.mxu0 0
        %2778 = vmatpush1.bf16.msra.mxu0 0
        %2779 = vmatprep.mubr.bf16.mxu0 0
        %2780 = vmatmul.mubr.bf16.gmra.mrb[0].mxu0 %v2745
        %v2781 = vpop.f32.mrb[0].mxu0
        %v2782 = vadd.f32 %v2730, %v2781
        %v2783 = vpop.f32.mrb[0].mxu0
        %v2784 = vpop.f32.mrb[0].mxu0
        %v2785 = vpop.f32.mrb[0].mxu0
        %2786 = vdwg.mxu0
        %v2787 = vpack.c.bf16 %v2719, %v2719
        %v2788 = vld [vmem:[%s47] sm:$0xf]
        %v2789 = vld [vmem:[%s47 + $0x4] sm:$0xf]
        %v2790 = vld [vmem:[%s47 + $0x8] sm:$0xf]
        %v2791 = vld [vmem:[%s47 + $0xc] sm:$0xf]
        %v2792 = vld [vmem:[%s51] sm:$0x1]
        %v2794 = vlaneseq
        %v2795 = vshrl.u32 %v2794, 7
        %v2796 = vsub.s32 0, %v2795
        %v2797 = vrot.slane %v2792, %v2796
        %v2803 = vunpack.c.l.b16 %v2788
        %v2804 = vunpack.c.l.b16 %v2789
        %v2805 = vunpack.c.l.b16 %v2790
        %v2806 = vunpack.c.l.b16 %v2791
        %v2807 = vpack.c.b16 %v2804, %v2803
        %v2808 = vpack.c.b16 %v2806, %v2805
        %v2812 = vsel %vm1676, %v2787, 0
        %2814 = vmatprep.subr.bf16.mxu0 0
        %2815 = vmatpush1.bf16.msra.mxu0 %v2807
        %2816 = vmatprep.subr.bf16.mxu0 0
        %2817 = vmatpush1.bf16.msra.mxu0 %v2808
        %2818 = vmatprep.subr.bf16.mxu0 0
        %2819 = vmatpush1.bf16.msra.mxu0 0
        %2820 = vmatprep.subr.bf16.mxu0 0
        %2821 = vmatpush1.bf16.msra.mxu0 0
        %2822 = vmatprep.subr.bf16.mxu0 0
        %2823 = vmatpush1.bf16.msra.mxu0 0
        %2824 = vmatprep.subr.bf16.mxu0 0
        %2825 = vmatpush1.bf16.msra.mxu0 0
        %2826 = vmatprep.subr.bf16.mxu0 0
        %2827 = vmatpush1.bf16.msra.mxu0 0
        %2828 = vmatprep.subr.bf16.mxu0 0
        %2829 = vmatpush1.bf16.msra.mxu0 0
        %2830 = vmatprep.subr.bf16.mxu0 0
        %2831 = vmatpush1.bf16.msra.mxu0 0
        %2832 = vmatprep.subr.bf16.mxu0 0
        %2833 = vmatpush1.bf16.msra.mxu0 0
        %2834 = vmatprep.subr.bf16.mxu0 0
        %2835 = vmatpush1.bf16.msra.mxu0 0
        %2836 = vmatprep.subr.bf16.mxu0 0
        %2837 = vmatpush1.bf16.msra.mxu0 0
        %2838 = vmatprep.subr.bf16.mxu0 0
        %2839 = vmatpush1.bf16.msra.mxu0 0
        %2840 = vmatprep.subr.bf16.mxu0 0
        %2841 = vmatpush1.bf16.msra.mxu0 0
        %2842 = vmatprep.subr.bf16.mxu0 0
        %2843 = vmatpush1.bf16.msra.mxu0 0
        %2844 = vmatprep.subr.bf16.mxu0 0
        %2845 = vmatpush1.bf16.msra.mxu0 0
        %2846 = vmatprep.mubr.bf16.mxu0 0
        %2847 = vmatmul.mubr.bf16.gmra.mrb[0].mxu0 %v2812
        %v2848 = vpop.f32.mrb[0].mxu0
        %v2849 = vadd.f32 %v2797, %v2848
        %v2850 = vpop.f32.mrb[0].mxu0
        %v2851 = vpop.f32.mrb[0].mxu0
        %v2852 = vpop.f32.mrb[0].mxu0
        %2853 = vdwg.mxu0
        %2855 = vrot.lane.b32.xlu0 %v2782, 120
        %v2856 = vpop.permute.xlu0 %2855
        %2858 = vrot.lane.b32.xlu0 %v2782, 112
        %v2859 = vpop.permute.xlu0 %2858
        %2861 = vrot.lane.b32.xlu0 %v2782, 104
        %v2862 = vpop.permute.xlu0 %2861
        %2865 = vrot.lane.b32.xlu0 %v2849, 120
        %v2866 = vpop.permute.xlu0 %2865
        %2868 = vrot.lane.b32.xlu0 %v2849, 112
        %v2869 = vpop.permute.xlu0 %2868
        %2871 = vrot.lane.b32.xlu0 %v2849, 104
        %v2872 = vpop.permute.xlu0 %2871
        %v2874 = vpack.c.bf16 %v2782, %v2782
        %v2875 = vpack.c.bf16 %v2856, %v2856
        %v2876 = vpack.c.bf16 %v2859, %v2859
        %v2877 = vpack.c.bf16 %v2862, %v2862
        %v2878 = vpack.c.bf16 %v2849, %v2849
        %v2879 = vpack.c.bf16 %v2866, %v2866
        %v2880 = vpack.c.bf16 %v2869, %v2869
        %v2881 = vpack.c.bf16 %v2872, %v2872
        %v2883 = vsel %vm1863, %v2874, 0
        %v2886 = vsel %vm1863, %v2878, 0
        %2888 = vmatprep.subr.bf16.mxu0 0
        %2889 = vmatpush1.bf16.xpose.msra.mxu0 %v2886
        %2890 = vmatprep.subr.bf16.mxu0 0
        %2891 = vmatpush1.bf16.xpose.msra.mxu0 0
        %2892 = vmatprep.subr.bf16.mxu0 0
        %2893 = vmatpush1.bf16.xpose.msra.mxu0 0
        %2894 = vmatprep.subr.bf16.mxu0 0
        %2895 = vmatpush1.bf16.xpose.msra.mxu0 0
        %2896 = vmatprep.subr.bf16.mxu0 0
        %2897 = vmatpush1.bf16.xpose.msra.mxu0 0
        %2898 = vmatprep.subr.bf16.mxu0 0
        %2899 = vmatpush1.bf16.xpose.msra.mxu0 0
        %2900 = vmatprep.subr.bf16.mxu0 0
        %2901 = vmatpush1.bf16.xpose.msra.mxu0 0
        %2902 = vmatprep.subr.bf16.mxu0 0
        %2903 = vmatpush1.bf16.xpose.msra.mxu0 0
        %2904 = vmatprep.subr.bf16.mxu0 0
        %2905 = vmatpush1.bf16.xpose.msra.mxu0 0
        %2906 = vmatprep.subr.bf16.mxu0 0
        %2907 = vmatpush1.bf16.xpose.msra.mxu0 0
        %2908 = vmatprep.subr.bf16.mxu0 0
        %2909 = vmatpush1.bf16.xpose.msra.mxu0 0
        %2910 = vmatprep.subr.bf16.mxu0 0
        %2911 = vmatpush1.bf16.xpose.msra.mxu0 0
        %2912 = vmatprep.subr.bf16.mxu0 0
        %2913 = vmatpush1.bf16.xpose.msra.mxu0 0
        %2914 = vmatprep.subr.bf16.mxu0 0
        %2915 = vmatpush1.bf16.xpose.msra.mxu0 0
        %2916 = vmatprep.subr.bf16.mxu0 0
        %2917 = vmatpush1.bf16.xpose.msra.mxu0 0
        %2918 = vmatprep.subr.bf16.mxu0 0
        %2919 = vmatpush1.bf16.xpose.msra.mxu0 0
        %2920 = vmatprep.mubr.bf16.mxu0 0
        %2921 = vmatmul.mubr.bf16.gmra.mrb[0].mxu0 %v2883
        %v2922 = vpop.f32.mrb[0].mxu0
        %v2923 = vadd.f32 0.0, %v2922
        %v2924 = vpop.f32.mrb[0].mxu0
        %v2925 = vpop.f32.mrb[0].mxu0
        %v2926 = vpop.f32.mrb[0].mxu0
        %2927 = vdwg.mxu0
        %v2929 = vsel %vm1863, %v2875, 0
        %v2932 = vsel %vm1863, %v2879, 0
        %2934 = vmatprep.subr.bf16.mxu0 0
        %2935 = vmatpush1.bf16.xpose.msra.mxu0 %v2932
        %2936 = vmatprep.subr.bf16.mxu0 0
        %2937 = vmatpush1.bf16.xpose.msra.mxu0 0
        %2938 = vmatprep.subr.bf16.mxu0 0
        %2939 = vmatpush1.bf16.xpose.msra.mxu0 0
        %2940 = vmatprep.subr.bf16.mxu0 0
        %2941 = vmatpush1.bf16.xpose.msra.mxu0 0
        %2942 = vmatprep.subr.bf16.mxu0 0
        %2943 = vmatpush1.bf16.xpose.msra.mxu0 0
        %2944 = vmatprep.subr.bf16.mxu0 0
        %2945 = vmatpush1.bf16.xpose.msra.mxu0 0
        %2946 = vmatprep.subr.bf16.mxu0 0
        %2947 = vmatpush1.bf16.xpose.msra.mxu0 0
        %2948 = vmatprep.subr.bf16.mxu0 0
        %2949 = vmatpush1.bf16.xpose.msra.mxu0 0
        %2950 = vmatprep.subr.bf16.mxu0 0
        %2951 = vmatpush1.bf16.xpose.msra.mxu0 0
        %2952 = vmatprep.subr.bf16.mxu0 0
        %2953 = vmatpush1.bf16.xpose.msra.mxu0 0
        %2954 = vmatprep.subr.bf16.mxu0 0
        %2955 = vmatpush1.bf16.xpose.msra.mxu0 0
        %2956 = vmatprep.subr.bf16.mxu0 0
        %2957 = vmatpush1.bf16.xpose.msra.mxu0 0
        %2958 = vmatprep.subr.bf16.mxu0 0
        %2959 = vmatpush1.bf16.xpose.msra.mxu0 0
        %2960 = vmatprep.subr.bf16.mxu0 0
        %2961 = vmatpush1.bf16.xpose.msra.mxu0 0
        %2962 = vmatprep.subr.bf16.mxu0 0
        %2963 = vmatpush1.bf16.xpose.msra.mxu0 0
        %2964 = vmatprep.subr.bf16.mxu0 0
        %2965 = vmatpush1.bf16.xpose.msra.mxu0 0
        %2966 = vmatprep.mubr.bf16.mxu0 0
        %2967 = vmatmul.mubr.bf16.gmra.mrb[0].mxu0 %v2929
        %v2968 = vpop.f32.mrb[0].mxu0
        %v2969 = vadd.f32 0.0, %v2968
        %v2970 = vpop.f32.mrb[0].mxu0
        %v2971 = vpop.f32.mrb[0].mxu0
        %v2972 = vpop.f32.mrb[0].mxu0
        %2973 = vdwg.mxu0
        %v2975 = vsel %vm1863, %v2876, 0
        %v2978 = vsel %vm1863, %v2880, 0
        %2980 = vmatprep.subr.bf16.mxu0 0
        %2981 = vmatpush1.bf16.xpose.msra.mxu0 %v2978
        %2982 = vmatprep.subr.bf16.mxu0 0
        %2983 = vmatpush1.bf16.xpose.msra.mxu0 0
        %2984 = vmatprep.subr.bf16.mxu0 0
        %2985 = vmatpush1.bf16.xpose.msra.mxu0 0
        %2986 = vmatprep.subr.bf16.mxu0 0
        %2987 = vmatpush1.bf16.xpose.msra.mxu0 0
        %2988 = vmatprep.subr.bf16.mxu0 0
        %2989 = vmatpush1.bf16.xpose.msra.mxu0 0
        %2990 = vmatprep.subr.bf16.mxu0 0
        %2991 = vmatpush1.bf16.xpose.msra.mxu0 0
        %2992 = vmatprep.subr.bf16.mxu0 0
        %2993 = vmatpush1.bf16.xpose.msra.mxu0 0
        %2994 = vmatprep.subr.bf16.mxu0 0
        %2995 = vmatpush1.bf16.xpose.msra.mxu0 0
        %2996 = vmatprep.subr.bf16.mxu0 0
        %2997 = vmatpush1.bf16.xpose.msra.mxu0 0
        %2998 = vmatprep.subr.bf16.mxu0 0
        %2999 = vmatpush1.bf16.xpose.msra.mxu0 0
        %3000 = vmatprep.subr.bf16.mxu0 0
        %3001 = vmatpush1.bf16.xpose.msra.mxu0 0
        %3002 = vmatprep.subr.bf16.mxu0 0
        %3003 = vmatpush1.bf16.xpose.msra.mxu0 0
        %3004 = vmatprep.subr.bf16.mxu0 0
        %3005 = vmatpush1.bf16.xpose.msra.mxu0 0
        %3006 = vmatprep.subr.bf16.mxu0 0
        %3007 = vmatpush1.bf16.xpose.msra.mxu0 0
        %3008 = vmatprep.subr.bf16.mxu0 0
        %3009 = vmatpush1.bf16.xpose.msra.mxu0 0
        %3010 = vmatprep.subr.bf16.mxu0 0
        %3011 = vmatpush1.bf16.xpose.msra.mxu0 0
        %3012 = vmatprep.mubr.bf16.mxu0 0
        %3013 = vmatmul.mubr.bf16.gmra.mrb[0].mxu0 %v2975
        %v3014 = vpop.f32.mrb[0].mxu0
        %v3015 = vadd.f32 0.0, %v3014
        %v3016 = vpop.f32.mrb[0].mxu0
        %v3017 = vpop.f32.mrb[0].mxu0
        %v3018 = vpop.f32.mrb[0].mxu0
        %3019 = vdwg.mxu0
        %v3021 = vsel %vm1863, %v2877, 0
        %v3024 = vsel %vm1863, %v2881, 0
        %3026 = vmatprep.subr.bf16.mxu0 0
        %3027 = vmatpush1.bf16.xpose.msra.mxu0 %v3024
        %3028 = vmatprep.subr.bf16.mxu0 0
        %3029 = vmatpush1.bf16.xpose.msra.mxu0 0
        %3030 = vmatprep.subr.bf16.mxu0 0
        %3031 = vmatpush1.bf16.xpose.msra.mxu0 0
        %3032 = vmatprep.subr.bf16.mxu0 0
        %3033 = vmatpush1.bf16.xpose.msra.mxu0 0
        %3034 = vmatprep.subr.bf16.mxu0 0
        %3035 = vmatpush1.bf16.xpose.msra.mxu0 0
        %3036 = vmatprep.subr.bf16.mxu0 0
        %3037 = vmatpush1.bf16.xpose.msra.mxu0 0
        %3038 = vmatprep.subr.bf16.mxu0 0
        %3039 = vmatpush1.bf16.xpose.msra.mxu0 0
        %3040 = vmatprep.subr.bf16.mxu0 0
        %3041 = vmatpush1.bf16.xpose.msra.mxu0 0
        %3042 = vmatprep.subr.bf16.mxu0 0
        %3043 = vmatpush1.bf16.xpose.msra.mxu0 0
        %3044 = vmatprep.subr.bf16.mxu0 0
        %3045 = vmatpush1.bf16.xpose.msra.mxu0 0
        %3046 = vmatprep.subr.bf16.mxu0 0
        %3047 = vmatpush1.bf16.xpose.msra.mxu0 0
        %3048 = vmatprep.subr.bf16.mxu0 0
        %3049 = vmatpush1.bf16.xpose.msra.mxu0 0
        %3050 = vmatprep.subr.bf16.mxu0 0
        %3051 = vmatpush1.bf16.xpose.msra.mxu0 0
        %3052 = vmatprep.subr.bf16.mxu0 0
        %3053 = vmatpush1.bf16.xpose.msra.mxu0 0
        %3054 = vmatprep.subr.bf16.mxu0 0
        %3055 = vmatpush1.bf16.xpose.msra.mxu0 0
        %3056 = vmatprep.subr.bf16.mxu0 0
        %3057 = vmatpush1.bf16.xpose.msra.mxu0 0
        %3058 = vmatprep.mubr.bf16.mxu0 0
        %3059 = vmatmul.mubr.bf16.gmra.mrb[0].mxu0 %v3021
        %v3060 = vpop.f32.mrb[0].mxu0
        %v3061 = vadd.f32 0.0, %v3060
        %v3062 = vpop.f32.mrb[0].mxu0
        %v3063 = vpop.f32.mrb[0].mxu0
        %v3064 = vpop.f32.mrb[0].mxu0
        %3065 = vdwg.mxu0
        %v3066 = vmul.f32 %v2923, 0.35355338
        %v3067 = vmul.f32 %v2969, 0.35355338
        %v3068 = vmul.f32 %v3015, 0.35355338
        %v3069 = vmul.f32 %v3061, 0.35355338
        %v3070 = vadd.f32 %v3066, %v1041
        %v3071 = vadd.f32 %v3067, %v1041
        %v3072 = vadd.f32 %v3068, %v1041
        %v3073 = vadd.f32 %v3069, %v1041
        %v3074 = vsel %vm1863, %v3070, -inf
        %3075 = vmax.xlane.f32.xlu0 %v3074
        %v3076 = vpop.xlane.xlu0 %3075
        %v3077 = vsel %vm1863, %v3071, -inf
        %3078 = vmax.xlane.f32.xlu0 %v3077
        %v3079 = vpop.xlane.xlu0 %3078
        %v3080 = vsel %vm1863, %v3072, -inf
        %3081 = vmax.xlane.f32.xlu0 %v3080
        %v3082 = vpop.xlane.xlu0 %3081
        %v3083 = vsel %vm1863, %v3073, -inf
        %3084 = vmax.xlane.f32.xlu0 %v3083
        %v3085 = vpop.xlane.xlu0 %3084
        %v3086 = vsub.f32 %v3070, %v3076
        %v3087 = vsub.f32 %v3071, %v3079
        %v3088 = vsub.f32 %v3072, %v3082
        %v3089 = vsub.f32 %v3073, %v3085
        %v3090 = vmul.f32 %v3086, 1.442695
        %v3091 = vpow.pop %v3090
        %v3092 = vmul.f32 %v3087, 1.442695
        %v3093 = vpow.pop %v3092
        %v3094 = vmul.f32 %v3088, 1.442695
        %v3095 = vpow.pop %v3094
        %v3096 = vmul.f32 %v3089, 1.442695
        %v3097 = vpow.pop %v3096
        %v3098 = vsel %vm1863, %v3091, 0.0
        %3099 = vadd.xlane.f32.xlu0 %v3098
        %v3100 = vpop.xlane.xlu0 %3099
        %v3101 = vsel %vm1863, %v3093, 0.0
        %3102 = vadd.xlane.f32.xlu0 %v3101
        %v3103 = vpop.xlane.xlu0 %3102
        %v3104 = vsel %vm1863, %v3095, 0.0
        %3105 = vadd.xlane.f32.xlu0 %v3104
        %v3106 = vpop.xlane.xlu0 %3105
        %v3107 = vsel %vm1863, %v3097, 0.0
        %3108 = vadd.xlane.f32.xlu0 %v3107
        %v3109 = vpop.xlane.xlu0 %3108
        %v3110 = vrcp.pop %v3100
        %v3111 = vrcp.pop %v3103
        %v3112 = vrcp.pop %v3106
        %v3113 = vrcp.pop %v3109
        %v3114 = vmul.f32 %v3091, %v3110
        %v3115 = vmul.f32 %v3093, %v3111
        %v3116 = vmul.f32 %v3095, %v3112
        %v3117 = vmul.f32 %v3097, %v3113
        %v3118 = vpack.c.bf16 %v3114, %v3114
        %v3119 = vpack.c.bf16 %v3115, %v3115
        %v3120 = vpack.c.bf16 %v3116, %v3116
        %v3121 = vpack.c.bf16 %v3117, %v3117
        %3123 = vrot.lane.b32.xlu0 %v2878, 96
        %v3124 = vpop.permute.xlu0 %3123
        %v3126 = vsel %vm1863, %v3118, 0
        %v3129 = vsel %vm2110, %v3124, 0
        %3131 = vmatprep.subr.bf16.mxu0 0
        %3132 = vmatpush1.bf16.msra.mxu0 %v3129
        %3133 = vmatprep.subr.bf16.mxu0 0
        %3134 = vmatpush1.bf16.msra.mxu0 0
        %3135 = vmatprep.subr.bf16.mxu0 0
        %3136 = vmatpush1.bf16.msra.mxu0 0
        %3137 = vmatprep.subr.bf16.mxu0 0
        %3138 = vmatpush1.bf16.msra.mxu0 0
        %3139 = vmatprep.subr.bf16.mxu0 0
        %3140 = vmatpush1.bf16.msra.mxu0 0
        %3141 = vmatprep.subr.bf16.mxu0 0
        %3142 = vmatpush1.bf16.msra.mxu0 0
        %3143 = vmatprep.subr.bf16.mxu0 0
        %3144 = vmatpush1.bf16.msra.mxu0 0
        %3145 = vmatprep.subr.bf16.mxu0 0
        %3146 = vmatpush1.bf16.msra.mxu0 0
        %3147 = vmatprep.subr.bf16.mxu0 0
        %3148 = vmatpush1.bf16.msra.mxu0 0
        %3149 = vmatprep.subr.bf16.mxu0 0
        %3150 = vmatpush1.bf16.msra.mxu0 0
        %3151 = vmatprep.subr.bf16.mxu0 0
        %3152 = vmatpush1.bf16.msra.mxu0 0
        %3153 = vmatprep.subr.bf16.mxu0 0
        %3154 = vmatpush1.bf16.msra.mxu0 0
        %3155 = vmatprep.subr.bf16.mxu0 0
        %3156 = vmatpush1.bf16.msra.mxu0 0
        %3157 = vmatprep.subr.bf16.mxu0 0
        %3158 = vmatpush1.bf16.msra.mxu0 0
        %3159 = vmatprep.subr.bf16.mxu0 0
        %3160 = vmatpush1.bf16.msra.mxu0 0
        %3161 = vmatprep.subr.bf16.mxu0 0
        %3162 = vmatpush1.bf16.msra.mxu0 0
        %3163 = vmatprep.mubr.bf16.mxu0 0
        %3164 = vmatmul.mubr.bf16.gmra.mrb[0].mxu0 %v3126
        %v3165 = vpop.f32.mrb[0].mxu0
        %v3166 = vadd.f32 0.0, %v3165
        %v3167 = vpop.f32.mrb[0].mxu0
        %v3168 = vpop.f32.mrb[0].mxu0
        %v3169 = vpop.f32.mrb[0].mxu0
        %3170 = vdwg.mxu0
        %3172 = vrot.lane.b32.xlu0 %v2879, 96
        %v3173 = vpop.permute.xlu0 %3172
        %v3175 = vsel %vm1863, %v3119, 0
        %v3178 = vsel %vm2110, %v3173, 0
        %3180 = vmatprep.subr.bf16.mxu0 0
        %3181 = vmatpush1.bf16.msra.mxu0 %v3178
        %3182 = vmatprep.subr.bf16.mxu0 0
        %3183 = vmatpush1.bf16.msra.mxu0 0
        %3184 = vmatprep.subr.bf16.mxu0 0
        %3185 = vmatpush1.bf16.msra.mxu0 0
        %3186 = vmatprep.subr.bf16.mxu0 0
        %3187 = vmatpush1.bf16.msra.mxu0 0
        %3188 = vmatprep.subr.bf16.mxu0 0
        %3189 = vmatpush1.bf16.msra.mxu0 0
        %3190 = vmatprep.subr.bf16.mxu0 0
        %3191 = vmatpush1.bf16.msra.mxu0 0
        %3192 = vmatprep.subr.bf16.mxu0 0
        %3193 = vmatpush1.bf16.msra.mxu0 0
        %3194 = vmatprep.subr.bf16.mxu0 0
        %3195 = vmatpush1.bf16.msra.mxu0 0
        %3196 = vmatprep.subr.bf16.mxu0 0
        %3197 = vmatpush1.bf16.msra.mxu0 0
        %3198 = vmatprep.subr.bf16.mxu0 0
        %3199 = vmatpush1.bf16.msra.mxu0 0
        %3200 = vmatprep.subr.bf16.mxu0 0
        %3201 = vmatpush1.bf16.msra.mxu0 0
        %3202 = vmatprep.subr.bf16.mxu0 0
        %3203 = vmatpush1.bf16.msra.mxu0 0
        %3204 = vmatprep.subr.bf16.mxu0 0
        %3205 = vmatpush1.bf16.msra.mxu0 0
        %3206 = vmatprep.subr.bf16.mxu0 0
        %3207 = vmatpush1.bf16.msra.mxu0 0
        %3208 = vmatprep.subr.bf16.mxu0 0
        %3209 = vmatpush1.bf16.msra.mxu0 0
        %3210 = vmatprep.subr.bf16.mxu0 0
        %3211 = vmatpush1.bf16.msra.mxu0 0
        %3212 = vmatprep.mubr.bf16.mxu0 0
        %3213 = vmatmul.mubr.bf16.gmra.mrb[0].mxu0 %v3175
        %v3214 = vpop.f32.mrb[0].mxu0
        %v3215 = vadd.f32 0.0, %v3214
        %v3216 = vpop.f32.mrb[0].mxu0
        %v3217 = vpop.f32.mrb[0].mxu0
        %v3218 = vpop.f32.mrb[0].mxu0
        %3219 = vdwg.mxu0
        %3221 = vrot.lane.b32.xlu0 %v2880, 96
        %v3222 = vpop.permute.xlu0 %3221
        %v3224 = vsel %vm1863, %v3120, 0
        %v3227 = vsel %vm2110, %v3222, 0
        %3229 = vmatprep.subr.bf16.mxu0 0
        %3230 = vmatpush1.bf16.msra.mxu0 %v3227
        %3231 = vmatprep.subr.bf16.mxu0 0
        %3232 = vmatpush1.bf16.msra.mxu0 0
        %3233 = vmatprep.subr.bf16.mxu0 0
        %3234 = vmatpush1.bf16.msra.mxu0 0
        %3235 = vmatprep.subr.bf16.mxu0 0
        %3236 = vmatpush1.bf16.msra.mxu0 0
        %3237 = vmatprep.subr.bf16.mxu0 0
        %3238 = vmatpush1.bf16.msra.mxu0 0
        %3239 = vmatprep.subr.bf16.mxu0 0
        %3240 = vmatpush1.bf16.msra.mxu0 0
        %3241 = vmatprep.subr.bf16.mxu0 0
        %3242 = vmatpush1.bf16.msra.mxu0 0
        %3243 = vmatprep.subr.bf16.mxu0 0
        %3244 = vmatpush1.bf16.msra.mxu0 0
        %3245 = vmatprep.subr.bf16.mxu0 0
        %3246 = vmatpush1.bf16.msra.mxu0 0
        %3247 = vmatprep.subr.bf16.mxu0 0
        %3248 = vmatpush1.bf16.msra.mxu0 0
        %3249 = vmatprep.subr.bf16.mxu0 0
        %3250 = vmatpush1.bf16.msra.mxu0 0
        %3251 = vmatprep.subr.bf16.mxu0 0
        %3252 = vmatpush1.bf16.msra.mxu0 0
        %3253 = vmatprep.subr.bf16.mxu0 0
        %3254 = vmatpush1.bf16.msra.mxu0 0
        %3255 = vmatprep.subr.bf16.mxu0 0
        %3256 = vmatpush1.bf16.msra.mxu0 0
        %3257 = vmatprep.subr.bf16.mxu0 0
        %3258 = vmatpush1.bf16.msra.mxu0 0
        %3259 = vmatprep.subr.bf16.mxu0 0
        %3260 = vmatpush1.bf16.msra.mxu0 0
        %3261 = vmatprep.mubr.bf16.mxu0 0
        %3262 = vmatmul.mubr.bf16.gmra.mrb[0].mxu0 %v3224
        %v3263 = vpop.f32.mrb[0].mxu0
        %v3264 = vadd.f32 0.0, %v3263
        %v3265 = vpop.f32.mrb[0].mxu0
        %v3266 = vpop.f32.mrb[0].mxu0
        %v3267 = vpop.f32.mrb[0].mxu0
        %3268 = vdwg.mxu0
        %3270 = vrot.lane.b32.xlu0 %v2881, 96
        %v3271 = vpop.permute.xlu0 %3270
        %v3273 = vsel %vm1863, %v3121, 0
        %v3276 = vsel %vm2110, %v3271, 0
        %3278 = vmatprep.subr.bf16.mxu0 0
        %3279 = vmatpush1.bf16.msra.mxu0 %v3276
        %3280 = vmatprep.subr.bf16.mxu0 0
        %3281 = vmatpush1.bf16.msra.mxu0 0
        %3282 = vmatprep.subr.bf16.mxu0 0
        %3283 = vmatpush1.bf16.msra.mxu0 0
        %3284 = vmatprep.subr.bf16.mxu0 0
        %3285 = vmatpush1.bf16.msra.mxu0 0
        %3286 = vmatprep.subr.bf16.mxu0 0
        %3287 = vmatpush1.bf16.msra.mxu0 0
        %3288 = vmatprep.subr.bf16.mxu0 0
        %3289 = vmatpush1.bf16.msra.mxu0 0
        %3290 = vmatprep.subr.bf16.mxu0 0
        %3291 = vmatpush1.bf16.msra.mxu0 0
        %3292 = vmatprep.subr.bf16.mxu0 0
        %3293 = vmatpush1.bf16.msra.mxu0 0
        %3294 = vmatprep.subr.bf16.mxu0 0
        %3295 = vmatpush1.bf16.msra.mxu0 0
        %3296 = vmatprep.subr.bf16.mxu0 0
        %3297 = vmatpush1.bf16.msra.mxu0 0
        %3298 = vmatprep.subr.bf16.mxu0 0
        %3299 = vmatpush1.bf16.msra.mxu0 0
        %3300 = vmatprep.subr.bf16.mxu0 0
        %3301 = vmatpush1.bf16.msra.mxu0 0
        %3302 = vmatprep.subr.bf16.mxu0 0
        %3303 = vmatpush1.bf16.msra.mxu0 0
        %3304 = vmatprep.subr.bf16.mxu0 0
        %3305 = vmatpush1.bf16.msra.mxu0 0
        %3306 = vmatprep.subr.bf16.mxu0 0
        %3307 = vmatpush1.bf16.msra.mxu0 0
        %3308 = vmatprep.subr.bf16.mxu0 0
        %3309 = vmatpush1.bf16.msra.mxu0 0
        %3310 = vmatprep.mubr.bf16.mxu0 0
        %3311 = vmatmul.mubr.bf16.gmra.mrb[0].mxu0 %v3273
        %v3312 = vpop.f32.mrb[0].mxu0
        %v3313 = vadd.f32 0.0, %v3312
        %v3314 = vpop.f32.mrb[0].mxu0
        %v3315 = vpop.f32.mrb[0].mxu0
        %v3316 = vpop.f32.mrb[0].mxu0
        %3317 = vdwg.mxu0
        %v3318 = vpack.c.bf16 %v3166, %v3166
        %v3319 = vpack.c.bf16 %v3215, %v3215
        %v3320 = vpack.c.bf16 %v3264, %v3264
        %v3321 = vpack.c.bf16 %v3313, %v3313
        %v3322 = vld [vmem:[%s53] sm:$0xf]
        %v3323 = vld [vmem:[%s53 + $0x4] sm:$0xf]
        %v3324 = vld [vmem:[%s53 + $0x8] sm:$0xf]
        %v3325 = vld [vmem:[%s53 + $0xc] sm:$0xf]
        %v3327 = vsel %vm1863, %v3318, 0
        %v3330 = vsel %vm2110, %v3322, 0
        %3332 = vmatprep.subr.bf16.mxu0 0
        %3333 = vmatpush1.bf16.msra.mxu0 %v3330
        %3334 = vmatprep.subr.bf16.mxu0 0
        %3335 = vmatpush1.bf16.msra.mxu0 0
        %3336 = vmatprep.subr.bf16.mxu0 0
        %3337 = vmatpush1.bf16.msra.mxu0 0
        %3338 = vmatprep.subr.bf16.mxu0 0
        %3339 = vmatpush1.bf16.msra.mxu0 0
        %3340 = vmatprep.subr.bf16.mxu0 0
        %3341 = vmatpush1.bf16.msra.mxu0 0
        %3342 = vmatprep.subr.bf16.mxu0 0
        %3343 = vmatpush1.bf16.msra.mxu0 0
        %3344 = vmatprep.subr.bf16.mxu0 0
        %3345 = vmatpush1.bf16.msra.mxu0 0
        %3346 = vmatprep.subr.bf16.mxu0 0
        %3347 = vmatpush1.bf16.msra.mxu0 0
        %3348 = vmatprep.subr.bf16.mxu0 0
        %3349 = vmatpush1.bf16.msra.mxu0 0
        %3350 = vmatprep.subr.bf16.mxu0 0
        %3351 = vmatpush1.bf16.msra.mxu0 0
        %3352 = vmatprep.subr.bf16.mxu0 0
        %3353 = vmatpush1.bf16.msra.mxu0 0
        %3354 = vmatprep.subr.bf16.mxu0 0
        %3355 = vmatpush1.bf16.msra.mxu0 0
        %3356 = vmatprep.subr.bf16.mxu0 0
        %3357 = vmatpush1.bf16.msra.mxu0 0
        %3358 = vmatprep.subr.bf16.mxu0 0
        %3359 = vmatpush1.bf16.msra.mxu0 0
        %3360 = vmatprep.subr.bf16.mxu0 0
        %3361 = vmatpush1.bf16.msra.mxu0 0
        %3362 = vmatprep.subr.bf16.mxu0 0
        %3363 = vmatpush1.bf16.msra.mxu0 0
        %3364 = vmatprep.mubr.bf16.mxu0 0
        %3365 = vmatmul.mubr.bf16.gmra.mrb[0].mxu0 %v3327
        %v3366 = vpop.f32.mrb[0].mxu0
        %v3367 = vadd.f32 0.0, %v3366
        %v3368 = vpop.f32.mrb[0].mxu0
        %v3369 = vpop.f32.mrb[0].mxu0
        %v3370 = vpop.f32.mrb[0].mxu0
        %3371 = vdwg.mxu0
        %v3373 = vsel %vm1863, %v3319, 0
        %v3376 = vsel %vm2110, %v3323, 0
        %3378 = vmatprep.subr.bf16.mxu0 0
        %3379 = vmatpush1.bf16.msra.mxu0 %v3376
        %3380 = vmatprep.subr.bf16.mxu0 0
        %3381 = vmatpush1.bf16.msra.mxu0 0
        %3382 = vmatprep.subr.bf16.mxu0 0
        %3383 = vmatpush1.bf16.msra.mxu0 0
        %3384 = vmatprep.subr.bf16.mxu0 0
        %3385 = vmatpush1.bf16.msra.mxu0 0
        %3386 = vmatprep.subr.bf16.mxu0 0
        %3387 = vmatpush1.bf16.msra.mxu0 0
        %3388 = vmatprep.subr.bf16.mxu0 0
        %3389 = vmatpush1.bf16.msra.mxu0 0
        %3390 = vmatprep.subr.bf16.mxu0 0
        %3391 = vmatpush1.bf16.msra.mxu0 0
        %3392 = vmatprep.subr.bf16.mxu0 0
        %3393 = vmatpush1.bf16.msra.mxu0 0
        %3394 = vmatprep.subr.bf16.mxu0 0
        %3395 = vmatpush1.bf16.msra.mxu0 0
        %3396 = vmatprep.subr.bf16.mxu0 0
        %3397 = vmatpush1.bf16.msra.mxu0 0
        %3398 = vmatprep.subr.bf16.mxu0 0
        %3399 = vmatpush1.bf16.msra.mxu0 0
        %3400 = vmatprep.subr.bf16.mxu0 0
        %3401 = vmatpush1.bf16.msra.mxu0 0
        %3402 = vmatprep.subr.bf16.mxu0 0
        %3403 = vmatpush1.bf16.msra.mxu0 0
        %3404 = vmatprep.subr.bf16.mxu0 0
        %3405 = vmatpush1.bf16.msra.mxu0 0
        %3406 = vmatprep.subr.bf16.mxu0 0
        %3407 = vmatpush1.bf16.msra.mxu0 0
        %3408 = vmatprep.subr.bf16.mxu0 0
        %3409 = vmatpush1.bf16.msra.mxu0 0
        %3410 = vmatprep.mubr.bf16.mxu0 0
        %3411 = vmatmul.mubr.bf16.gmra.mrb[0].mxu0 %v3373
        %v3412 = vpop.f32.mrb[0].mxu0
        %v3413 = vadd.f32 0.0, %v3412
        %v3414 = vpop.f32.mrb[0].mxu0
        %v3415 = vpop.f32.mrb[0].mxu0
        %v3416 = vpop.f32.mrb[0].mxu0
        %3417 = vdwg.mxu0
        %v3419 = vsel %vm1863, %v3320, 0
        %v3422 = vsel %vm2110, %v3324, 0
        %3424 = vmatprep.subr.bf16.mxu0 0
        %3425 = vmatpush1.bf16.msra.mxu0 %v3422
        %3426 = vmatprep.subr.bf16.mxu0 0
        %3427 = vmatpush1.bf16.msra.mxu0 0
        %3428 = vmatprep.subr.bf16.mxu0 0
        %3429 = vmatpush1.bf16.msra.mxu0 0
        %3430 = vmatprep.subr.bf16.mxu0 0
        %3431 = vmatpush1.bf16.msra.mxu0 0
        %3432 = vmatprep.subr.bf16.mxu0 0
        %3433 = vmatpush1.bf16.msra.mxu0 0
        %3434 = vmatprep.subr.bf16.mxu0 0
        %3435 = vmatpush1.bf16.msra.mxu0 0
        %3436 = vmatprep.subr.bf16.mxu0 0
        %3437 = vmatpush1.bf16.msra.mxu0 0
        %3438 = vmatprep.subr.bf16.mxu0 0
        %3439 = vmatpush1.bf16.msra.mxu0 0
        %3440 = vmatprep.subr.bf16.mxu0 0
        %3441 = vmatpush1.bf16.msra.mxu0 0
        %3442 = vmatprep.subr.bf16.mxu0 0
        %3443 = vmatpush1.bf16.msra.mxu0 0
        %3444 = vmatprep.subr.bf16.mxu0 0
        %3445 = vmatpush1.bf16.msra.mxu0 0
        %3446 = vmatprep.subr.bf16.mxu0 0
        %3447 = vmatpush1.bf16.msra.mxu0 0
        %3448 = vmatprep.subr.bf16.mxu0 0
        %3449 = vmatpush1.bf16.msra.mxu0 0
        %3450 = vmatprep.subr.bf16.mxu0 0
        %3451 = vmatpush1.bf16.msra.mxu0 0
        %3452 = vmatprep.subr.bf16.mxu0 0
        %3453 = vmatpush1.bf16.msra.mxu0 0
        %3454 = vmatprep.subr.bf16.mxu0 0
        %3455 = vmatpush1.bf16.msra.mxu0 0
        %3456 = vmatprep.mubr.bf16.mxu0 0
        %3457 = vmatmul.mubr.bf16.gmra.mrb[0].mxu0 %v3419
        %v3458 = vpop.f32.mrb[0].mxu0
        %v3459 = vadd.f32 0.0, %v3458
        %v3460 = vpop.f32.mrb[0].mxu0
        %v3461 = vpop.f32.mrb[0].mxu0
        %v3462 = vpop.f32.mrb[0].mxu0
        %3463 = vdwg.mxu0
        %v3465 = vsel %vm1863, %v3321, 0
        %v3468 = vsel %vm2110, %v3325, 0
        %3470 = vmatprep.subr.bf16.mxu0 0
        %3471 = vmatpush1.bf16.msra.mxu0 %v3468
        %3472 = vmatprep.subr.bf16.mxu0 0
        %3473 = vmatpush1.bf16.msra.mxu0 0
        %3474 = vmatprep.subr.bf16.mxu0 0
        %3475 = vmatpush1.bf16.msra.mxu0 0
        %3476 = vmatprep.subr.bf16.mxu0 0
        %3477 = vmatpush1.bf16.msra.mxu0 0
        %3478 = vmatprep.subr.bf16.mxu0 0
        %3479 = vmatpush1.bf16.msra.mxu0 0
        %3480 = vmatprep.subr.bf16.mxu0 0
        %3481 = vmatpush1.bf16.msra.mxu0 0
        %3482 = vmatprep.subr.bf16.mxu0 0
        %3483 = vmatpush1.bf16.msra.mxu0 0
        %3484 = vmatprep.subr.bf16.mxu0 0
        %3485 = vmatpush1.bf16.msra.mxu0 0
        %3486 = vmatprep.subr.bf16.mxu0 0
        %3487 = vmatpush1.bf16.msra.mxu0 0
        %3488 = vmatprep.subr.bf16.mxu0 0
        %3489 = vmatpush1.bf16.msra.mxu0 0
        %3490 = vmatprep.subr.bf16.mxu0 0
        %3491 = vmatpush1.bf16.msra.mxu0 0
        %3492 = vmatprep.subr.bf16.mxu0 0
        %3493 = vmatpush1.bf16.msra.mxu0 0
        %3494 = vmatprep.subr.bf16.mxu0 0
        %3495 = vmatpush1.bf16.msra.mxu0 0
        %3496 = vmatprep.subr.bf16.mxu0 0
        %3497 = vmatpush1.bf16.msra.mxu0 0
        %3498 = vmatprep.subr.bf16.mxu0 0
        %3499 = vmatpush1.bf16.msra.mxu0 0
        %3500 = vmatprep.subr.bf16.mxu0 0
        %3501 = vmatpush1.bf16.msra.mxu0 0
        %3502 = vmatprep.mubr.bf16.mxu0 0
        %3503 = vmatmul.mubr.bf16.gmra.mrb[0].mxu0 %v3465
        %v3504 = vpop.f32.mrb[0].mxu0
        %v3505 = vadd.f32 0.0, %v3504
        %v3506 = vpop.f32.mrb[0].mxu0
        %v3507 = vpop.f32.mrb[0].mxu0
        %v3508 = vpop.f32.mrb[0].mxu0
        %3509 = vdwg.mxu0
        %v3510 = vsel %vm1676, %v3367, 0.0
        %v3511 = vsel %vm1676, %v3413, 0.0
        %v3512 = vadd.f32 %v3510, %v3511
        %v3513 = vsel %vm1676, %v3459, 0.0
        %v3514 = vadd.f32 %v3512, %v3513
        %v3515 = vsel %vm1676, %v3505, 0.0
        %v3516 = vadd.f32 %v3514, %v3515
        %v3517 = vld [vmem:[%s55] sm:$0x1]
        %v3519 = vlaneseq
        %v3520 = vshrl.u32 %v3519, 7
        %v3521 = vsub.s32 0, %v3520
        %v3522 = vrot.slane %v3517, %v3521
        %v3524 = vadd.f32 %v3516, %v3522
        %v3525 = vadd.f32 %v3524, %v2704
        %v3526 = vsel %vm1676, %v3525, 0.0
        %3527 = vadd.xlane.f32.xlu0 %v3526
        %v3528 = vpop.xlane.xlu0 %3527
        %v3529 = vmul.f32 %v3528, %v1680
        %v3530 = vsub.f32 %v3525, %v3529
        %v3531 = vmul.f32 %v3530, %v3530
        %v3532 = vsel %vm1676, %v3531, 0.0
        %3533 = vadd.xlane.f32.xlu0 %v3532
        %v3534 = vpop.xlane.xlu0 %3533
        %v3535 = vmul.f32 %v3534, %v1680
        %v3536 = vadd.f32 %v3535, 1e-05
        %v3537 = vrsqrt.pop %v3536
        %v3538 = vmul.f32 %v3530, %v3537
        %v3540 = vlaneseq
        %v3541 = vshrl.u32 %v3540, 7
        %v3542 = vsub.s32 0, %v3541
        %v3543 = vrot.slane %v2676, %v3542
        %v3545 = vmul.f32 %v3538, %v3543
        %v3547 = vlaneseq
        %v3548 = vshrl.u32 %v3547, 7
        %v3549 = vsub.s32 0, %v3548
        %v3550 = vrot.slane %v2677, %v3549
        %v3552 = vadd.f32 %v3545, %v3550
        %v3553 = vpack.c.bf16 %v3552, %v3552
        %v3554 = vld [vmem:[%s57] sm:$0xf]
        %v3555 = vld [vmem:[%s57 + $0x4] sm:$0xf]
        %v3556 = vld [vmem:[%s57 + $0x8] sm:$0xf]
        %v3557 = vld [vmem:[%s57 + $0xc] sm:$0xf]
        %v3558 = vld [vmem:[%s59] sm:$0x1]
        %v3560 = vlaneseq
        %v3561 = vshrl.u32 %v3560, 7
        %v3562 = vsub.s32 0, %v3561
        %v3563 = vrot.slane %v3558, %v3562
        %v3569 = vunpack.c.l.b16 %v3554
        %v3570 = vunpack.c.l.b16 %v3555
        %v3571 = vunpack.c.l.b16 %v3556
        %v3572 = vunpack.c.l.b16 %v3557
        %v3573 = vpack.c.b16 %v3570, %v3569
        %v3574 = vpack.c.b16 %v3572, %v3571
        %v3578 = vsel %vm1676, %v3553, 0
        %3580 = vmatprep.subr.bf16.mxu0 0
        %3581 = vmatpush1.bf16.msra.mxu0 %v3573
        %3582 = vmatprep.subr.bf16.mxu0 0
        %3583 = vmatpush1.bf16.msra.mxu0 %v3574
        %3584 = vmatprep.subr.bf16.mxu0 0
        %3585 = vmatpush1.bf16.msra.mxu0 0
        %3586 = vmatprep.subr.bf16.mxu0 0
        %3587 = vmatpush1.bf16.msra.mxu0 0
        %3588 = vmatprep.subr.bf16.mxu0 0
        %3589 = vmatpush1.bf16.msra.mxu0 0
        %3590 = vmatprep.subr.bf16.mxu0 0
        %3591 = vmatpush1.bf16.msra.mxu0 0
        %3592 = vmatprep.subr.bf16.mxu0 0
        %3593 = vmatpush1.bf16.msra.mxu0 0
        %3594 = vmatprep.subr.bf16.mxu0 0
        %3595 = vmatpush1.bf16.msra.mxu0 0
        %3596 = vmatprep.subr.bf16.mxu0 0
        %3597 = vmatpush1.bf16.msra.mxu0 0
        %3598 = vmatprep.subr.bf16.mxu0 0
        %3599 = vmatpush1.bf16.msra.mxu0 0
        %3600 = vmatprep.subr.bf16.mxu0 0
        %3601 = vmatpush1.bf16.msra.mxu0 0
        %3602 = vmatprep.subr.bf16.mxu0 0
        %3603 = vmatpush1.bf16.msra.mxu0 0
        %3604 = vmatprep.subr.bf16.mxu0 0
        %3605 = vmatpush1.bf16.msra.mxu0 0
        %3606 = vmatprep.subr.bf16.mxu0 0
        %3607 = vmatpush1.bf16.msra.mxu0 0
        %3608 = vmatprep.subr.bf16.mxu0 0
        %3609 = vmatpush1.bf16.msra.mxu0 0
        %3610 = vmatprep.subr.bf16.mxu0 0
        %3611 = vmatpush1.bf16.msra.mxu0 0
        %3612 = vmatprep.mubr.bf16.mxu0 0
        %3613 = vmatmul.mubr.bf16.gmra.mrb[0].mxu0 %v3578
        %v3614 = vpop.f32.mrb[0].mxu0
        %v3615 = vadd.f32 %v3563, %v3614
        %v3616 = vpop.f32.mrb[0].mxu0
        %v3617 = vpop.f32.mrb[0].mxu0
        %v3618 = vpop.f32.mrb[0].mxu0
        %3619 = vdwg.mxu0
        %v3620 = vmax.f32 %v3615, 0.0
        %v3621 = vpack.c.bf16 %v3620, %v3620
        %s3622 = scalar_lea.vmem %s57, 16
        %v3623 = vld [vmem:[%s3622] sm:$0xf]
        %v3624 = vld [vmem:[%s3622 + $0x4] sm:$0xf]
        %v3625 = vld [vmem:[%s3622 + $0x8] sm:$0xf]
        %v3626 = vld [vmem:[%s3622 + $0xc] sm:$0xf]
        %s3627 = scalar_lea.vmem %s59, 1
        %v3628 = vld [vmem:[%s3627] sm:$0x1]
        %v3630 = vlaneseq
        %v3631 = vshrl.u32 %v3630, 7
        %v3632 = vsub.s32 0, %v3631
        %v3633 = vrot.slane %v3628, %v3632
        %v3639 = vunpack.c.l.b16 %v3623
        %v3640 = vunpack.c.l.b16 %v3624
        %v3641 = vunpack.c.l.b16 %v3625
        %v3642 = vunpack.c.l.b16 %v3626
        %v3643 = vpack.c.b16 %v3640, %v3639
        %v3644 = vpack.c.b16 %v3642, %v3641
        %v3648 = vsel %vm1676, %v3621, 0
        %3650 = vmatprep.subr.bf16.mxu0 0
        %3651 = vmatpush1.bf16.msra.mxu0 %v3643
        %3652 = vmatprep.subr.bf16.mxu0 0
        %3653 = vmatpush1.bf16.msra.mxu0 %v3644
        %3654 = vmatprep.subr.bf16.mxu0 0
        %3655 = vmatpush1.bf16.msra.mxu0 0
        %3656 = vmatprep.subr.bf16.mxu0 0
        %3657 = vmatpush1.bf16.msra.mxu0 0
        %3658 = vmatprep.subr.bf16.mxu0 0
        %3659 = vmatpush1.bf16.msra.mxu0 0
        %3660 = vmatprep.subr.bf16.mxu0 0
        %3661 = vmatpush1.bf16.msra.mxu0 0
        %3662 = vmatprep.subr.bf16.mxu0 0
        %3663 = vmatpush1.bf16.msra.mxu0 0
        %3664 = vmatprep.subr.bf16.mxu0 0
        %3665 = vmatpush1.bf16.msra.mxu0 0
        %3666 = vmatprep.subr.bf16.mxu0 0
        %3667 = vmatpush1.bf16.msra.mxu0 0
        %3668 = vmatprep.subr.bf16.mxu0 0
        %3669 = vmatpush1.bf16.msra.mxu0 0
        %3670 = vmatprep.subr.bf16.mxu0 0
        %3671 = vmatpush1.bf16.msra.mxu0 0
        %3672 = vmatprep.subr.bf16.mxu0 0
        %3673 = vmatpush1.bf16.msra.mxu0 0
        %3674 = vmatprep.subr.bf16.mxu0 0
        %3675 = vmatpush1.bf16.msra.mxu0 0
        %3676 = vmatprep.subr.bf16.mxu0 0
        %3677 = vmatpush1.bf16.msra.mxu0 0
        %3678 = vmatprep.subr.bf16.mxu0 0
        %3679 = vmatpush1.bf16.msra.mxu0 0
        %3680 = vmatprep.subr.bf16.mxu0 0
        %3681 = vmatpush1.bf16.msra.mxu0 0
        %3682 = vmatprep.mubr.bf16.mxu0 0
        %3683 = vmatmul.mubr.bf16.gmra.mrb[0].mxu0 %v3648
        %v3684 = vpop.f32.mrb[0].mxu0
        %v3685 = vadd.f32 %v3633, %v3684
        %v3686 = vpop.f32.mrb[0].mxu0
        %v3687 = vpop.f32.mrb[0].mxu0
        %v3688 = vpop.f32.mrb[0].mxu0
        %3689 = vdwg.mxu0
        %v3690 = vadd.f32 %v3685, %v3552
        %v3691 = vld [vmem:[%s43] sm:$0x1]
        %v3692 = vld [vmem:[%s43 + $0x1] sm:$0x1]
        %v3693 = vld [vmem:[%s43 + $0x2] sm:$0x1]
        %v3694 = vld [vmem:[%s43 + $0x3] sm:$0x1]
        %v3695 = vsel %vm1676, %v3690, 0.0
        %3696 = vadd.xlane.f32.xlu0 %v3695
        %v3697 = vpop.xlane.xlu0 %3696
        %v3698 = vmul.f32 %v3697, %v1680
        %v3699 = vsub.f32 %v3690, %v3698
        %v3700 = vmul.f32 %v3699, %v3699
        %v3701 = vsel %vm1676, %v3700, 0.0
        %3702 = vadd.xlane.f32.xlu0 %v3701
        %v3703 = vpop.xlane.xlu0 %3702
        %v3704 = vmul.f32 %v3703, %v1680
        %v3705 = vadd.f32 %v3704, 1e-05
        %v3706 = vrsqrt.pop %v3705
        %v3707 = vmul.f32 %v3699, %v3706
        %v3709 = vlaneseq
        %v3710 = vshrl.u32 %v3709, 7
        %v3711 = vsub.s32 0, %v3710
        %v3712 = vrot.slane %v3691, %v3711
        %v3714 = vmul.f32 %v3707, %v3712
        %v3716 = vlaneseq
        %v3717 = vshrl.u32 %v3716, 7
        %v3718 = vsub.s32 0, %v3717
        %v3719 = vrot.slane %v3692, %v3718
        %v3721 = vadd.f32 %v3714, %v3719
        %v3722 = vmul.f32 %v2717, %v3712
        %v3723 = vadd.f32 %v3722, %v3719
        %v3724 = vpack.c.bf16 %v3721, %v3721
        %v3725 = vld [vmem:[%s45] sm:$0xf]
        %v3726 = vld [vmem:[%s45 + $0x4] sm:$0xf]
        %v3727 = vld [vmem:[%s45 + $0x8] sm:$0xf]
        %v3728 = vld [vmem:[%s45 + $0xc] sm:$0xf]
        %v3729 = vld [vmem:[%s49] sm:$0x1]
        %v3731 = vlaneseq
        %v3732 = vshrl.u32 %v3731, 7
        %v3733 = vsub.s32 0, %v3732
        %v3734 = vrot.slane %v3729, %v3733
        %v3740 = vunpack.c.l.b16 %v3725
        %v3741 = vunpack.c.l.b16 %v3726
        %v3742 = vunpack.c.l.b16 %v3727
        %v3743 = vunpack.c.l.b16 %v3728
        %v3744 = vpack.c.b16 %v3741, %v3740
        %v3745 = vpack.c.b16 %v3743, %v3742
        %v3749 = vsel %vm1676, %v3724, 0
        %3751 = vmatprep.subr.bf16.mxu0 0
        %3752 = vmatpush1.bf16.msra.mxu0 %v3744
        %3753 = vmatprep.subr.bf16.mxu0 0
        %3754 = vmatpush1.bf16.msra.mxu0 %v3745
        %3755 = vmatprep.subr.bf16.mxu0 0
        %3756 = vmatpush1.bf16.msra.mxu0 0
        %3757 = vmatprep.subr.bf16.mxu0 0
        %3758 = vmatpush1.bf16.msra.mxu0 0
        %3759 = vmatprep.subr.bf16.mxu0 0
        %3760 = vmatpush1.bf16.msra.mxu0 0
        %3761 = vmatprep.subr.bf16.mxu0 0
        %3762 = vmatpush1.bf16.msra.mxu0 0
        %3763 = vmatprep.subr.bf16.mxu0 0
        %3764 = vmatpush1.bf16.msra.mxu0 0
        %3765 = vmatprep.subr.bf16.mxu0 0
        %3766 = vmatpush1.bf16.msra.mxu0 0
        %3767 = vmatprep.subr.bf16.mxu0 0
        %3768 = vmatpush1.bf16.msra.mxu0 0
        %3769 = vmatprep.subr.bf16.mxu0 0
        %3770 = vmatpush1.bf16.msra.mxu0 0
        %3771 = vmatprep.subr.bf16.mxu0 0
        %3772 = vmatpush1.bf16.msra.mxu0 0
        %3773 = vmatprep.subr.bf16.mxu0 0
        %3774 = vmatpush1.bf16.msra.mxu0 0
        %3775 = vmatprep.subr.bf16.mxu0 0
        %3776 = vmatpush1.bf16.msra.mxu0 0
        %3777 = vmatprep.subr.bf16.mxu0 0
        %3778 = vmatpush1.bf16.msra.mxu0 0
        %3779 = vmatprep.subr.bf16.mxu0 0
        %3780 = vmatpush1.bf16.msra.mxu0 0
        %3781 = vmatprep.subr.bf16.mxu0 0
        %3782 = vmatpush1.bf16.msra.mxu0 0
        %3783 = vmatprep.mubr.bf16.mxu0 0
        %3784 = vmatmul.mubr.bf16.gmra.mrb[0].mxu0 %v3749
        %v3785 = vpop.f32.mrb[0].mxu0
        %v3786 = vadd.f32 %v3734, %v3785
        %v3787 = vpop.f32.mrb[0].mxu0
        %v3788 = vpop.f32.mrb[0].mxu0
        %v3789 = vpop.f32.mrb[0].mxu0
        %3790 = vdwg.mxu0
        %v3791 = vpack.c.bf16 %v3723, %v3723
        %v3792 = vld [vmem:[%s47] sm:$0xf]
        %v3793 = vld [vmem:[%s47 + $0x4] sm:$0xf]
        %v3794 = vld [vmem:[%s47 + $0x8] sm:$0xf]
        %v3795 = vld [vmem:[%s47 + $0xc] sm:$0xf]
        %v3796 = vld [vmem:[%s51] sm:$0x1]
        %v3798 = vlaneseq
        %v3799 = vshrl.u32 %v3798, 7
        %v3800 = vsub.s32 0, %v3799
        %v3801 = vrot.slane %v3796, %v3800
        %v3807 = vunpack.c.l.b16 %v3792
        %v3808 = vunpack.c.l.b16 %v3793
        %v3809 = vunpack.c.l.b16 %v3794
        %v3810 = vunpack.c.l.b16 %v3795
        %v3811 = vpack.c.b16 %v3808, %v3807
        %v3812 = vpack.c.b16 %v3810, %v3809
        %v3816 = vsel %vm1676, %v3791, 0
        %3818 = vmatprep.subr.bf16.mxu0 0
        %3819 = vmatpush1.bf16.msra.mxu0 %v3811
        %3820 = vmatprep.subr.bf16.mxu0 0
        %3821 = vmatpush1.bf16.msra.mxu0 %v3812
        %3822 = vmatprep.subr.bf16.mxu0 0
        %3823 = vmatpush1.bf16.msra.mxu0 0
        %3824 = vmatprep.subr.bf16.mxu0 0
        %3825 = vmatpush1.bf16.msra.mxu0 0
        %3826 = vmatprep.subr.bf16.mxu0 0
        %3827 = vmatpush1.bf16.msra.mxu0 0
        %3828 = vmatprep.subr.bf16.mxu0 0
        %3829 = vmatpush1.bf16.msra.mxu0 0
        %3830 = vmatprep.subr.bf16.mxu0 0
        %3831 = vmatpush1.bf16.msra.mxu0 0
        %3832 = vmatprep.subr.bf16.mxu0 0
        %3833 = vmatpush1.bf16.msra.mxu0 0
        %3834 = vmatprep.subr.bf16.mxu0 0
        %3835 = vmatpush1.bf16.msra.mxu0 0
        %3836 = vmatprep.subr.bf16.mxu0 0
        %3837 = vmatpush1.bf16.msra.mxu0 0
        %3838 = vmatprep.subr.bf16.mxu0 0
        %3839 = vmatpush1.bf16.msra.mxu0 0
        %3840 = vmatprep.subr.bf16.mxu0 0
        %3841 = vmatpush1.bf16.msra.mxu0 0
        %3842 = vmatprep.subr.bf16.mxu0 0
        %3843 = vmatpush1.bf16.msra.mxu0 0
        %3844 = vmatprep.subr.bf16.mxu0 0
        %3845 = vmatpush1.bf16.msra.mxu0 0
        %3846 = vmatprep.subr.bf16.mxu0 0
        %3847 = vmatpush1.bf16.msra.mxu0 0
        %3848 = vmatprep.subr.bf16.mxu0 0
        %3849 = vmatpush1.bf16.msra.mxu0 0
        %3850 = vmatprep.mubr.bf16.mxu0 0
        %3851 = vmatmul.mubr.bf16.gmra.mrb[0].mxu0 %v3816
        %v3852 = vpop.f32.mrb[0].mxu0
        %v3853 = vadd.f32 %v3801, %v3852
        %v3854 = vpop.f32.mrb[0].mxu0
        %v3855 = vpop.f32.mrb[0].mxu0
        %v3856 = vpop.f32.mrb[0].mxu0
        %3857 = vdwg.mxu0
        %3859 = vrot.lane.b32.xlu0 %v3786, 120
        %v3860 = vpop.permute.xlu0 %3859
        %3862 = vrot.lane.b32.xlu0 %v3786, 112
        %v3863 = vpop.permute.xlu0 %3862
        %3865 = vrot.lane.b32.xlu0 %v3786, 104
        %v3866 = vpop.permute.xlu0 %3865
        %3869 = vrot.lane.b32.xlu0 %v3853, 120
        %v3870 = vpop.permute.xlu0 %3869
        %3872 = vrot.lane.b32.xlu0 %v3853, 112
        %v3873 = vpop.permute.xlu0 %3872
        %3875 = vrot.lane.b32.xlu0 %v3853, 104
        %v3876 = vpop.permute.xlu0 %3875
        %v3878 = vpack.c.bf16 %v3786, %v3786
        %v3879 = vpack.c.bf16 %v3860, %v3860
        %v3880 = vpack.c.bf16 %v3863, %v3863
        %v3881 = vpack.c.bf16 %v3866, %v3866
        %v3882 = vpack.c.bf16 %v3853, %v3853
        %v3883 = vpack.c.bf16 %v3870, %v3870
        %v3884 = vpack.c.bf16 %v3873, %v3873
        %v3885 = vpack.c.bf16 %v3876, %v3876
        %v3887 = vsel %vm1863, %v3878, 0
        %v3890 = vsel %vm1863, %v3882, 0
        %3892 = vmatprep.subr.bf16.mxu0 0
        %3893 = vmatpush1.bf16.xpose.msra.mxu0 %v3890
        %3894 = vmatprep.subr.bf16.mxu0 0
        %3895 = vmatpush1.bf16.xpose.msra.mxu0 0
        %3896 = vmatprep.subr.bf16.mxu0 0
        %3897 = vmatpush1.bf16.xpose.msra.mxu0 0
        %3898 = vmatprep.subr.bf16.mxu0 0
        %3899 = vmatpush1.bf16.xpose.msra.mxu0 0
        %3900 = vmatprep.subr.bf16.mxu0 0
        %3901 = vmatpush1.bf16.xpose.msra.mxu0 0
        %3902 = vmatprep.subr.bf16.mxu0 0
        %3903 = vmatpush1.bf16.xpose.msra.mxu0 0
        %3904 = vmatprep.subr.bf16.mxu0 0
        %3905 = vmatpush1.bf16.xpose.msra.mxu0 0
        %3906 = vmatprep.subr.bf16.mxu0 0
        %3907 = vmatpush1.bf16.xpose.msra.mxu0 0
        %3908 = vmatprep.subr.bf16.mxu0 0
        %3909 = vmatpush1.bf16.xpose.msra.mxu0 0
        %3910 = vmatprep.subr.bf16.mxu0 0
        %3911 = vmatpush1.bf16.xpose.msra.mxu0 0
        %3912 = vmatprep.subr.bf16.mxu0 0
        %3913 = vmatpush1.bf16.xpose.msra.mxu0 0
        %3914 = vmatprep.subr.bf16.mxu0 0
        %3915 = vmatpush1.bf16.xpose.msra.mxu0 0
        %3916 = vmatprep.subr.bf16.mxu0 0
        %3917 = vmatpush1.bf16.xpose.msra.mxu0 0
        %3918 = vmatprep.subr.bf16.mxu0 0
        %3919 = vmatpush1.bf16.xpose.msra.mxu0 0
        %3920 = vmatprep.subr.bf16.mxu0 0
        %3921 = vmatpush1.bf16.xpose.msra.mxu0 0
        %3922 = vmatprep.subr.bf16.mxu0 0
        %3923 = vmatpush1.bf16.xpose.msra.mxu0 0
        %3924 = vmatprep.mubr.bf16.mxu0 0
        %3925 = vmatmul.mubr.bf16.gmra.mrb[0].mxu0 %v3887
        %v3926 = vpop.f32.mrb[0].mxu0
        %v3927 = vadd.f32 0.0, %v3926
        %v3928 = vpop.f32.mrb[0].mxu0
        %v3929 = vpop.f32.mrb[0].mxu0
        %v3930 = vpop.f32.mrb[0].mxu0
        %3931 = vdwg.mxu0
        %v3933 = vsel %vm1863, %v3879, 0
        %v3936 = vsel %vm1863, %v3883, 0
        %3938 = vmatprep.subr.bf16.mxu0 0
        %3939 = vmatpush1.bf16.xpose.msra.mxu0 %v3936
        %3940 = vmatprep.subr.bf16.mxu0 0
        %3941 = vmatpush1.bf16.xpose.msra.mxu0 0
        %3942 = vmatprep.subr.bf16.mxu0 0
        %3943 = vmatpush1.bf16.xpose.msra.mxu0 0
        %3944 = vmatprep.subr.bf16.mxu0 0
        %3945 = vmatpush1.bf16.xpose.msra.mxu0 0
        %3946 = vmatprep.subr.bf16.mxu0 0
        %3947 = vmatpush1.bf16.xpose.msra.mxu0 0
        %3948 = vmatprep.subr.bf16.mxu0 0
        %3949 = vmatpush1.bf16.xpose.msra.mxu0 0
        %3950 = vmatprep.subr.bf16.mxu0 0
        %3951 = vmatpush1.bf16.xpose.msra.mxu0 0
        %3952 = vmatprep.subr.bf16.mxu0 0
        %3953 = vmatpush1.bf16.xpose.msra.mxu0 0
        %3954 = vmatprep.subr.bf16.mxu0 0
        %3955 = vmatpush1.bf16.xpose.msra.mxu0 0
        %3956 = vmatprep.subr.bf16.mxu0 0
        %3957 = vmatpush1.bf16.xpose.msra.mxu0 0
        %3958 = vmatprep.subr.bf16.mxu0 0
        %3959 = vmatpush1.bf16.xpose.msra.mxu0 0
        %3960 = vmatprep.subr.bf16.mxu0 0
        %3961 = vmatpush1.bf16.xpose.msra.mxu0 0
        %3962 = vmatprep.subr.bf16.mxu0 0
        %3963 = vmatpush1.bf16.xpose.msra.mxu0 0
        %3964 = vmatprep.subr.bf16.mxu0 0
        %3965 = vmatpush1.bf16.xpose.msra.mxu0 0
        %3966 = vmatprep.subr.bf16.mxu0 0
        %3967 = vmatpush1.bf16.xpose.msra.mxu0 0
        %3968 = vmatprep.subr.bf16.mxu0 0
        %3969 = vmatpush1.bf16.xpose.msra.mxu0 0
        %3970 = vmatprep.mubr.bf16.mxu0 0
        %3971 = vmatmul.mubr.bf16.gmra.mrb[0].mxu0 %v3933
        %v3972 = vpop.f32.mrb[0].mxu0
        %v3973 = vadd.f32 0.0, %v3972
        %v3974 = vpop.f32.mrb[0].mxu0
        %v3975 = vpop.f32.mrb[0].mxu0
        %v3976 = vpop.f32.mrb[0].mxu0
        %3977 = vdwg.mxu0
        %v3979 = vsel %vm1863, %v3880, 0
        %v3982 = vsel %vm1863, %v3884, 0
        %3984 = vmatprep.subr.bf16.mxu0 0
        %3985 = vmatpush1.bf16.xpose.msra.mxu0 %v3982
        %3986 = vmatprep.subr.bf16.mxu0 0
        %3987 = vmatpush1.bf16.xpose.msra.mxu0 0
        %3988 = vmatprep.subr.bf16.mxu0 0
        %3989 = vmatpush1.bf16.xpose.msra.mxu0 0
        %3990 = vmatprep.subr.bf16.mxu0 0
        %3991 = vmatpush1.bf16.xpose.msra.mxu0 0
        %3992 = vmatprep.subr.bf16.mxu0 0
        %3993 = vmatpush1.bf16.xpose.msra.mxu0 0
        %3994 = vmatprep.subr.bf16.mxu0 0
        %3995 = vmatpush1.bf16.xpose.msra.mxu0 0
        %3996 = vmatprep.subr.bf16.mxu0 0
        %3997 = vmatpush1.bf16.xpose.msra.mxu0 0
        %3998 = vmatprep.subr.bf16.mxu0 0
        %3999 = vmatpush1.bf16.xpose.msra.mxu0 0
        %4000 = vmatprep.subr.bf16.mxu0 0
        %4001 = vmatpush1.bf16.xpose.msra.mxu0 0
        %4002 = vmatprep.subr.bf16.mxu0 0
        %4003 = vmatpush1.bf16.xpose.msra.mxu0 0
        %4004 = vmatprep.subr.bf16.mxu0 0
        %4005 = vmatpush1.bf16.xpose.msra.mxu0 0
        %4006 = vmatprep.subr.bf16.mxu0 0
        %4007 = vmatpush1.bf16.xpose.msra.mxu0 0
        %4008 = vmatprep.subr.bf16.mxu0 0
        %4009 = vmatpush1.bf16.xpose.msra.mxu0 0
        %4010 = vmatprep.subr.bf16.mxu0 0
        %4011 = vmatpush1.bf16.xpose.msra.mxu0 0
        %4012 = vmatprep.subr.bf16.mxu0 0
        %4013 = vmatpush1.bf16.xpose.msra.mxu0 0
        %4014 = vmatprep.subr.bf16.mxu0 0
        %4015 = vmatpush1.bf16.xpose.msra.mxu0 0
        %4016 = vmatprep.mubr.bf16.mxu0 0
        %4017 = vmatmul.mubr.bf16.gmra.mrb[0].mxu0 %v3979
        %v4018 = vpop.f32.mrb[0].mxu0
        %v4019 = vadd.f32 0.0, %v4018
        %v4020 = vpop.f32.mrb[0].mxu0
        %v4021 = vpop.f32.mrb[0].mxu0
        %v4022 = vpop.f32.mrb[0].mxu0
        %4023 = vdwg.mxu0
        %v4025 = vsel %vm1863, %v3881, 0
        %v4028 = vsel %vm1863, %v3885, 0
        %4030 = vmatprep.subr.bf16.mxu0 0
        %4031 = vmatpush1.bf16.xpose.msra.mxu0 %v4028
        %4032 = vmatprep.subr.bf16.mxu0 0
        %4033 = vmatpush1.bf16.xpose.msra.mxu0 0
        %4034 = vmatprep.subr.bf16.mxu0 0
        %4035 = vmatpush1.bf16.xpose.msra.mxu0 0
        %4036 = vmatprep.subr.bf16.mxu0 0
        %4037 = vmatpush1.bf16.xpose.msra.mxu0 0
        %4038 = vmatprep.subr.bf16.mxu0 0
        %4039 = vmatpush1.bf16.xpose.msra.mxu0 0
        %4040 = vmatprep.subr.bf16.mxu0 0
        %4041 = vmatpush1.bf16.xpose.msra.mxu0 0
        %4042 = vmatprep.subr.bf16.mxu0 0
        %4043 = vmatpush1.bf16.xpose.msra.mxu0 0
        %4044 = vmatprep.subr.bf16.mxu0 0
        %4045 = vmatpush1.bf16.xpose.msra.mxu0 0
        %4046 = vmatprep.subr.bf16.mxu0 0
        %4047 = vmatpush1.bf16.xpose.msra.mxu0 0
        %4048 = vmatprep.subr.bf16.mxu0 0
        %4049 = vmatpush1.bf16.xpose.msra.mxu0 0
        %4050 = vmatprep.subr.bf16.mxu0 0
        %4051 = vmatpush1.bf16.xpose.msra.mxu0 0
        %4052 = vmatprep.subr.bf16.mxu0 0
        %4053 = vmatpush1.bf16.xpose.msra.mxu0 0
        %4054 = vmatprep.subr.bf16.mxu0 0
        %4055 = vmatpush1.bf16.xpose.msra.mxu0 0
        %4056 = vmatprep.subr.bf16.mxu0 0
        %4057 = vmatpush1.bf16.xpose.msra.mxu0 0
        %4058 = vmatprep.subr.bf16.mxu0 0
        %4059 = vmatpush1.bf16.xpose.msra.mxu0 0
        %4060 = vmatprep.subr.bf16.mxu0 0
        %4061 = vmatpush1.bf16.xpose.msra.mxu0 0
        %4062 = vmatprep.mubr.bf16.mxu0 0
        %4063 = vmatmul.mubr.bf16.gmra.mrb[0].mxu0 %v4025
        %v4064 = vpop.f32.mrb[0].mxu0
        %v4065 = vadd.f32 0.0, %v4064
        %v4066 = vpop.f32.mrb[0].mxu0
        %v4067 = vpop.f32.mrb[0].mxu0
        %v4068 = vpop.f32.mrb[0].mxu0
        %4069 = vdwg.mxu0
        %v4070 = vmul.f32 %v3927, 0.35355338
        %v4071 = vmul.f32 %v3973, 0.35355338
        %v4072 = vmul.f32 %v4019, 0.35355338
        %v4073 = vmul.f32 %v4065, 0.35355338
        %v4074 = vadd.f32 %v4070, %v1041
        %v4075 = vadd.f32 %v4071, %v1041
        %v4076 = vadd.f32 %v4072, %v1041
        %v4077 = vadd.f32 %v4073, %v1041
        %v4078 = vsel %vm1863, %v4074, -inf
        %4079 = vmax.xlane.f32.xlu0 %v4078
        %v4080 = vpop.xlane.xlu0 %4079
        %v4081 = vsel %vm1863, %v4075, -inf
        %4082 = vmax.xlane.f32.xlu0 %v4081
        %v4083 = vpop.xlane.xlu0 %4082
        %v4084 = vsel %vm1863, %v4076, -inf
        %4085 = vmax.xlane.f32.xlu0 %v4084
        %v4086 = vpop.xlane.xlu0 %4085
        %v4087 = vsel %vm1863, %v4077, -inf
        %4088 = vmax.xlane.f32.xlu0 %v4087
        %v4089 = vpop.xlane.xlu0 %4088
        %v4090 = vsub.f32 %v4074, %v4080
        %v4091 = vsub.f32 %v4075, %v4083
        %v4092 = vsub.f32 %v4076, %v4086
        %v4093 = vsub.f32 %v4077, %v4089
        %v4094 = vmul.f32 %v4090, 1.442695
        %v4095 = vpow.pop %v4094
        %v4096 = vmul.f32 %v4091, 1.442695
        %v4097 = vpow.pop %v4096
        %v4098 = vmul.f32 %v4092, 1.442695
        %v4099 = vpow.pop %v4098
        %v4100 = vmul.f32 %v4093, 1.442695
        %v4101 = vpow.pop %v4100
        %v4102 = vsel %vm1863, %v4095, 0.0
        %4103 = vadd.xlane.f32.xlu0 %v4102
        %v4104 = vpop.xlane.xlu0 %4103
        %v4105 = vsel %vm1863, %v4097, 0.0
        %4106 = vadd.xlane.f32.xlu0 %v4105
        %v4107 = vpop.xlane.xlu0 %4106
        %v4108 = vsel %vm1863, %v4099, 0.0
        %4109 = vadd.xlane.f32.xlu0 %v4108
        %v4110 = vpop.xlane.xlu0 %4109
        %v4111 = vsel %vm1863, %v4101, 0.0
        %4112 = vadd.xlane.f32.xlu0 %v4111
        %v4113 = vpop.xlane.xlu0 %4112
        %v4114 = vrcp.pop %v4104
        %v4115 = vrcp.pop %v4107
        %v4116 = vrcp.pop %v4110
        %v4117 = vrcp.pop %v4113
        %v4118 = vmul.f32 %v4095, %v4114
        %v4119 = vmul.f32 %v4097, %v4115
        %v4120 = vmul.f32 %v4099, %v4116
        %v4121 = vmul.f32 %v4101, %v4117
        %v4122 = vpack.c.bf16 %v4118, %v4118
        %v4123 = vpack.c.bf16 %v4119, %v4119
        %v4124 = vpack.c.bf16 %v4120, %v4120
        %v4125 = vpack.c.bf16 %v4121, %v4121
        %4127 = vrot.lane.b32.xlu0 %v3882, 96
        %v4128 = vpop.permute.xlu0 %4127
        %v4130 = vsel %vm1863, %v4122, 0
        %v4133 = vsel %vm2110, %v4128, 0
        %4135 = vmatprep.subr.bf16.mxu0 0
        %4136 = vmatpush1.bf16.msra.mxu0 %v4133
        %4137 = vmatprep.subr.bf16.mxu0 0
        %4138 = vmatpush1.bf16.msra.mxu0 0
        %4139 = vmatprep.subr.bf16.mxu0 0
        %4140 = vmatpush1.bf16.msra.mxu0 0
        %4141 = vmatprep.subr.bf16.mxu0 0
        %4142 = vmatpush1.bf16.msra.mxu0 0
        %4143 = vmatprep.subr.bf16.mxu0 0
        %4144 = vmatpush1.bf16.msra.mxu0 0
        %4145 = vmatprep.subr.bf16.mxu0 0
        %4146 = vmatpush1.bf16.msra.mxu0 0
        %4147 = vmatprep.subr.bf16.mxu0 0
        %4148 = vmatpush1.bf16.msra.mxu0 0
        %4149 = vmatprep.subr.bf16.mxu0 0
        %4150 = vmatpush1.bf16.msra.mxu0 0
        %4151 = vmatprep.subr.bf16.mxu0 0
        %4152 = vmatpush1.bf16.msra.mxu0 0
        %4153 = vmatprep.subr.bf16.mxu0 0
        %4154 = vmatpush1.bf16.msra.mxu0 0
        %4155 = vmatprep.subr.bf16.mxu0 0
        %4156 = vmatpush1.bf16.msra.mxu0 0
        %4157 = vmatprep.subr.bf16.mxu0 0
        %4158 = vmatpush1.bf16.msra.mxu0 0
        %4159 = vmatprep.subr.bf16.mxu0 0
        %4160 = vmatpush1.bf16.msra.mxu0 0
        %4161 = vmatprep.subr.bf16.mxu0 0
        %4162 = vmatpush1.bf16.msra.mxu0 0
        %4163 = vmatprep.subr.bf16.mxu0 0
        %4164 = vmatpush1.bf16.msra.mxu0 0
        %4165 = vmatprep.subr.bf16.mxu0 0
        %4166 = vmatpush1.bf16.msra.mxu0 0
        %4167 = vmatprep.mubr.bf16.mxu0 0
        %4168 = vmatmul.mubr.bf16.gmra.mrb[0].mxu0 %v4130
        %v4169 = vpop.f32.mrb[0].mxu0
        %v4170 = vadd.f32 0.0, %v4169
        %v4171 = vpop.f32.mrb[0].mxu0
        %v4172 = vpop.f32.mrb[0].mxu0
        %v4173 = vpop.f32.mrb[0].mxu0
        %4174 = vdwg.mxu0
        %4176 = vrot.lane.b32.xlu0 %v3883, 96
        %v4177 = vpop.permute.xlu0 %4176
        %v4179 = vsel %vm1863, %v4123, 0
        %v4182 = vsel %vm2110, %v4177, 0
        %4184 = vmatprep.subr.bf16.mxu0 0
        %4185 = vmatpush1.bf16.msra.mxu0 %v4182
        %4186 = vmatprep.subr.bf16.mxu0 0
        %4187 = vmatpush1.bf16.msra.mxu0 0
        %4188 = vmatprep.subr.bf16.mxu0 0
        %4189 = vmatpush1.bf16.msra.mxu0 0
        %4190 = vmatprep.subr.bf16.mxu0 0
        %4191 = vmatpush1.bf16.msra.mxu0 0
        %4192 = vmatprep.subr.bf16.mxu0 0
        %4193 = vmatpush1.bf16.msra.mxu0 0
        %4194 = vmatprep.subr.bf16.mxu0 0
        %4195 = vmatpush1.bf16.msra.mxu0 0
        %4196 = vmatprep.subr.bf16.mxu0 0
        %4197 = vmatpush1.bf16.msra.mxu0 0
        %4198 = vmatprep.subr.bf16.mxu0 0
        %4199 = vmatpush1.bf16.msra.mxu0 0
        %4200 = vmatprep.subr.bf16.mxu0 0
        %4201 = vmatpush1.bf16.msra.mxu0 0
        %4202 = vmatprep.subr.bf16.mxu0 0
        %4203 = vmatpush1.bf16.msra.mxu0 0
        %4204 = vmatprep.subr.bf16.mxu0 0
        %4205 = vmatpush1.bf16.msra.mxu0 0
        %4206 = vmatprep.subr.bf16.mxu0 0
        %4207 = vmatpush1.bf16.msra.mxu0 0
        %4208 = vmatprep.subr.bf16.mxu0 0
        %4209 = vmatpush1.bf16.msra.mxu0 0
        %4210 = vmatprep.subr.bf16.mxu0 0
        %4211 = vmatpush1.bf16.msra.mxu0 0
        %4212 = vmatprep.subr.bf16.mxu0 0
        %4213 = vmatpush1.bf16.msra.mxu0 0
        %4214 = vmatprep.subr.bf16.mxu0 0
        %4215 = vmatpush1.bf16.msra.mxu0 0
        %4216 = vmatprep.mubr.bf16.mxu0 0
        %4217 = vmatmul.mubr.bf16.gmra.mrb[0].mxu0 %v4179
        %v4218 = vpop.f32.mrb[0].mxu0
        %v4219 = vadd.f32 0.0, %v4218
        %v4220 = vpop.f32.mrb[0].mxu0
        %v4221 = vpop.f32.mrb[0].mxu0
        %v4222 = vpop.f32.mrb[0].mxu0
        %4223 = vdwg.mxu0
        %4225 = vrot.lane.b32.xlu0 %v3884, 96
        %v4226 = vpop.permute.xlu0 %4225
        %v4228 = vsel %vm1863, %v4124, 0
        %v4231 = vsel %vm2110, %v4226, 0
        %4233 = vmatprep.subr.bf16.mxu0 0
        %4234 = vmatpush1.bf16.msra.mxu0 %v4231
        %4235 = vmatprep.subr.bf16.mxu0 0
        %4236 = vmatpush1.bf16.msra.mxu0 0
        %4237 = vmatprep.subr.bf16.mxu0 0
        %4238 = vmatpush1.bf16.msra.mxu0 0
        %4239 = vmatprep.subr.bf16.mxu0 0
        %4240 = vmatpush1.bf16.msra.mxu0 0
        %4241 = vmatprep.subr.bf16.mxu0 0
        %4242 = vmatpush1.bf16.msra.mxu0 0
        %4243 = vmatprep.subr.bf16.mxu0 0
        %4244 = vmatpush1.bf16.msra.mxu0 0
        %4245 = vmatprep.subr.bf16.mxu0 0
        %4246 = vmatpush1.bf16.msra.mxu0 0
        %4247 = vmatprep.subr.bf16.mxu0 0
        %4248 = vmatpush1.bf16.msra.mxu0 0
        %4249 = vmatprep.subr.bf16.mxu0 0
        %4250 = vmatpush1.bf16.msra.mxu0 0
        %4251 = vmatprep.subr.bf16.mxu0 0
        %4252 = vmatpush1.bf16.msra.mxu0 0
        %4253 = vmatprep.subr.bf16.mxu0 0
        %4254 = vmatpush1.bf16.msra.mxu0 0
        %4255 = vmatprep.subr.bf16.mxu0 0
        %4256 = vmatpush1.bf16.msra.mxu0 0
        %4257 = vmatprep.subr.bf16.mxu0 0
        %4258 = vmatpush1.bf16.msra.mxu0 0
        %4259 = vmatprep.subr.bf16.mxu0 0
        %4260 = vmatpush1.bf16.msra.mxu0 0
        %4261 = vmatprep.subr.bf16.mxu0 0
        %4262 = vmatpush1.bf16.msra.mxu0 0
        %4263 = vmatprep.subr.bf16.mxu0 0
        %4264 = vmatpush1.bf16.msra.mxu0 0
        %4265 = vmatprep.mubr.bf16.mxu0 0
        %4266 = vmatmul.mubr.bf16.gmra.mrb[0].mxu0 %v4228
        %v4267 = vpop.f32.mrb[0].mxu0
        %v4268 = vadd.f32 0.0, %v4267
        %v4269 = vpop.f32.mrb[0].mxu0
        %v4270 = vpop.f32.mrb[0].mxu0
        %v4271 = vpop.f32.mrb[0].mxu0
        %4272 = vdwg.mxu0
        %4274 = vrot.lane.b32.xlu0 %v3885, 96
        %v4275 = vpop.permute.xlu0 %4274
        %v4277 = vsel %vm1863, %v4125, 0
        %v4280 = vsel %vm2110, %v4275, 0
        %4282 = vmatprep.subr.bf16.mxu0 0
        %4283 = vmatpush1.bf16.msra.mxu0 %v4280
        %4284 = vmatprep.subr.bf16.mxu0 0
        %4285 = vmatpush1.bf16.msra.mxu0 0
        %4286 = vmatprep.subr.bf16.mxu0 0
        %4287 = vmatpush1.bf16.msra.mxu0 0
        %4288 = vmatprep.subr.bf16.mxu0 0
        %4289 = vmatpush1.bf16.msra.mxu0 0
        %4290 = vmatprep.subr.bf16.mxu0 0
        %4291 = vmatpush1.bf16.msra.mxu0 0
        %4292 = vmatprep.subr.bf16.mxu0 0
        %4293 = vmatpush1.bf16.msra.mxu0 0
        %4294 = vmatprep.subr.bf16.mxu0 0
        %4295 = vmatpush1.bf16.msra.mxu0 0
        %4296 = vmatprep.subr.bf16.mxu0 0
        %4297 = vmatpush1.bf16.msra.mxu0 0
        %4298 = vmatprep.subr.bf16.mxu0 0
        %4299 = vmatpush1.bf16.msra.mxu0 0
        %4300 = vmatprep.subr.bf16.mxu0 0
        %4301 = vmatpush1.bf16.msra.mxu0 0
        %4302 = vmatprep.subr.bf16.mxu0 0
        %4303 = vmatpush1.bf16.msra.mxu0 0
        %4304 = vmatprep.subr.bf16.mxu0 0
        %4305 = vmatpush1.bf16.msra.mxu0 0
        %4306 = vmatprep.subr.bf16.mxu0 0
        %4307 = vmatpush1.bf16.msra.mxu0 0
        %4308 = vmatprep.subr.bf16.mxu0 0
        %4309 = vmatpush1.bf16.msra.mxu0 0
        %4310 = vmatprep.subr.bf16.mxu0 0
        %4311 = vmatpush1.bf16.msra.mxu0 0
        %4312 = vmatprep.subr.bf16.mxu0 0
        %4313 = vmatpush1.bf16.msra.mxu0 0
        %4314 = vmatprep.mubr.bf16.mxu0 0
        %4315 = vmatmul.mubr.bf16.gmra.mrb[0].mxu0 %v4277
        %v4316 = vpop.f32.mrb[0].mxu0
        %v4317 = vadd.f32 0.0, %v4316
        %v4318 = vpop.f32.mrb[0].mxu0
        %v4319 = vpop.f32.mrb[0].mxu0
        %v4320 = vpop.f32.mrb[0].mxu0
        %4321 = vdwg.mxu0
        %v4322 = vpack.c.bf16 %v4170, %v4170
        %v4323 = vpack.c.bf16 %v4219, %v4219
        %v4324 = vpack.c.bf16 %v4268, %v4268
        %v4325 = vpack.c.bf16 %v4317, %v4317
        %v4326 = vld [vmem:[%s53] sm:$0xf]
        %v4327 = vld [vmem:[%s53 + $0x4] sm:$0xf]
        %v4328 = vld [vmem:[%s53 + $0x8] sm:$0xf]
        %v4329 = vld [vmem:[%s53 + $0xc] sm:$0xf]
        %v4331 = vsel %vm1863, %v4322, 0
        %v4334 = vsel %vm2110, %v4326, 0
        %4336 = vmatprep.subr.bf16.mxu0 0
        %4337 = vmatpush1.bf16.msra.mxu0 %v4334
        %4338 = vmatprep.subr.bf16.mxu0 0
        %4339 = vmatpush1.bf16.msra.mxu0 0
        %4340 = vmatprep.subr.bf16.mxu0 0
        %4341 = vmatpush1.bf16.msra.mxu0 0
        %4342 = vmatprep.subr.bf16.mxu0 0
        %4343 = vmatpush1.bf16.msra.mxu0 0
        %4344 = vmatprep.subr.bf16.mxu0 0
        %4345 = vmatpush1.bf16.msra.mxu0 0
        %4346 = vmatprep.subr.bf16.mxu0 0
        %4347 = vmatpush1.bf16.msra.mxu0 0
        %4348 = vmatprep.subr.bf16.mxu0 0
        %4349 = vmatpush1.bf16.msra.mxu0 0
        %4350 = vmatprep.subr.bf16.mxu0 0
        %4351 = vmatpush1.bf16.msra.mxu0 0
        %4352 = vmatprep.subr.bf16.mxu0 0
        %4353 = vmatpush1.bf16.msra.mxu0 0
        %4354 = vmatprep.subr.bf16.mxu0 0
        %4355 = vmatpush1.bf16.msra.mxu0 0
        %4356 = vmatprep.subr.bf16.mxu0 0
        %4357 = vmatpush1.bf16.msra.mxu0 0
        %4358 = vmatprep.subr.bf16.mxu0 0
        %4359 = vmatpush1.bf16.msra.mxu0 0
        %4360 = vmatprep.subr.bf16.mxu0 0
        %4361 = vmatpush1.bf16.msra.mxu0 0
        %4362 = vmatprep.subr.bf16.mxu0 0
        %4363 = vmatpush1.bf16.msra.mxu0 0
        %4364 = vmatprep.subr.bf16.mxu0 0
        %4365 = vmatpush1.bf16.msra.mxu0 0
        %4366 = vmatprep.subr.bf16.mxu0 0
        %4367 = vmatpush1.bf16.msra.mxu0 0
        %4368 = vmatprep.mubr.bf16.mxu0 0
        %4369 = vmatmul.mubr.bf16.gmra.mrb[0].mxu0 %v4331
        %v4370 = vpop.f32.mrb[0].mxu0
        %v4371 = vadd.f32 0.0, %v4370
        %v4372 = vpop.f32.mrb[0].mxu0
        %v4373 = vpop.f32.mrb[0].mxu0
        %v4374 = vpop.f32.mrb[0].mxu0
        %4375 = vdwg.mxu0
        %v4377 = vsel %vm1863, %v4323, 0
        %v4380 = vsel %vm2110, %v4327, 0
        %4382 = vmatprep.subr.bf16.mxu0 0
        %4383 = vmatpush1.bf16.msra.mxu0 %v4380
        %4384 = vmatprep.subr.bf16.mxu0 0
        %4385 = vmatpush1.bf16.msra.mxu0 0
        %4386 = vmatprep.subr.bf16.mxu0 0
        %4387 = vmatpush1.bf16.msra.mxu0 0
        %4388 = vmatprep.subr.bf16.mxu0 0
        %4389 = vmatpush1.bf16.msra.mxu0 0
        %4390 = vmatprep.subr.bf16.mxu0 0
        %4391 = vmatpush1.bf16.msra.mxu0 0
        %4392 = vmatprep.subr.bf16.mxu0 0
        %4393 = vmatpush1.bf16.msra.mxu0 0
        %4394 = vmatprep.subr.bf16.mxu0 0
        %4395 = vmatpush1.bf16.msra.mxu0 0
        %4396 = vmatprep.subr.bf16.mxu0 0
        %4397 = vmatpush1.bf16.msra.mxu0 0
        %4398 = vmatprep.subr.bf16.mxu0 0
        %4399 = vmatpush1.bf16.msra.mxu0 0
        %4400 = vmatprep.subr.bf16.mxu0 0
        %4401 = vmatpush1.bf16.msra.mxu0 0
        %4402 = vmatprep.subr.bf16.mxu0 0
        %4403 = vmatpush1.bf16.msra.mxu0 0
        %4404 = vmatprep.subr.bf16.mxu0 0
        %4405 = vmatpush1.bf16.msra.mxu0 0
        %4406 = vmatprep.subr.bf16.mxu0 0
        %4407 = vmatpush1.bf16.msra.mxu0 0
        %4408 = vmatprep.subr.bf16.mxu0 0
        %4409 = vmatpush1.bf16.msra.mxu0 0
        %4410 = vmatprep.subr.bf16.mxu0 0
        %4411 = vmatpush1.bf16.msra.mxu0 0
        %4412 = vmatprep.subr.bf16.mxu0 0
        %4413 = vmatpush1.bf16.msra.mxu0 0
        %4414 = vmatprep.mubr.bf16.mxu0 0
        %4415 = vmatmul.mubr.bf16.gmra.mrb[0].mxu0 %v4377
        %v4416 = vpop.f32.mrb[0].mxu0
        %v4417 = vadd.f32 0.0, %v4416
        %v4418 = vpop.f32.mrb[0].mxu0
        %v4419 = vpop.f32.mrb[0].mxu0
        %v4420 = vpop.f32.mrb[0].mxu0
        %4421 = vdwg.mxu0
        %v4423 = vsel %vm1863, %v4324, 0
        %v4426 = vsel %vm2110, %v4328, 0
        %4428 = vmatprep.subr.bf16.mxu0 0
        %4429 = vmatpush1.bf16.msra.mxu0 %v4426
        %4430 = vmatprep.subr.bf16.mxu0 0
        %4431 = vmatpush1.bf16.msra.mxu0 0
        %4432 = vmatprep.subr.bf16.mxu0 0
        %4433 = vmatpush1.bf16.msra.mxu0 0
        %4434 = vmatprep.subr.bf16.mxu0 0
        %4435 = vmatpush1.bf16.msra.mxu0 0
        %4436 = vmatprep.subr.bf16.mxu0 0
        %4437 = vmatpush1.bf16.msra.mxu0 0
        %4438 = vmatprep.subr.bf16.mxu0 0
        %4439 = vmatpush1.bf16.msra.mxu0 0
        %4440 = vmatprep.subr.bf16.mxu0 0
        %4441 = vmatpush1.bf16.msra.mxu0 0
        %4442 = vmatprep.subr.bf16.mxu0 0
        %4443 = vmatpush1.bf16.msra.mxu0 0
        %4444 = vmatprep.subr.bf16.mxu0 0
        %4445 = vmatpush1.bf16.msra.mxu0 0
        %4446 = vmatprep.subr.bf16.mxu0 0
        %4447 = vmatpush1.bf16.msra.mxu0 0
        %4448 = vmatprep.subr.bf16.mxu0 0
        %4449 = vmatpush1.bf16.msra.mxu0 0
        %4450 = vmatprep.subr.bf16.mxu0 0
        %4451 = vmatpush1.bf16.msra.mxu0 0
        %4452 = vmatprep.subr.bf16.mxu0 0
        %4453 = vmatpush1.bf16.msra.mxu0 0
        %4454 = vmatprep.subr.bf16.mxu0 0
        %4455 = vmatpush1.bf16.msra.mxu0 0
        %4456 = vmatprep.subr.bf16.mxu0 0
        %4457 = vmatpush1.bf16.msra.mxu0 0
        %4458 = vmatprep.subr.bf16.mxu0 0
        %4459 = vmatpush1.bf16.msra.mxu0 0
        %4460 = vmatprep.mubr.bf16.mxu0 0
        %4461 = vmatmul.mubr.bf16.gmra.mrb[0].mxu0 %v4423
        %v4462 = vpop.f32.mrb[0].mxu0
        %v4463 = vadd.f32 0.0, %v4462
        %v4464 = vpop.f32.mrb[0].mxu0
        %v4465 = vpop.f32.mrb[0].mxu0
        %v4466 = vpop.f32.mrb[0].mxu0
        %4467 = vdwg.mxu0
        %v4469 = vsel %vm1863, %v4325, 0
        %v4472 = vsel %vm2110, %v4329, 0
        %4474 = vmatprep.subr.bf16.mxu0 0
        %4475 = vmatpush1.bf16.msra.mxu0 %v4472
        %4476 = vmatprep.subr.bf16.mxu0 0
        %4477 = vmatpush1.bf16.msra.mxu0 0
        %4478 = vmatprep.subr.bf16.mxu0 0
        %4479 = vmatpush1.bf16.msra.mxu0 0
        %4480 = vmatprep.subr.bf16.mxu0 0
        %4481 = vmatpush1.bf16.msra.mxu0 0
        %4482 = vmatprep.subr.bf16.mxu0 0
        %4483 = vmatpush1.bf16.msra.mxu0 0
        %4484 = vmatprep.subr.bf16.mxu0 0
        %4485 = vmatpush1.bf16.msra.mxu0 0
        %4486 = vmatprep.subr.bf16.mxu0 0
        %4487 = vmatpush1.bf16.msra.mxu0 0
        %4488 = vmatprep.subr.bf16.mxu0 0
        %4489 = vmatpush1.bf16.msra.mxu0 0
        %4490 = vmatprep.subr.bf16.mxu0 0
        %4491 = vmatpush1.bf16.msra.mxu0 0
        %4492 = vmatprep.subr.bf16.mxu0 0
        %4493 = vmatpush1.bf16.msra.mxu0 0
        %4494 = vmatprep.subr.bf16.mxu0 0
        %4495 = vmatpush1.bf16.msra.mxu0 0
        %4496 = vmatprep.subr.bf16.mxu0 0
        %4497 = vmatpush1.bf16.msra.mxu0 0
        %4498 = vmatprep.subr.bf16.mxu0 0
        %4499 = vmatpush1.bf16.msra.mxu0 0
        %4500 = vmatprep.subr.bf16.mxu0 0
        %4501 = vmatpush1.bf16.msra.mxu0 0
        %4502 = vmatprep.subr.bf16.mxu0 0
        %4503 = vmatpush1.bf16.msra.mxu0 0
        %4504 = vmatprep.subr.bf16.mxu0 0
        %4505 = vmatpush1.bf16.msra.mxu0 0
        %4506 = vmatprep.mubr.bf16.mxu0 0
        %4507 = vmatmul.mubr.bf16.gmra.mrb[0].mxu0 %v4469
        %v4508 = vpop.f32.mrb[0].mxu0
        %v4509 = vadd.f32 0.0, %v4508
        %v4510 = vpop.f32.mrb[0].mxu0
        %v4511 = vpop.f32.mrb[0].mxu0
        %v4512 = vpop.f32.mrb[0].mxu0
        %4513 = vdwg.mxu0
        %v4514 = vsel %vm1676, %v4371, 0.0
        %v4515 = vsel %vm1676, %v4417, 0.0
        %v4516 = vadd.f32 %v4514, %v4515
        %v4517 = vsel %vm1676, %v4463, 0.0
        %v4518 = vadd.f32 %v4516, %v4517
        %v4519 = vsel %vm1676, %v4509, 0.0
        %v4520 = vadd.f32 %v4518, %v4519
        %v4521 = vld [vmem:[%s55] sm:$0x1]
        %v4523 = vlaneseq
        %v4524 = vshrl.u32 %v4523, 7
        %v4525 = vsub.s32 0, %v4524
        %v4526 = vrot.slane %v4521, %v4525
        %v4528 = vadd.f32 %v4520, %v4526
        %v4529 = vadd.f32 %v4528, %v3721
        %v4530 = vsel %vm1676, %v4529, 0.0
        %4531 = vadd.xlane.f32.xlu0 %v4530
        %v4532 = vpop.xlane.xlu0 %4531
        %v4533 = vmul.f32 %v4532, %v1680
        %v4534 = vsub.f32 %v4529, %v4533
        %v4535 = vmul.f32 %v4534, %v4534
        %v4536 = vsel %vm1676, %v4535, 0.0
        %4537 = vadd.xlane.f32.xlu0 %v4536
        %v4538 = vpop.xlane.xlu0 %4537
        %v4539 = vmul.f32 %v4538, %v1680
        %v4540 = vadd.f32 %v4539, 1e-05
        %v4541 = vrsqrt.pop %v4540
        %v4542 = vmul.f32 %v4534, %v4541
        %v4544 = vlaneseq
        %v4545 = vshrl.u32 %v4544, 7
        %v4546 = vsub.s32 0, %v4545
        %v4547 = vrot.slane %v3693, %v4546
        %v4549 = vmul.f32 %v4542, %v4547
        %v4551 = vlaneseq
        %v4552 = vshrl.u32 %v4551, 7
        %v4553 = vsub.s32 0, %v4552
        %v4554 = vrot.slane %v3694, %v4553
        %v4556 = vadd.f32 %v4549, %v4554
        %v4557 = vpack.c.bf16 %v4556, %v4556
        %v4558 = vld [vmem:[%s57] sm:$0xf]
        %v4559 = vld [vmem:[%s57 + $0x4] sm:$0xf]
        %v4560 = vld [vmem:[%s57 + $0x8] sm:$0xf]
        %v4561 = vld [vmem:[%s57 + $0xc] sm:$0xf]
        %v4562 = vld [vmem:[%s59] sm:$0x1]
        %v4564 = vlaneseq
        %v4565 = vshrl.u32 %v4564, 7
        %v4566 = vsub.s32 0, %v4565
        %v4567 = vrot.slane %v4562, %v4566
        %v4573 = vunpack.c.l.b16 %v4558
        %v4574 = vunpack.c.l.b16 %v4559
        %v4575 = vunpack.c.l.b16 %v4560
        %v4576 = vunpack.c.l.b16 %v4561
        %v4577 = vpack.c.b16 %v4574, %v4573
        %v4578 = vpack.c.b16 %v4576, %v4575
        %v4582 = vsel %vm1676, %v4557, 0
        %4584 = vmatprep.subr.bf16.mxu0 0
        %4585 = vmatpush1.bf16.msra.mxu0 %v4577
        %4586 = vmatprep.subr.bf16.mxu0 0
        %4587 = vmatpush1.bf16.msra.mxu0 %v4578
        %4588 = vmatprep.subr.bf16.mxu0 0
        %4589 = vmatpush1.bf16.msra.mxu0 0
        %4590 = vmatprep.subr.bf16.mxu0 0
        %4591 = vmatpush1.bf16.msra.mxu0 0
        %4592 = vmatprep.subr.bf16.mxu0 0
        %4593 = vmatpush1.bf16.msra.mxu0 0
        %4594 = vmatprep.subr.bf16.mxu0 0
        %4595 = vmatpush1.bf16.msra.mxu0 0
        %4596 = vmatprep.subr.bf16.mxu0 0
        %4597 = vmatpush1.bf16.msra.mxu0 0
        %4598 = vmatprep.subr.bf16.mxu0 0
        %4599 = vmatpush1.bf16.msra.mxu0 0
        %4600 = vmatprep.subr.bf16.mxu0 0
        %4601 = vmatpush1.bf16.msra.mxu0 0
        %4602 = vmatprep.subr.bf16.mxu0 0
        %4603 = vmatpush1.bf16.msra.mxu0 0
        %4604 = vmatprep.subr.bf16.mxu0 0
        %4605 = vmatpush1.bf16.msra.mxu0 0
        %4606 = vmatprep.subr.bf16.mxu0 0
        %4607 = vmatpush1.bf16.msra.mxu0 0
        %4608 = vmatprep.subr.bf16.mxu0 0
        %4609 = vmatpush1.bf16.msra.mxu0 0
        %4610 = vmatprep.subr.bf16.mxu0 0
        %4611 = vmatpush1.bf16.msra.mxu0 0
        %4612 = vmatprep.subr.bf16.mxu0 0
        %4613 = vmatpush1.bf16.msra.mxu0 0
        %4614 = vmatprep.subr.bf16.mxu0 0
        %4615 = vmatpush1.bf16.msra.mxu0 0
        %4616 = vmatprep.mubr.bf16.mxu0 0
        %4617 = vmatmul.mubr.bf16.gmra.mrb[0].mxu0 %v4582
        %v4618 = vpop.f32.mrb[0].mxu0
        %v4619 = vadd.f32 %v4567, %v4618
        %v4620 = vpop.f32.mrb[0].mxu0
        %v4621 = vpop.f32.mrb[0].mxu0
        %v4622 = vpop.f32.mrb[0].mxu0
        %4623 = vdwg.mxu0
        %v4624 = vmax.f32 %v4619, 0.0
        %v4625 = vpack.c.bf16 %v4624, %v4624
        %v4626 = vld [vmem:[%s3622] sm:$0xf]
        %v4627 = vld [vmem:[%s3622 + $0x4] sm:$0xf]
        %v4628 = vld [vmem:[%s3622 + $0x8] sm:$0xf]
        %v4629 = vld [vmem:[%s3622 + $0xc] sm:$0xf]
        %v4630 = vld [vmem:[%s3627] sm:$0x1]
        %v4632 = vlaneseq
        %v4633 = vshrl.u32 %v4632, 7
        %v4634 = vsub.s32 0, %v4633
        %v4635 = vrot.slane %v4630, %v4634
        %v4641 = vunpack.c.l.b16 %v4626
        %v4642 = vunpack.c.l.b16 %v4627
        %v4643 = vunpack.c.l.b16 %v4628
        %v4644 = vunpack.c.l.b16 %v4629
        %v4645 = vpack.c.b16 %v4642, %v4641
        %v4646 = vpack.c.b16 %v4644, %v4643
        %v4650 = vsel %vm1676, %v4625, 0
        %4652 = vmatprep.subr.bf16.mxu0 0
        %4653 = vmatpush1.bf16.msra.mxu0 %v4645
        %4654 = vmatprep.subr.bf16.mxu0 0
        %4655 = vmatpush1.bf16.msra.mxu0 %v4646
        %4656 = vmatprep.subr.bf16.mxu0 0
        %4657 = vmatpush1.bf16.msra.mxu0 0
        %4658 = vmatprep.subr.bf16.mxu0 0
        %4659 = vmatpush1.bf16.msra.mxu0 0
        %4660 = vmatprep.subr.bf16.mxu0 0
        %4661 = vmatpush1.bf16.msra.mxu0 0
        %4662 = vmatprep.subr.bf16.mxu0 0
        %4663 = vmatpush1.bf16.msra.mxu0 0
        %4664 = vmatprep.subr.bf16.mxu0 0
        %4665 = vmatpush1.bf16.msra.mxu0 0
        %4666 = vmatprep.subr.bf16.mxu0 0
        %4667 = vmatpush1.bf16.msra.mxu0 0
        %4668 = vmatprep.subr.bf16.mxu0 0
        %4669 = vmatpush1.bf16.msra.mxu0 0
        %4670 = vmatprep.subr.bf16.mxu0 0
        %4671 = vmatpush1.bf16.msra.mxu0 0
        %4672 = vmatprep.subr.bf16.mxu0 0
        %4673 = vmatpush1.bf16.msra.mxu0 0
        %4674 = vmatprep.subr.bf16.mxu0 0
        %4675 = vmatpush1.bf16.msra.mxu0 0
        %4676 = vmatprep.subr.bf16.mxu0 0
        %4677 = vmatpush1.bf16.msra.mxu0 0
        %4678 = vmatprep.subr.bf16.mxu0 0
        %4679 = vmatpush1.bf16.msra.mxu0 0
        %4680 = vmatprep.subr.bf16.mxu0 0
        %4681 = vmatpush1.bf16.msra.mxu0 0
        %4682 = vmatprep.subr.bf16.mxu0 0
        %4683 = vmatpush1.bf16.msra.mxu0 0
        %4684 = vmatprep.mubr.bf16.mxu0 0
        %4685 = vmatmul.mubr.bf16.gmra.mrb[0].mxu0 %v4650
        %v4686 = vpop.f32.mrb[0].mxu0
        %v4687 = vadd.f32 %v4635, %v4686
        %v4688 = vpop.f32.mrb[0].mxu0
        %v4689 = vpop.f32.mrb[0].mxu0
        %v4690 = vpop.f32.mrb[0].mxu0
        %4691 = vdwg.mxu0
        %v4692 = vadd.f32 %v4687, %v4556
        %v4693 = vld [vmem:[%s61] sm:$0x1]
        %s4694 = sld [smem:[#allocation2]]
        %v4695 = vstv %s4694
        %v4697 = vsel %vm1676, %v4693, 0
        %v4700 = vsel %vm1676, %v4692, 0
        %4702 = vmatprep.subr.mxu0 0.0
        %4703 = vmatpush1.xpose.msra.mxu0 %v4700
        %4704 = vmatprep.subr.mxu0 0.0
        %4705 = vmatpush1.xpose.msra.mxu0 0.0
        %4706 = vmatprep.subr.mxu0 0.0
        %4707 = vmatpush1.xpose.msra.mxu0 0.0
        %4708 = vmatprep.subr.mxu0 0.0
        %4709 = vmatpush1.xpose.msra.mxu0 0.0
        %4710 = vmatprep.subr.mxu0 0.0
        %4711 = vmatpush1.xpose.msra.mxu0 0.0
        %4712 = vmatprep.subr.mxu0 0.0
        %4713 = vmatpush1.xpose.msra.mxu0 0.0
        %4714 = vmatprep.subr.mxu0 0.0
        %4715 = vmatpush1.xpose.msra.mxu0 0.0
        %4716 = vmatprep.subr.mxu0 0.0
        %4717 = vmatpush1.xpose.msra.mxu0 0.0
        %4718 = vmatprep.subr.mxu0 0.0
        %4719 = vmatpush1.xpose.msra.mxu0 0.0
        %4720 = vmatprep.subr.mxu0 0.0
        %4721 = vmatpush1.xpose.msra.mxu0 0.0
        %4722 = vmatprep.subr.mxu0 0.0
        %4723 = vmatpush1.xpose.msra.mxu0 0.0
        %4724 = vmatprep.subr.mxu0 0.0
        %4725 = vmatpush1.xpose.msra.mxu0 0.0
        %4726 = vmatprep.subr.mxu0 0.0
        %4727 = vmatpush1.xpose.msra.mxu0 0.0
        %4728 = vmatprep.subr.mxu0 0.0
        %4729 = vmatpush1.xpose.msra.mxu0 0.0
        %4730 = vmatprep.subr.mxu0 0.0
        %4731 = vmatpush1.xpose.msra.mxu0 0.0
        %4732 = vmatprep.subr.mxu0 0.0
        %4733 = vmatpush1.xpose.msra.mxu0 0.0
        %4734 = vmatprep.subr.mxu0 0.0
        %4735 = vmatpush1.xpose.msra.mxu0 0.0
        %4736 = vmatprep.subr.mxu0 0.0
        %4737 = vmatpush1.xpose.msra.mxu0 0.0
        %4738 = vmatprep.subr.mxu0 0.0
        %4739 = vmatpush1.xpose.msra.mxu0 0.0
        %4740 = vmatprep.subr.mxu0 0.0
        %4741 = vmatpush1.xpose.msra.mxu0 0.0
        %4742 = vmatprep.subr.mxu0 0.0
        %4743 = vmatpush1.xpose.msra.mxu0 0.0
        %4744 = vmatprep.subr.mxu0 0.0
        %4745 = vmatpush1.xpose.msra.mxu0 0.0
        %4746 = vmatprep.subr.mxu0 0.0
        %4747 = vmatpush1.xpose.msra.mxu0 0.0
        %4748 = vmatprep.subr.mxu0 0.0
        %4749 = vmatpush1.xpose.msra.mxu0 0.0
        %4750 = vmatprep.subr.mxu0 0.0
        %4751 = vmatpush1.xpose.msra.mxu0 0.0
        %4752 = vmatprep.subr.mxu0 0.0
        %4753 = vmatpush1.xpose.msra.mxu0 0.0
        %4754 = vmatprep.subr.mxu0 0.0
        %4755 = vmatpush1.xpose.msra.mxu0 0.0
        %4756 = vmatprep.subr.mxu0 0.0
        %4757 = vmatpush1.xpose.msra.mxu0 0.0
        %4758 = vmatprep.subr.mxu0 0.0
        %4759 = vmatpush1.xpose.msra.mxu0 0.0
        %4760 = vmatprep.subr.mxu0 0.0
        %4761 = vmatpush1.xpose.msra.mxu0 0.0
        %4762 = vmatprep.subr.mxu0 0.0
        %4763 = vmatpush1.xpose.msra.mxu0 0.0
        %4764 = vmatprep.subr.mxu0 0.0
        %4765 = vmatpush1.xpose.msra.mxu0 0.0
        %4766 = vmatprep.mubr.f32.mxu0 0.0
        %4767 = vmatmul.mubr.f32.gmra.mrb[0].mxu0 %v4697
        %v4768 = vpop.f32.mrb[0].mxu0
        %v4769 = vadd.f32 %v4695, %v4768
        %v4770 = vpop.f32.mrb[0].mxu0
        %4771 = vdwg.mxu0
        %v4772 = vxor.u32 %v4769, 2147483648
        %v4773 = vmul.f32 %v4772, 1.442695
        %v4774 = vpow.pop %v4773
        %v4775 = vadd.f32 %v4774, 1.0
        %v4776 = vrcp.pop %v4775
        %v4777 = vmul.f32 1.0, %v4776
        %vm4778 = vcmask 57344
        %4779 = vst.msk [vmem:[%s1016] sm:$0x1] %vm4778, %v4777
        %s4780 = sand.u32 %s780, 1
        %s4781 = scalar_lea.sflag [#allocation4], %s4780
        %s4782 = sand.u32 %s780, 1
        %s4783 = scalar_lea.vmem [#allocation3], %s4782
        // Predicated region
        $region149: #{ltmti_forward.1} parent=147 // pred_check
          %p4784 = pneg %p790
        $region150: #{ltmti_forward.1} parent=147 // pred_check_branch
          %4786 = sbr.rel (%p4784) target = $region152
        $region151: #{ltmti_forward.1} parent=147 // pred_region
          %s4788 = ssub.s32 16, 16
          %4789 = vsyncadd %s4781, %s4788
          %s4790 = smul.addr %s80, 16
          %s4791 = scalar_lea.hbm %s65, %s4790
          %s4793 = sshll.u32 %s4783, 4
          %s4794 = int_to_ptr.vmem [resolvable:$true] %s4793
          %4796 = dma.vmem_to_hbm [thread:$0]  %s4794, 16, %s4791, %s4781
        $region152: #{ltmti_forward.1} parent=147 // pred_fallthru
          _
      $region148: #{ltmti_forward.1} parent=5 // pred_fallthru
        _
      %p4797 = scmp.le.s32.totalorder 2, %s75
      // Predicated region
      $region153: #{ltmti_forward.1} parent=5 // pred_check
        %p4798 = pneg %p4797
      $region154: #{ltmti_forward.1} parent=5 // pred_check_branch
        %4800 = sbr.rel (%p4798) target = $region156
      $region155: #{ltmti_forward.1} parent=5 // pred_region
        %s4801 = ssub.s32 %s75, 2
        // Predicated region
        $region157: #{ltmti_forward.1} parent=155 // pred_check
          %p4802 = pneg %p796
        $region158: #{ltmti_forward.1} parent=155 // pred_check_branch
          %4804 = sbr.rel (%p4802) target = $region160
        $region159: #{ltmti_forward.1} parent=155 // pred_region
          %s4805 = sand.u32 %s781, 1
          %s4806 = scalar_lea.sflag [#allocation4], %s4805
          %s4807 = sand.u32 %s781, 1
          %s4808 = scalar_lea.vmem [#allocation3], %s4807
          %4809 = dma.done %s4806, 16
        $region160: #{ltmti_forward.1} parent=155 // pred_fallthru
          _
      $region156: #{ltmti_forward.1} parent=5 // pred_fallthru
        _
    $region6: #{ltmti_forward.1} parent=1 // loop_footer
      %s79 = sadd.s32 1, %s75
    $region7: #{ltmti_forward.1} parent=1 // loop_footer_branch
      %74 = sbr.rel target = $region3
    $region8: #{ltmti_forward.1} parent=1 // loop_exit
      _
    %4810 = vsyncpa [#allocation4], 1
    %s4811 = scalar_lea.sflag [#allocation4], 1
    %4812 = vsyncpa %s4811, 1

</llo_original>
